<compile_context>
chip_gen: v7x
topology: tpu7x:2x2x1
jax: 0.10.0
libtpu: 0.0.40
codegen_flags: <defaults>
</compile_context>

<pallas_src>
import math
import functools

import jax
import jax.numpy as jnp
from jax import lax
from jax.experimental import pallas as pl
from jax.experimental.pallas import tpu as pltpu


# ----------------------------------------------------------------------------
# Fused MoE kernel: gate + softmax + entropy + top-k + experts + combine
# ----------------------------------------------------------------------------
def _moe_kernel(x_ref, wg_ref, bg_ref, we_ref, be_ref,
                out_ref, ent_ref, sel_ref, *, top_k, epsilon):
    """One tile of tokens.

    x_ref  : (TM, D)    bf16 token tile
    wg_ref : (D, E)     bf16 gate weight (pre-transposed)
    bg_ref : (1, E)     f32  gate bias
    we_ref : (E, D, H)  bf16 expert weights (pre-transposed, stacked)
    be_ref : (E, H)     f32  expert biases
    out_ref: (TM, H)    f32  combined expert output (lane-dense)
    ent_ref: (TM, 1)    f32  per-token gate entropy
    sel_ref: (TM, E)    f32  top-k selection indicator summed over k (0/1 each)
    """
    x = x_ref[...]                                                   # bf16

    # ---- gate: logits -> softmax (f32 accumulation on the MXU) ----
    logits = jnp.dot(x, wg_ref[...], preferred_element_type=jnp.float32)
    logits = logits + bg_ref[...]                                    # (TM, E)
    mx = jnp.max(logits, axis=-1, keepdims=True)
    exps = jnp.exp(logits - mx)
    probs = exps / jnp.sum(exps, axis=-1, keepdims=True)             # (TM, E)

    # per-token entropy of the gate distribution
    ent_ref[...] = -jnp.sum(probs * jnp.log(probs + epsilon),
                            axis=-1, keepdims=True)

    # ---- top-k selection (iterative argmax; K and E are small & static) ----
    E = probs.shape[-1]
    idx = lax.broadcasted_iota(jnp.int32, probs.shape, 1)
    remaining = probs
    combine = jnp.zeros_like(probs)
    sel_total = jnp.zeros_like(probs)
    for _ in range(top_k):
        m = jnp.max(remaining, axis=-1, keepdims=True)
        is_max = remaining == m
        amax = jnp.min(jnp.where(is_max, idx, E), axis=-1, keepdims=True)
        sel = idx == amax                              # lowest-index argmax
        combine = combine + jnp.where(sel, probs, 0.0)
        sel_total = sel_total + sel.astype(jnp.float32)
        remaining = jnp.where(sel, -1.0, remaining)    # probs >= 0, so excluded
    sel_ref[...] = sel_total

    # ---- dense expert evaluation + weighted combine (f32 accumulator) ----
    be = be_ref[...]                                                 # (E, H)
    acc = jnp.zeros(out_ref.shape, jnp.float32)
    for ei in range(E):                                              # static unroll
        y = jnp.dot(x, we_ref[ei], preferred_element_type=jnp.float32)
        y = y + be[ei:ei + 1, :]
        acc = acc + combine[:, ei:ei + 1] * y
    # TODO(synk): nn.Dropout(p=0.12) is identity in eval mode; training dropout
    # and the torch isfinite/raise host control flow are not reproduced.
    out_ref[...] = acc.astype(out_ref.dtype)


# ----------------------------------------------------------------------------
# Parameter construction (matches the torch init) + one-time kernel prep
# ----------------------------------------------------------------------------
def init_params(key, input_dim, hidden_dim, num_experts):
    ks = jax.random.split(key, num_experts + 1)
    orth = jax.nn.initializers.orthogonal(scale=math.sqrt(2.0))
    We = jnp.stack([orth(ks[i], (hidden_dim, input_dim), jnp.float32)
                    for i in range(num_experts)])          # torch layout (E,H,D)
    be = jnp.zeros((num_experts, hidden_dim), jnp.float32)
    Wg = jax.random.normal(ks[-1], (num_experts, input_dim), jnp.float32) * 0.01
    bg = jnp.zeros((num_experts,), jnp.float32)
    return {"We": We, "be": be, "Wg": Wg, "bg": bg}


def prepare_params(params):
    """Pre-transpose ONCE to (in, out) layout and cast matmul operands to bf16
    (accumulation stays f32 on the MXU inside the kernel)."""
    return {
        "wg": jnp.transpose(params["Wg"]).astype(jnp.bfloat16),             # (D, E)
        "bg": params["bg"].reshape(1, -1).astype(jnp.float32),              # (1, E)
        "we": jnp.transpose(params["We"], (0, 2, 1)).astype(jnp.bfloat16),  # (E, D, H)
        "be": params["be"].astype(jnp.float32),                             # (E, H)
    }


# ----------------------------------------------------------------------------
# Forward pass
# ----------------------------------------------------------------------------
def moe_forward(prep, x, *, top_k=2, entropy_weight=0.05,
                max_usage_ratio=0.4, epsilon=1e-8, token_tile=128):
    B, S, D = x.shape
    N = B * S
    E = prep["wg"].shape[1]
    H = prep["we"].shape[2]

    xf = x.reshape(N, D).astype(jnp.bfloat16)
    TM = token_tile
    Npad = pl.cdiv(N, TM) * TM
    if Npad != N:
        xf = jnp.pad(xf, ((0, Npad - N), (0, 0)))

    kernel = functools.partial(_moe_kernel, top_k=top_k, epsilon=epsilon)
    out, ent, sel = pl.pallas_call(
        kernel,
        out_shape=(
            jax.ShapeDtypeStruct((Npad, H), jnp.float32),
            jax.ShapeDtypeStruct((Npad, 1), jnp.float32),
            jax.ShapeDtypeStruct((Npad, E), jnp.float32),
        ),
        grid=(Npad // TM,),
        in_specs=[
            pl.BlockSpec((TM, D), lambda i: (i, 0)),      # token tile (streamed)
            pl.BlockSpec((D, E), lambda i: (0, 0)),       # gate weight (resident)
            pl.BlockSpec((1, E), lambda i: (0, 0)),       # gate bias
            pl.BlockSpec((E, D, H), lambda i: (0, 0, 0)),  # stacked expert weights
            pl.BlockSpec((E, H), lambda i: (0, 0)),       # expert biases
        ],
        out_specs=(
            pl.BlockSpec((TM, H), lambda i: (i, 0)),
            pl.BlockSpec((TM, 1), lambda i: (i, 0)),
            pl.BlockSpec((TM, E), lambda i: (i, 0)),
        ),
        compiler_params=pltpu.CompilerParams(
            dimension_semantics=("parallel",)),
    )(xf, prep["wg"], prep["bg"], prep["we"], prep["be"])

    out = out[:N].reshape(B, S, H)
    ent = ent[:N, 0]
    sel = sel[:N]

    entropy_loss = entropy_weight * jnp.mean(ent)
    # TODO(synk): the torch module accumulates expert_usage_counter statefully
    # across calls and supports dynamic_k via a host-side .item(); here the
    # counter is per-call and K is static.
    usage_counter = jnp.sum(sel, axis=0)                   # (E,)
    usage_ratios = usage_counter / (N + epsilon)
    overuse_penalty = jnp.sum(jax.nn.relu(usage_ratios - max_usage_ratio))
    return out, entropy_loss + overuse_penalty


# ----------------------------------------------------------------------------
# Pure-JAX reference (same bf16-quantized operands, f32 accumulation)
# ----------------------------------------------------------------------------
def reference_moe(prep, x, *, top_k=2, entropy_weight=0.05,
                  max_usage_ratio=0.4, epsilon=1e-8):
    B, S, D = x.shape
    N = B * S
    xf = x.reshape(N, D).astype(jnp.bfloat16)
    wg, bg, we, be = prep["wg"], prep["bg"], prep["we"], prep["be"]
    E = wg.shape[1]

    logits = jnp.dot(xf, wg, preferred_element_type=jnp.float32) + bg
    probs = jax.nn.softmax(logits, axis=-1)
    entropy = jnp.mean(-jnp.sum(probs * jnp.log(probs + epsilon), axis=-1))

    topv, topi = lax.top_k(probs, top_k)
    onehot = jax.nn.one_hot(topi, E, dtype=jnp.float32)     # (N, K, E)
    combine = jnp.sum(onehot * topv[..., None], axis=1)     # (N, E)

    y = jnp.einsum("nd,edh->neh", xf, we,
                   preferred_element_type=jnp.float32) + be[None]
    out = jnp.sum(combine[..., None] * y, axis=1).reshape(B, S, -1)

    usage_counter = jnp.sum(onehot, axis=(0, 1))
    usage_ratios = usage_counter / (N + epsilon)
    overuse = jnp.sum(jax.nn.relu(usage_ratios - max_usage_ratio))
    return out, entropy_weight * entropy + overuse


# ----------------------------------------------------------------------------
if __name__ == "__main__":
    input_dim, hidden_dim, num_experts, top_k = 128, 128, 8, 2
    B, S = 2, 128

    key = jax.random.PRNGKey(0)
    pkey, xkey = jax.random.split(key)
    params = init_params(pkey, input_dim, hidden_dim, num_experts)
    prep = prepare_params(params)
    x = jax.random.normal(xkey, (B, S, input_dim), dtype=jnp.float32)

    fwd = jax.jit(functools.partial(moe_forward, top_k=top_k))
    out, aux_loss = fwd(prep, x)
    out, aux_loss = jax.block_until_ready((out, aux_loss))

    ref_out, ref_aux = reference_moe(prep, x, top_k=top_k)
    ref_out, ref_aux = jax.block_until_ready((ref_out, ref_aux))

    assert out.shape == (B, S, hidden_dim), out.shape
    assert bool(jnp.all(jnp.isfinite(out))) and bool(jnp.isfinite(aux_loss))
    max_err = float(jnp.max(jnp.abs(out - ref_out)))
    assert max_err < 2e-2, max_err
    assert abs(float(aux_loss) - float(ref_aux)) < 1e-3, (float(aux_loss),
                                                          float(ref_aux))
    print("KERNEL_OK")
</pallas_src>

<mosaic_0001>
module attributes {stable_mosaic.version = 11 : i64} {
  func.func @_moe_kernel(%arg0: i32, %arg1: memref<128x128xbf16, #tpu.memory_space<vmem>>, %arg2: memref<128x8xbf16, #tpu.memory_space<vmem>>, %arg3: memref<1x8xf32, #tpu.memory_space<vmem>>, %arg4: memref<8x128x128xbf16, #tpu.memory_space<vmem>>, %arg5: memref<8x128xf32, #tpu.memory_space<vmem>>, %arg6: memref<128x128xf32, #tpu.memory_space<vmem>>, %arg7: memref<128x1xf32, #tpu.memory_space<vmem>>, %arg8: memref<128x8xf32, #tpu.memory_space<vmem>>) attributes {dimension_semantics = [#tpu.dimension_semantics<parallel>], iteration_bounds = array<i64: 2>, scalar_prefetch = 0 : i64, scratch_operands = 0 : i64, tpu.core_type = #tpu.core_type<tc>, window_params = [{transform_indices = @transform_0, window_bounds = array<i64: 128, 128>}, {pipeline_mode = #tpu.pipeline_mode<synchronous>, transform_indices = @transform_1, window_bounds = array<i64: 128, 8>}, {pipeline_mode = #tpu.pipeline_mode<synchronous>, transform_indices = @transform_2, window_bounds = array<i64: 1, 8>}, {pipeline_mode = #tpu.pipeline_mode<synchronous>, transform_indices = @transform_3, window_bounds = array<i64: 8, 128, 128>}, {pipeline_mode = #tpu.pipeline_mode<synchronous>, transform_indices = @transform_4, window_bounds = array<i64: 8, 128>}, {transform_indices = @transform_5, window_bounds = array<i64: 128, 128>}, {transform_indices = @transform_6, window_bounds = array<i64: 128, 1>}, {transform_indices = @transform_7, window_bounds = array<i64: 128, 8>}]} {
    %c0 = arith.constant 0 : index
    %c0_0 = arith.constant 0 : index
    %0 = vector.load %arg1[%c0, %c0_0] : memref<128x128xbf16, #tpu.memory_space<vmem>>, vector<128x128xbf16>
    %c0_1 = arith.constant 0 : index
    %c0_2 = arith.constant 0 : index
    %1 = vector.load %arg2[%c0_1, %c0_2] : memref<128x8xbf16, #tpu.memory_space<vmem>>, vector<128x8xbf16>
    %cst = arith.constant dense<0.000000e+00> : vector<128x8xf32>
    %2 = tpu.matmul %0, %1, %cst {dimension_numbers = #tpu.dot_dimension_numbers<[1], [0], [0], [1], [0, 0, 1, 1], [], []>} : vector<128x128xbf16>, vector<128x8xbf16>, vector<128x8xf32> -> vector<128x8xf32>
    %c0_3 = arith.constant 0 : index
    %c0_4 = arith.constant 0 : index
    %3 = vector.load %arg3[%c0_3, %c0_4] : memref<1x8xf32, #tpu.memory_space<vmem>>, vector<1x8xf32>
    %4 = vector.broadcast %3 : vector<1x8xf32> to vector<128x8xf32>
    %5 = arith.addf %2, %4 : vector<128x8xf32>
    %cst_5 = arith.constant dense<0xFF800000> : vector<128xf32>
    %6 = vector.multi_reduction <maximumf>, %5, %cst_5 [1] : vector<128x8xf32> to vector<128xf32>
    %7 = vector.shape_cast %6 : vector<128xf32> to vector<128x1xf32>
    %8 = vector.broadcast %7 : vector<128x1xf32> to vector<128x8xf32>
    %9 = arith.subf %5, %8 : vector<128x8xf32>
    %10 = math.exp %9 : vector<128x8xf32>
    %cst_6 = arith.constant dense<0.000000e+00> : vector<128xf32>
    %11 = vector.multi_reduction <add>, %10, %cst_6 [1] : vector<128x8xf32> to vector<128xf32>
    %12 = vector.shape_cast %11 : vector<128xf32> to vector<128x1xf32>
    %13 = vector.broadcast %12 : vector<128x1xf32> to vector<128x8xf32>
    %14 = arith.divf %10, %13 : vector<128x8xf32>
    %cst_7 = arith.constant 9.99999993E-9 : f32
    %15 = vector.broadcast %cst_7 : f32 to vector<128x8xf32>
    %16 = arith.addf %14, %15 : vector<128x8xf32>
    %17 = math.log %16 : vector<128x8xf32>
    %18 = arith.mulf %14, %17 : vector<128x8xf32>
    %cst_8 = arith.constant dense<0.000000e+00> : vector<128xf32>
    %19 = vector.multi_reduction <add>, %18, %cst_8 [1] : vector<128x8xf32> to vector<128xf32>
    %20 = vector.shape_cast %19 : vector<128xf32> to vector<128x1xf32>
    %cst_9 = arith.constant 0.000000e+00 : f32
    %21 = vector.broadcast %cst_9 : f32 to vector<128x1xf32>
    %22 = arith.subf %21, %20 : vector<128x1xf32>
    %c0_10 = arith.constant 0 : index
    %c0_11 = arith.constant 0 : index
    %23 = vector.load %arg7[%c0_10, %c0_11] : memref<128x1xf32, #tpu.memory_space<vmem>>, vector<128x1xf32>
    tpu.vector_store %arg7[%c0_10, %c0_11], %22 {strides = array<i32>} : memref<128x1xf32, #tpu.memory_space<vmem>>, vector<128x1xf32>,
    %24 = tpu.iota {dimensions = array<i32: 1>} : vector<128x8xi32>
    %cst_12 = arith.constant 0.000000e+00 : f32
    %25 = vector.broadcast %cst_12 : f32 to vector<128x8xf32>
    %cst_13 = arith.constant 0.000000e+00 : f32
    %26 = vector.broadcast %cst_13 : f32 to vector<128x8xf32>
    %cst_14 = arith.constant dense<0xFF800000> : vector<128xf32>
    %27 = vector.multi_reduction <maximumf>, %14, %cst_14 [1] : vector<128x8xf32> to vector<128xf32>
    %28 = vector.shape_cast %27 : vector<128xf32> to vector<128x1xf32>
    %29 = vector.broadcast %28 : vector<128x1xf32> to vector<128x8xf32>
    %30 = arith.cmpf oeq, %14, %29 : vector<128x8xf32>
    %c8_i32 = arith.constant 8 : i32
    %31 = vector.broadcast %c8_i32 : i32 to vector<128x8xi32>
    %32 = arith.select %30, %24, %31 : vector<128x8xi1>, vector<128x8xi32>
    %cst_15 = arith.constant dense<2147483647> : vector<128xi32>
    %33 = vector.multi_reduction <minsi>, %32, %cst_15 [1] : vector<128x8xi32> to vector<128xi32>
    %34 = vector.shape_cast %33 : vector<128xi32> to vector<128x1xi32>
    %35 = vector.broadcast %34 : vector<128x1xi32> to vector<128x8xi32>
    %36 = arith.cmpi eq, %24, %35 : vector<128x8xi32>
    %cst_16 = arith.constant 0.000000e+00 : f32
    %37 = vector.broadcast %cst_16 : f32 to vector<128x8xf32>
    %38 = arith.select %36, %14, %37 : vector<128x8xi1>, vector<128x8xf32>
    %39 = arith.addf %25, %38 : vector<128x8xf32>
    %40 = arith.extui %36 : vector<128x8xi1> to vector<128x8xi32>
    %41 = arith.sitofp %40 : vector<128x8xi32> to vector<128x8xf32>
    %42 = arith.addf %26, %41 : vector<128x8xf32>
    %cst_17 = arith.constant -1.000000e+00 : f32
    %43 = vector.broadcast %cst_17 : f32 to vector<128x8xf32>
    %44 = arith.select %36, %43, %14 : vector<128x8xi1>, vector<128x8xf32>
    %cst_18 = arith.constant dense<0xFF800000> : vector<128xf32>
    %45 = vector.multi_reduction <maximumf>, %44, %cst_18 [1] : vector<128x8xf32> to vector<128xf32>
    %46 = vector.shape_cast %45 : vector<128xf32> to vector<128x1xf32>
    %47 = vector.broadcast %46 : vector<128x1xf32> to vector<128x8xf32>
    %48 = arith.cmpf oeq, %44, %47 : vector<128x8xf32>
    %c8_i32_19 = arith.constant 8 : i32
    %49 = vector.broadcast %c8_i32_19 : i32 to vector<128x8xi32>
    %50 = arith.select %48, %24, %49 : vector<128x8xi1>, vector<128x8xi32>
    %cst_20 = arith.constant dense<2147483647> : vector<128xi32>
    %51 = vector.multi_reduction <minsi>, %50, %cst_20 [1] : vector<128x8xi32> to vector<128xi32>
    %52 = vector.shape_cast %51 : vector<128xi32> to vector<128x1xi32>
    %53 = vector.broadcast %52 : vector<128x1xi32> to vector<128x8xi32>
    %54 = arith.cmpi eq, %24, %53 : vector<128x8xi32>
    %cst_21 = arith.constant 0.000000e+00 : f32
    %55 = vector.broadcast %cst_21 : f32 to vector<128x8xf32>
    %56 = arith.select %54, %14, %55 : vector<128x8xi1>, vector<128x8xf32>
    %57 = arith.addf %39, %56 : vector<128x8xf32>
    %58 = arith.extui %54 : vector<128x8xi1> to vector<128x8xi32>
    %59 = arith.sitofp %58 : vector<128x8xi32> to vector<128x8xf32>
    %60 = arith.addf %42, %59 : vector<128x8xf32>
    %c0_22 = arith.constant 0 : index
    %c0_23 = arith.constant 0 : index
    %61 = vector.load %arg8[%c0_22, %c0_23] : memref<128x8xf32, #tpu.memory_space<vmem>>, vector<128x8xf32>
    tpu.vector_store %arg8[%c0_22, %c0_23], %60 {strides = array<i32>} : memref<128x8xf32, #tpu.memory_space<vmem>>, vector<128x8xf32>,
    %c0_24 = arith.constant 0 : index
    %c0_25 = arith.constant 0 : index
    %62 = vector.load %arg5[%c0_24, %c0_25] : memref<8x128xf32, #tpu.memory_space<vmem>>, vector<8x128xf32>
    %cst_26 = arith.constant 0.000000e+00 : f32
    %63 = vector.broadcast %cst_26 : f32 to vector<128x128xf32>
    %c0_27 = arith.constant 0 : index
    %c0_28 = arith.constant 0 : index
    %c0_29 = arith.constant 0 : index
    %64 = vector.load %arg4[%c0_27, %c0_28, %c0_29] : memref<8x128x128xbf16, #tpu.memory_space<vmem>>, vector<1x128x128xbf16>
    %65 = vector.shape_cast %64 : vector<1x128x128xbf16> to vector<128x128xbf16>
    %cst_30 = arith.constant dense<0.000000e+00> : vector<128x128xf32>
    %66 = tpu.matmul %0, %65, %cst_30 {dimension_numbers = #tpu.dot_dimension_numbers<[1], [0], [0], [1], [0, 0, 1, 1], [], []>} : vector<128x128xbf16>, vector<128x128xbf16>, vector<128x128xf32> -> vector<128x128xf32>
    %67 = vector.extract_strided_slice %62 {offsets = [0, 0], sizes = [1, 128], strides = [1, 1]} : vector<8x128xf32> to vector<1x128xf32>
    %68 = vector.broadcast %67 : vector<1x128xf32> to vector<128x128xf32>
    %69 = arith.addf %66, %68 : vector<128x128xf32>
    %70 = vector.extract_strided_slice %57 {offsets = [0, 0], sizes = [128, 1], strides = [1, 1]} : vector<128x8xf32> to vector<128x1xf32>
    %71 = vector.broadcast %70 : vector<128x1xf32> to vector<128x128xf32>
    %72 = arith.mulf %71, %69 : vector<128x128xf32>
    %73 = arith.addf %63, %72 : vector<128x128xf32>
    %c1 = arith.constant 1 : index
    %c0_31 = arith.constant 0 : index
    %c0_32 = arith.constant 0 : index
    %74 = vector.load %arg4[%c1, %c0_31, %c0_32] : memref<8x128x128xbf16, #tpu.memory_space<vmem>>, vector<1x128x128xbf16>
    %75 = vector.shape_cast %74 : vector<1x128x128xbf16> to vector<128x128xbf16>
    %cst_33 = arith.constant dense<0.000000e+00> : vector<128x128xf32>
    %76 = tpu.matmul %0, %75, %cst_33 {dimension_numbers = #tpu.dot_dimension_numbers<[1], [0], [0], [1], [0, 0, 1, 1], [], []>} : vector<128x128xbf16>, vector<128x128xbf16>, vector<128x128xf32> -> vector<128x128xf32>
    %77 = vector.extract_strided_slice %62 {offsets = [1, 0], sizes = [1, 128], strides = [1, 1]} : vector<8x128xf32> to vector<1x128xf32>
    %78 = vector.broadcast %77 : vector<1x128xf32> to vector<128x128xf32>
    %79 = arith.addf %76, %78 : vector<128x128xf32>
    %80 = vector.extract_strided_slice %57 {offsets = [0, 1], sizes = [128, 1], strides = [1, 1]} : vector<128x8xf32> to vector<128x1xf32>
    %81 = vector.broadcast %80 : vector<128x1xf32> to vector<128x128xf32>
    %82 = arith.mulf %81, %79 : vector<128x128xf32>
    %83 = arith.addf %73, %82 : vector<128x128xf32>
    %c2 = arith.constant 2 : index
    %c0_34 = arith.constant 0 : index
    %c0_35 = arith.constant 0 : index
    %84 = vector.load %arg4[%c2, %c0_34, %c0_35] : memref<8x128x128xbf16, #tpu.memory_space<vmem>>, vector<1x128x128xbf16>
    %85 = vector.shape_cast %84 : vector<1x128x128xbf16> to vector<128x128xbf16>
    %cst_36 = arith.constant dense<0.000000e+00> : vector<128x128xf32>
    %86 = tpu.matmul %0, %85, %cst_36 {dimension_numbers = #tpu.dot_dimension_numbers<[1], [0], [0], [1], [0, 0, 1, 1], [], []>} : vector<128x128xbf16>, vector<128x128xbf16>, vector<128x128xf32> -> vector<128x128xf32>
    %87 = vector.extract_strided_slice %62 {offsets = [2, 0], sizes = [1, 128], strides = [1, 1]} : vector<8x128xf32> to vector<1x128xf32>
    %88 = vector.broadcast %87 : vector<1x128xf32> to vector<128x128xf32>
    %89 = arith.addf %86, %88 : vector<128x128xf32>
    %90 = vector.extract_strided_slice %57 {offsets = [0, 2], sizes = [128, 1], strides = [1, 1]} : vector<128x8xf32> to vector<128x1xf32>
    %91 = vector.broadcast %90 : vector<128x1xf32> to vector<128x128xf32>
    %92 = arith.mulf %91, %89 : vector<128x128xf32>
    %93 = arith.addf %83, %92 : vector<128x128xf32>
    %c3 = arith.constant 3 : index
    %c0_37 = arith.constant 0 : index
    %c0_38 = arith.constant 0 : index
    %94 = vector.load %arg4[%c3, %c0_37, %c0_38] : memref<8x128x128xbf16, #tpu.memory_space<vmem>>, vector<1x128x128xbf16>
    %95 = vector.shape_cast %94 : vector<1x128x128xbf16> to vector<128x128xbf16>
    %cst_39 = arith.constant dense<0.000000e+00> : vector<128x128xf32>
    %96 = tpu.matmul %0, %95, %cst_39 {dimension_numbers = #tpu.dot_dimension_numbers<[1], [0], [0], [1], [0, 0, 1, 1], [], []>} : vector<128x128xbf16>, vector<128x128xbf16>, vector<128x128xf32> -> vector<128x128xf32>
    %97 = vector.extract_strided_slice %62 {offsets = [3, 0], sizes = [1, 128], strides = [1, 1]} : vector<8x128xf32> to vector<1x128xf32>
    %98 = vector.broadcast %97 : vector<1x128xf32> to vector<128x128xf32>
    %99 = arith.addf %96, %98 : vector<128x128xf32>
    %100 = vector.extract_strided_slice %57 {offsets = [0, 3], sizes = [128, 1], strides = [1, 1]} : vector<128x8xf32> to vector<128x1xf32>
    %101 = vector.broadcast %100 : vector<128x1xf32> to vector<128x128xf32>
    %102 = arith.mulf %101, %99 : vector<128x128xf32>
    %103 = arith.addf %93, %102 : vector<128x128xf32>
    %c4 = arith.constant 4 : index
    %c0_40 = arith.constant 0 : index
    %c0_41 = arith.constant 0 : index
    %104 = vector.load %arg4[%c4, %c0_40, %c0_41] : memref<8x128x128xbf16, #tpu.memory_space<vmem>>, vector<1x128x128xbf16>
    %105 = vector.shape_cast %104 : vector<1x128x128xbf16> to vector<128x128xbf16>
    %cst_42 = arith.constant dense<0.000000e+00> : vector<128x128xf32>
    %106 = tpu.matmul %0, %105, %cst_42 {dimension_numbers = #tpu.dot_dimension_numbers<[1], [0], [0], [1], [0, 0, 1, 1], [], []>} : vector<128x128xbf16>, vector<128x128xbf16>, vector<128x128xf32> -> vector<128x128xf32>
    %107 = vector.extract_strided_slice %62 {offsets = [4, 0], sizes = [1, 128], strides = [1, 1]} : vector<8x128xf32> to vector<1x128xf32>
    %108 = vector.broadcast %107 : vector<1x128xf32> to vector<128x128xf32>
    %109 = arith.addf %106, %108 : vector<128x128xf32>
    %110 = vector.extract_strided_slice %57 {offsets = [0, 4], sizes = [128, 1], strides = [1, 1]} : vector<128x8xf32> to vector<128x1xf32>
    %111 = vector.broadcast %110 : vector<128x1xf32> to vector<128x128xf32>
    %112 = arith.mulf %111, %109 : vector<128x128xf32>
    %113 = arith.addf %103, %112 : vector<128x128xf32>
    %c5 = arith.constant 5 : index
    %c0_43 = arith.constant 0 : index
    %c0_44 = arith.constant 0 : index
    %114 = vector.load %arg4[%c5, %c0_43, %c0_44] : memref<8x128x128xbf16, #tpu.memory_space<vmem>>, vector<1x128x128xbf16>
    %115 = vector.shape_cast %114 : vector<1x128x128xbf16> to vector<128x128xbf16>
    %cst_45 = arith.constant dense<0.000000e+00> : vector<128x128xf32>
    %116 = tpu.matmul %0, %115, %cst_45 {dimension_numbers = #tpu.dot_dimension_numbers<[1], [0], [0], [1], [0, 0, 1, 1], [], []>} : vector<128x128xbf16>, vector<128x128xbf16>, vector<128x128xf32> -> vector<128x128xf32>
    %117 = vector.extract_strided_slice %62 {offsets = [5, 0], sizes = [1, 128], strides = [1, 1]} : vector<8x128xf32> to vector<1x128xf32>
    %118 = vector.broadcast %117 : vector<1x128xf32> to vector<128x128xf32>
    %119 = arith.addf %116, %118 : vector<128x128xf32>
    %120 = vector.extract_strided_slice %57 {offsets = [0, 5], sizes = [128, 1], strides = [1, 1]} : vector<128x8xf32> to vector<128x1xf32>
    %121 = vector.broadcast %120 : vector<128x1xf32> to vector<128x128xf32>
    %122 = arith.mulf %121, %119 : vector<128x128xf32>
    %123 = arith.addf %113, %122 : vector<128x128xf32>
    %c6 = arith.constant 6 : index
    %c0_46 = arith.constant 0 : index
    %c0_47 = arith.constant 0 : index
    %124 = vector.load %arg4[%c6, %c0_46, %c0_47] : memref<8x128x128xbf16, #tpu.memory_space<vmem>>, vector<1x128x128xbf16>
    %125 = vector.shape_cast %124 : vector<1x128x128xbf16> to vector<128x128xbf16>
    %cst_48 = arith.constant dense<0.000000e+00> : vector<128x128xf32>
    %126 = tpu.matmul %0, %125, %cst_48 {dimension_numbers = #tpu.dot_dimension_numbers<[1], [0], [0], [1], [0, 0, 1, 1], [], []>} : vector<128x128xbf16>, vector<128x128xbf16>, vector<128x128xf32> -> vector<128x128xf32>
    %127 = vector.extract_strided_slice %62 {offsets = [6, 0], sizes = [1, 128], strides = [1, 1]} : vector<8x128xf32> to vector<1x128xf32>
    %128 = vector.broadcast %127 : vector<1x128xf32> to vector<128x128xf32>
    %129 = arith.addf %126, %128 : vector<128x128xf32>
    %130 = vector.extract_strided_slice %57 {offsets = [0, 6], sizes = [128, 1], strides = [1, 1]} : vector<128x8xf32> to vector<128x1xf32>
    %131 = vector.broadcast %130 : vector<128x1xf32> to vector<128x128xf32>
    %132 = arith.mulf %131, %129 : vector<128x128xf32>
    %133 = arith.addf %123, %132 : vector<128x128xf32>
    %c7 = arith.constant 7 : index
    %c0_49 = arith.constant 0 : index
    %c0_50 = arith.constant 0 : index
    %134 = vector.load %arg4[%c7, %c0_49, %c0_50] : memref<8x128x128xbf16, #tpu.memory_space<vmem>>, vector<1x128x128xbf16>
    %135 = vector.shape_cast %134 : vector<1x128x128xbf16> to vector<128x128xbf16>
    %cst_51 = arith.constant dense<0.000000e+00> : vector<128x128xf32>
    %136 = tpu.matmul %0, %135, %cst_51 {dimension_numbers = #tpu.dot_dimension_numbers<[1], [0], [0], [1], [0, 0, 1, 1], [], []>} : vector<128x128xbf16>, vector<128x128xbf16>, vector<128x128xf32> -> vector<128x128xf32>
    %137 = vector.extract_strided_slice %62 {offsets = [7, 0], sizes = [1, 128], strides = [1, 1]} : vector<8x128xf32> to vector<1x128xf32>
    %138 = vector.broadcast %137 : vector<1x128xf32> to vector<128x128xf32>
    %139 = arith.addf %136, %138 : vector<128x128xf32>
    %140 = vector.extract_strided_slice %57 {offsets = [0, 7], sizes = [128, 1], strides = [1, 1]} : vector<128x8xf32> to vector<128x1xf32>
    %141 = vector.broadcast %140 : vector<128x1xf32> to vector<128x128xf32>
    %142 = arith.mulf %141, %139 : vector<128x128xf32>
    %143 = arith.addf %133, %142 : vector<128x128xf32>
    %c0_52 = arith.constant 0 : index
    %c0_53 = arith.constant 0 : index
    %144 = vector.load %arg6[%c0_52, %c0_53] : memref<128x128xf32, #tpu.memory_space<vmem>>, vector<128x128xf32>
    tpu.vector_store %arg6[%c0_52, %c0_53], %143 {strides = array<i32>} : memref<128x128xf32, #tpu.memory_space<vmem>>, vector<128x128xf32>,
    return
  }
  func.func @transform_0(%arg0: i32) -> (i32, i32) {
    %c0_i32 = arith.constant 0 : i32
    %c0_i32_0 = arith.constant 0 : i32
    return %arg0, %c0_i32 : i32, i32
  }
  func.func @transform_1(%arg0: i32) -> (i32, i32) {
    %c0_i32 = arith.constant 0 : i32
    %c0_i32_0 = arith.constant 0 : i32
    %c0_i32_1 = arith.constant 0 : i32
    return %c0_i32, %c0_i32_0 : i32, i32
  }
  func.func @transform_2(%arg0: i32) -> (i32, i32) {
    %c0_i32 = arith.constant 0 : i32
    %c0_i32_0 = arith.constant 0 : i32
    %c0_i32_1 = arith.constant 0 : i32
    return %c0_i32, %c0_i32_0 : i32, i32
  }
  func.func @transform_3(%arg0: i32) -> (i32, i32, i32) {
    %c0_i32 = arith.constant 0 : i32
    %c0_i32_0 = arith.constant 0 : i32
    %c0_i32_1 = arith.constant 0 : i32
    %c0_i32_2 = arith.constant 0 : i32
    return %c0_i32, %c0_i32_0, %c0_i32_1 : i32, i32, i32
  }
  func.func @transform_4(%arg0: i32) -> (i32, i32) {
    %c0_i32 = arith.constant 0 : i32
    %c0_i32_0 = arith.constant 0 : i32
    %c0_i32_1 = arith.constant 0 : i32
    return %c0_i32, %c0_i32_0 : i32, i32
  }
  func.func @transform_5(%arg0: i32) -> (i32, i32) {
    %c0_i32 = arith.constant 0 : i32
    %c0_i32_0 = arith.constant 0 : i32
    return %arg0, %c0_i32 : i32, i32
  }
  func.func @transform_6(%arg0: i32) -> (i32, i32) {
    %c0_i32 = arith.constant 0 : i32
    %c0_i32_0 = arith.constant 0 : i32
    return %arg0, %c0_i32 : i32, i32
  }
  func.func @transform_7(%arg0: i32) -> (i32, i32) {
    %c0_i32 = arith.constant 0 : i32
    %c0_i32_0 = arith.constant 0 : i32
    return %arg0, %c0_i32 : i32, i32
  }
}

</mosaic_0001>

<llo_original>
// kernel: moe_forward.1
$region0: #{moe_forward.1}
  #allocation0 [shape = 'u32[]', space=smem, size = 0x4, offset = 0x4, fixed_abs, tag = 'smem constant byte address 0x4 - core index']
  #allocation1 [shape = 'u32[144,128]{1,0:T(1,128)}', space=vmem, size = 0x12000, scoped, tag = 'internal scratch']
  %s0 = inlined_call_operand.vmem [shape: bf16[256,128], index: 0, kind: input, shape index: {}]
  %s1 = inlined_call_operand.vmem [shape: bf16[128,8], index: 1, kind: input, shape index: {}]
  %s2 = inlined_call_operand.vmem [shape: f32[1,8], index: 2, kind: input, shape index: {}]
  %s3 = inlined_call_operand.hbm [shape: bf16[8,128,128], index: 3, kind: input, shape index: {}]
  %s4 = inlined_call_operand.vmem [shape: f32[8,128], index: 4, kind: input, shape index: {}]
  %s5 = inlined_call_operand.hbm [shape: f32[256,128], index: 5, kind: output, shape index: {0}]
  %s6 = inlined_call_operand.vmem [shape: f32[256,1], index: 6, kind: output, shape index: {1}]
  %s7 = inlined_call_operand.vmem [shape: f32[256,8], index: 7, kind: output, shape index: {2}]
  %8 = xla_tuple %s5, %s6, %s7
  %s9 = sld [smem:[#allocation0]]
  $region73: #{moe_forward.1} parent=0
    _
  %s11 = ssub.s32 1, %s9
  %s12 = scalar_select 0, %s11, %s9
  $region1: #{moe_forward.1} parent=0
    #allocation2 [shape = 'u8[262144]{0}', space=vmem, size = 0x40000, scoped, tag = 'input window, operand 3, single buffered']
    #allocation3 [shape = 's32[2]{0}', space=sflag, size = 0x8, scoped, tag = 'scoped memory for moe_forward.1']
    #allocation4 [shape = 's32[2]{0}', space=sflag, size = 0x8, scoped, tag = 'scoped memory for moe_forward.1']
    #allocation5 [shape = 'u8[131072]{0}', space=vmem, size = 0x20000, scoped, tag = 'output window, operand 0']
    %13 = vsyncpa [#allocation3], 0
    %14 = vsyncpa [#allocation4], 0
    %s15 = scalar_lea.sflag [#allocation4], 1
    %16 = vsyncpa %s15, 0
    loop: start=0, step=1, limit=4
    $region2: #{moe_forward.1} parent=1 // loop_pre_header
      _
    $region3: #{moe_forward.1} parent=1 // loop_header
      %s18 = sphi 0, %s22
      %p19 = scmp.ge.s32.totalorder %s18, 4
      %s28 = sphi 0, %s30
      %s31 = sphi 0, %s28
      %s32 = sphi 0, %s31
      %s48 = sphi 0, %s32
      %s52 = sphi 0, %s52
      %s54 = sphi 0, %s52
      %s55 = sphi 0, %s54
      %s69 = sphi 0, %s55
      %s73 = sphi 0, %s73
      %s75 = sphi 0, %s73
      %s76 = sphi 0, %s75
      %s90 = sphi 0, %s76
      %s94 = sphi 0, %s94
      %s96 = sphi 0, %s94
      %s97 = sphi 0, %s96
      %s111 = sphi 0, %s97
      %s115 = sphi 0, %s115
      %s117 = sphi 0, %s115
      %s118 = sphi 0, %s117
      %s132 = sphi 0, %s118
      %s138 = sphi 0, %s140
      %s141 = sphi 0, %s138
      %s142 = sphi 0, %s141
      %s158 = sphi 0, %s142
      %s164 = sphi 0, %s166
      %s167 = sphi 0, %s164
      %s168 = sphi 0, %s167
      %s184 = sphi 0, %s168
      %s190 = sphi 0, %s192
      %s193 = sphi 0, %s190
      %s194 = sphi 0, %s193
      %s210 = sphi 0, %s194
    $region4: #{moe_forward.1} parent=1 // loop_header_branch
      %21 = sbr.rel (%p19) target = $region8
    $region5: #{moe_forward.1} parent=1 // loop_body
      %s23 = ssub.s32 %s18, 1
      %s24 = ssub.s32 %s18, 2
      %s25 = sadd.s32 %s18, 1
      %s26 = ssub.s32 %s18, %s25
      %p27 = scmp.eq.s32.totalorder %s26, 0
      %s29 = sadd.s32 %s28, 1
      %s30 = scalar_select %p27, %s28, %s29
      %p33 = pneg %p27
      %p34 = scmp.eq.s32.totalorder %s18, 1
      %p35 = por %p33, %p34
      %p36 = scmp.ne.s32.totalorder %s28, %s31
      %p37 = scmp.eq.s32.totalorder %s18, 0
      %p38 = por %p36, %p37
      %p39 = scmp.ne.s32.totalorder %s28, %s31
      %p40 = scmp.eq.s32.totalorder %s23, 1
      %p41 = por %p39, %p40
      %p42 = scmp.ne.s32.totalorder %s31, %s32
      %p43 = scmp.eq.s32.totalorder %s23, 0
      %p44 = por %p42, %p43
      %p45 = scmp.ne.s32.totalorder %s31, %s32
      %p46 = scmp.eq.s32.totalorder %s24, 1
      %p47 = por %p45, %p46
      %p49 = scmp.ne.s32.totalorder %s32, %s48
      %p50 = scmp.eq.s32.totalorder %s24, 0
      %p51 = por %p49, %p50
      %s53 = sadd.s32 %s52, 1
      %p56 = scmp.eq.s32.totalorder %s18, 1
      %p57 = scmp.ne.s32.totalorder %s52, %s54
      %p58 = scmp.eq.s32.totalorder %s18, 0
      %p59 = por %p57, %p58
      %p60 = scmp.ne.s32.totalorder %s52, %s54
      %p61 = scmp.eq.s32.totalorder %s23, 1
      %p62 = por %p60, %p61
      %p63 = scmp.ne.s32.totalorder %s54, %s55
      %p64 = scmp.eq.s32.totalorder %s23, 0
      %p65 = por %p63, %p64
      %p66 = scmp.ne.s32.totalorder %s54, %s55
      %p67 = scmp.eq.s32.totalorder %s24, 1
      %p68 = por %p66, %p67
      %p70 = scmp.ne.s32.totalorder %s55, %s69
      %p71 = scmp.eq.s32.totalorder %s24, 0
      %p72 = por %p70, %p71
      %s74 = sadd.s32 %s73, 1
      %p77 = scmp.eq.s32.totalorder %s18, 1
      %p78 = scmp.ne.s32.totalorder %s73, %s75
      %p79 = scmp.eq.s32.totalorder %s18, 0
      %p80 = por %p78, %p79
      %p81 = scmp.ne.s32.totalorder %s73, %s75
      %p82 = scmp.eq.s32.totalorder %s23, 1
      %p83 = por %p81, %p82
      %p84 = scmp.ne.s32.totalorder %s75, %s76
      %p85 = scmp.eq.s32.totalorder %s23, 0
      %p86 = por %p84, %p85
      %p87 = scmp.ne.s32.totalorder %s75, %s76
      %p88 = scmp.eq.s32.totalorder %s24, 1
      %p89 = por %p87, %p88
      %p91 = scmp.ne.s32.totalorder %s76, %s90
      %p92 = scmp.eq.s32.totalorder %s24, 0
      %p93 = por %p91, %p92
      %s95 = sadd.s32 %s94, 1
      %p98 = scmp.eq.s32.totalorder %s18, 1
      %p99 = scmp.ne.s32.totalorder %s94, %s96
      %p100 = scmp.eq.s32.totalorder %s18, 0
      %p101 = por %p99, %p100
      %p102 = scmp.ne.s32.totalorder %s94, %s96
      %p103 = scmp.eq.s32.totalorder %s23, 1
      %p104 = por %p102, %p103
      %p105 = scmp.ne.s32.totalorder %s96, %s97
      %p106 = scmp.eq.s32.totalorder %s23, 0
      %p107 = por %p105, %p106
      %p108 = scmp.ne.s32.totalorder %s96, %s97
      %p109 = scmp.eq.s32.totalorder %s24, 1
      %p110 = por %p108, %p109
      %p112 = scmp.ne.s32.totalorder %s97, %s111
      %p113 = scmp.eq.s32.totalorder %s24, 0
      %p114 = por %p112, %p113
      %s116 = sadd.s32 %s115, 1
      %p119 = scmp.eq.s32.totalorder %s18, 1
      %p120 = scmp.ne.s32.totalorder %s115, %s117
      %p121 = scmp.eq.s32.totalorder %s18, 0
      %p122 = por %p120, %p121
      %p123 = scmp.ne.s32.totalorder %s115, %s117
      %p124 = scmp.eq.s32.totalorder %s23, 1
      %p125 = por %p123, %p124
      %p126 = scmp.ne.s32.totalorder %s117, %s118
      %p127 = scmp.eq.s32.totalorder %s23, 0
      %p128 = por %p126, %p127
      %p129 = scmp.ne.s32.totalorder %s117, %s118
      %p130 = scmp.eq.s32.totalorder %s24, 1
      %p131 = por %p129, %p130
      %p133 = scmp.ne.s32.totalorder %s118, %s132
      %p134 = scmp.eq.s32.totalorder %s24, 0
      %p135 = por %p133, %p134
      %s136 = ssub.s32 %s18, %s25
      %p137 = scmp.eq.s32.totalorder %s136, 0
      %s139 = sadd.s32 %s138, 1
      %s140 = scalar_select %p137, %s138, %s139
      %p143 = pneg %p137
      %p144 = scmp.eq.s32.totalorder %s18, 1
      %p145 = por %p143, %p144
      %p146 = scmp.ne.s32.totalorder %s138, %s141
      %p147 = scmp.eq.s32.totalorder %s18, 0
      %p148 = por %p146, %p147
      %p149 = scmp.ne.s32.totalorder %s138, %s141
      %p150 = scmp.eq.s32.totalorder %s23, 1
      %p151 = por %p149, %p150
      %p152 = scmp.ne.s32.totalorder %s141, %s142
      %p153 = scmp.eq.s32.totalorder %s23, 0
      %p154 = por %p152, %p153
      %p155 = scmp.ne.s32.totalorder %s141, %s142
      %p156 = scmp.eq.s32.totalorder %s24, 1
      %p157 = por %p155, %p156
      %p159 = scmp.ne.s32.totalorder %s142, %s158
      %p160 = scmp.eq.s32.totalorder %s24, 0
      %p161 = por %p159, %p160
      %s162 = ssub.s32 %s18, %s25
      %p163 = scmp.eq.s32.totalorder %s162, 0
      %s165 = sadd.s32 %s164, 1
      %s166 = scalar_select %p163, %s164, %s165
      %p169 = pneg %p163
      %p170 = scmp.eq.s32.totalorder %s18, 1
      %p171 = por %p169, %p170
      %p172 = scmp.ne.s32.totalorder %s164, %s167
      %p173 = scmp.eq.s32.totalorder %s18, 0
      %p174 = por %p172, %p173
      %p175 = scmp.ne.s32.totalorder %s164, %s167
      %p176 = scmp.eq.s32.totalorder %s23, 1
      %p177 = por %p175, %p176
      %p178 = scmp.ne.s32.totalorder %s167, %s168
      %p179 = scmp.eq.s32.totalorder %s23, 0
      %p180 = por %p178, %p179
      %p181 = scmp.ne.s32.totalorder %s167, %s168
      %p182 = scmp.eq.s32.totalorder %s24, 1
      %p183 = por %p181, %p182
      %p185 = scmp.ne.s32.totalorder %s168, %s184
      %p186 = scmp.eq.s32.totalorder %s24, 0
      %p187 = por %p185, %p186
      %s188 = ssub.s32 %s18, %s25
      %p189 = scmp.eq.s32.totalorder %s188, 0
      %s191 = sadd.s32 %s190, 1
      %s192 = scalar_select %p189, %s190, %s191
      %p195 = pneg %p189
      %p196 = scmp.eq.s32.totalorder %s18, 1
      %p197 = por %p195, %p196
      %p198 = scmp.ne.s32.totalorder %s190, %s193
      %p199 = scmp.eq.s32.totalorder %s18, 0
      %p200 = por %p198, %p199
      %p201 = scmp.ne.s32.totalorder %s190, %s193
      %p202 = scmp.eq.s32.totalorder %s23, 1
      %p203 = por %p201, %p202
      %p204 = scmp.ne.s32.totalorder %s193, %s194
      %p205 = scmp.eq.s32.totalorder %s23, 0
      %p206 = por %p204, %p205
      %p207 = scmp.ne.s32.totalorder %s193, %s194
      %p208 = scmp.eq.s32.totalorder %s24, 1
      %p209 = por %p207, %p208
      %p211 = scmp.ne.s32.totalorder %s194, %s210
      %p212 = scmp.eq.s32.totalorder %s24, 0
      %p213 = por %p211, %p212
      %p214 = scmp.le.s32.totalorder 1, %s18
      %p215 = scmp.lt.s32.totalorder %s18, 3
      %p216 = pnand %p214, %p215
      %p217 = pneg %p216
      // Predicated region
      $region9: #{moe_forward.1} parent=5 // pred_check
        _
      $region10: #{moe_forward.1} parent=5 // pred_check_branch
        %219 = sbr.rel (%p216) target = $region12
      $region11: #{moe_forward.1} parent=5 // pred_region
        %s220 = ssub.s32 %s18, 1
        // Predicated region
        $region13: #{moe_forward.1} parent=11 // pred_check
          %p221 = pneg %p65
        $region14: #{moe_forward.1} parent=11 // pred_check_branch
          %223 = sbr.rel (%p221) target = $region16
        $region15: #{moe_forward.1} parent=11 // pred_region
          _
        $region16: #{moe_forward.1} parent=11 // pred_fallthru
          _
        // Predicated region
        $region17: #{moe_forward.1} parent=11 // pred_check
          %p224 = pneg %p86
        $region18: #{moe_forward.1} parent=11 // pred_check_branch
          %226 = sbr.rel (%p224) target = $region20
        $region19: #{moe_forward.1} parent=11 // pred_region
          _
        $region20: #{moe_forward.1} parent=11 // pred_fallthru
          _
        // Predicated region
        $region21: #{moe_forward.1} parent=11 // pred_check
          %p227 = pneg %p107
        $region22: #{moe_forward.1} parent=11 // pred_check_branch
          %229 = sbr.rel (%p227) target = $region24
        $region23: #{moe_forward.1} parent=11 // pred_region
          %s231 = ssub.s32 8192, 8192
          %232 = vsyncadd [#allocation3], %s231
          %s233 = sshll.u32 [#allocation2], 4
          %s234 = int_to_ptr.vmem [resolvable:$true] %s233
          %239 = dma.hbm_to_vmem [thread:$0]  %s3, 8192, %s234, [#allocation3], 64, 64, 4
        $region24: #{moe_forward.1} parent=11 // pred_fallthru
          _
        // Predicated region
        $region25: #{moe_forward.1} parent=11 // pred_check
          %p240 = pneg %p128
        $region26: #{moe_forward.1} parent=11 // pred_check_branch
          %242 = sbr.rel (%p240) target = $region28
        $region27: #{moe_forward.1} parent=11 // pred_region
          _
        $region28: #{moe_forward.1} parent=11 // pred_fallthru
          _
      $region12: #{moe_forward.1} parent=5 // pred_fallthru
        _
      %p243 = scmp.lt.s32.totalorder %s18, 2
      // Predicated region
      $region29: #{moe_forward.1} parent=5 // pred_check
        %p244 = pneg %p243
      $region30: #{moe_forward.1} parent=5 // pred_check_branch
        %246 = sbr.rel (%p244) target = $region32
      $region31: #{moe_forward.1} parent=5 // pred_region
        // Predicated region
        $region33: #{moe_forward.1} parent=31 // pred_check
          %p247 = pneg %p38
        $region34: #{moe_forward.1} parent=31 // pred_check_branch
          %249 = sbr.rel (%p247) target = $region36
        $region35: #{moe_forward.1} parent=31 // pred_region
          %s250 = smul.u32 16, %s18
          %p251 = scmp.lt.s32.totalorder %s250, 31
          %s252 = scalar_select %p251, %s250, 31
          %s253 = smul.addr %s252, 4
          %s254 = scalar_lea.vmem %s0, %s253
          %s255 = smul.u32 16, %s18
        $region36: #{moe_forward.1} parent=31 // pred_fallthru
          _
      $region32: #{moe_forward.1} parent=5 // pred_fallthru
        _
      %p256 = scmp.le.s32.totalorder 1, %s18
      %p257 = scmp.lt.s32.totalorder %s18, 3
      %p258 = pnand %p256, %p257
      %p259 = pneg %p258
      // Predicated region
      $region37: #{moe_forward.1} parent=5 // pred_check
        _
      $region38: #{moe_forward.1} parent=5 // pred_check_branch
        %261 = sbr.rel (%p258) target = $region40
      $region39: #{moe_forward.1} parent=5 // pred_region
        %s262 = ssub.s32 %s18, 1
        // Predicated region
        $region41: #{moe_forward.1} parent=39 // pred_check
          %p263 = pneg %p107
        $region42: #{moe_forward.1} parent=39 // pred_check_branch
          %265 = sbr.rel (%p263) target = $region44
        $region43: #{moe_forward.1} parent=39 // pred_region
          %266 = dma.done [#allocation3], 8192
        $region44: #{moe_forward.1} parent=39 // pred_fallthru
          _
        %s267 = smul.u32 16, %s23
        %p268 = scmp.lt.s32.totalorder %s267, 31
        %s269 = scalar_select %p268, %s267, 31
        %s270 = smul.addr %s269, 4
        %s271 = scalar_lea.vmem %s0, %s270
        %p272 = pneg %p44
        %p273 = pneg %p41
        %p274 = pneg %p65
        %p275 = pneg %p62
        %p276 = pneg %p86
        %p277 = pneg %p83
        %p278 = pneg %p107
        %p279 = pneg %p104
        %p280 = pneg %p128
        %p281 = pneg %p125
        %p282 = pneg %p154
        %p283 = pneg %p151
        %s284 = sand.u32 %s141, 1
        %s285 = scalar_lea.sflag [#allocation4], %s284
        %s286 = sand.u32 %s141, 1
        %s287 = smul.addr %s286, 128
        %s288 = scalar_lea.vmem [#allocation5], %s287
        %p289 = pneg %p180
        %p290 = pneg %p177
        %s291 = smul.u32 16, %s23
        %p292 = scmp.lt.s32.totalorder %s291, 31
        %s293 = scalar_select %p292, %s291, 31
        %s294 = smul.addr %s293, 8
        %s295 = scalar_lea.vmem %s6, %s294
        %p296 = pneg %p206
        %p297 = pneg %p203
        %s298 = smul.u32 16, %s23
        %p299 = scmp.lt.s32.totalorder %s298, 31
        %s300 = scalar_select %p299, %s298, 31
        %s301 = smul.addr %s300, 8
        %s302 = scalar_lea.vmem %s7, %s301
        %s303 = smul.u32 16, %s23
        %p304 = scmp.lt.s32.totalorder %s303, 31
        %s305 = scalar_select %p304, %s303, 31
        %s306 = smul.addr %s305, 4
        %s307 = scalar_lea.vmem %s0, %s306
        %s308 = smul.u32 16, %s23
        %s309 = smul.u32 16, %s23
        %s310 = smul.u32 16, %s23
        %p311 = scmp.lt.s32.totalorder %s310, 31
        %s312 = scalar_select %p311, %s310, 31
        %s313 = smul.addr %s312, 8
        %s314 = scalar_lea.vmem %s6, %s313
        %s315 = smul.u32 16, %s23
        %s316 = smul.u32 16, %s23
        %p317 = scmp.lt.s32.totalorder %s316, 31
        %s318 = scalar_select %p317, %s316, 31
        %s319 = smul.addr %s318, 8
        %s320 = scalar_lea.vmem %s7, %s319
        %s321 = smul.u32 16, %s23
        %v323 = vld [vmem:[%s307] sm:$0xf]
        %v324 = vld [vmem:[%s307 + $0x4] sm:$0xf]
        %v325 = vld [vmem:[%s307 + $0x8] sm:$0xf]
        %v326 = vld [vmem:[%s307 + $0xc] sm:$0xf]
        %v327 = vld [vmem:[%s307 + $0x10] sm:$0xf]
        %v328 = vld [vmem:[%s307 + $0x14] sm:$0xf]
        %v329 = vld [vmem:[%s307 + $0x18] sm:$0xf]
        %v330 = vld [vmem:[%s307 + $0x1c] sm:$0xf]
        %v331 = vld [vmem:[%s307 + $0x20] sm:$0xf]
        %v332 = vld [vmem:[%s307 + $0x24] sm:$0xf]
        %v333 = vld [vmem:[%s307 + $0x28] sm:$0xf]
        %v334 = vld [vmem:[%s307 + $0x2c] sm:$0xf]
        %v335 = vld [vmem:[%s307 + $0x30] sm:$0xf]
        %v336 = vld [vmem:[%s307 + $0x34] sm:$0xf]
        %v337 = vld [vmem:[%s307 + $0x38] sm:$0xf]
        %v338 = vld [vmem:[%s307 + $0x3c] sm:$0xf]
        %v339 = vld [vmem:[%s1] sm:$0xf]
        %v340 = vld [vmem:[%s1 + $0x4] sm:$0xf]
        %v341 = vld [vmem:[%s1 + $0x8] sm:$0xf]
        %v342 = vld [vmem:[%s1 + $0xc] sm:$0xf]
        %v343 = vld [vmem:[%s1 + $0x10] sm:$0xf]
        %v344 = vld [vmem:[%s1 + $0x14] sm:$0xf]
        %v345 = vld [vmem:[%s1 + $0x18] sm:$0xf]
        %v346 = vld [vmem:[%s1 + $0x1c] sm:$0xf]
        %v347 = vld [vmem:[%s1 + $0x20] sm:$0xf]
        %v348 = vld [vmem:[%s1 + $0x24] sm:$0xf]
        %v349 = vld [vmem:[%s1 + $0x28] sm:$0xf]
        %v350 = vld [vmem:[%s1 + $0x2c] sm:$0xf]
        %v351 = vld [vmem:[%s1 + $0x30] sm:$0xf]
        %v352 = vld [vmem:[%s1 + $0x34] sm:$0xf]
        %v353 = vld [vmem:[%s1 + $0x38] sm:$0xf]
        %v354 = vld [vmem:[%s1 + $0x3c] sm:$0xf]
        %v355 = vld [vmem:[%s2] sm:$0x1]
        %v357 = vlaneseq
        %v358 = vshrl.u32 %v357, 7
        %v359 = vsub.s32 0, %v358
        %v360 = vrot.slane %v355, %v359
        %v378 = vunpack.c.l.b16 %v323
        %v379 = vunpack.c.l.b16 %v324
        %v380 = vunpack.c.l.b16 %v325
        %v381 = vunpack.c.l.b16 %v326
        %v382 = vunpack.c.l.b16 %v327
        %v383 = vunpack.c.l.b16 %v328
        %v384 = vunpack.c.l.b16 %v329
        %v385 = vunpack.c.l.b16 %v330
        %v386 = vunpack.c.l.b16 %v331
        %v387 = vunpack.c.l.b16 %v332
        %v388 = vunpack.c.l.b16 %v333
        %v389 = vunpack.c.l.b16 %v334
        %v390 = vunpack.c.l.b16 %v335
        %v391 = vunpack.c.l.b16 %v336
        %v392 = vunpack.c.l.b16 %v337
        %v393 = vunpack.c.l.b16 %v338
        %v394 = vpack.c.b16 %v379, %v378
        %v395 = vpack.c.b16 %v381, %v380
        %v396 = vpack.c.b16 %v383, %v382
        %v397 = vpack.c.b16 %v385, %v384
        %v398 = vpack.c.b16 %v387, %v386
        %v399 = vpack.c.b16 %v389, %v388
        %v400 = vpack.c.b16 %v391, %v390
        %v401 = vpack.c.b16 %v393, %v392
        %v426 = vunpack.c.l.b16 %v339
        %v427 = vunpack.c.l.b16 %v340
        %v428 = vunpack.c.l.b16 %v341
        %v429 = vunpack.c.l.b16 %v342
        %v430 = vunpack.c.l.b16 %v343
        %v431 = vunpack.c.l.b16 %v344
        %v432 = vunpack.c.l.b16 %v345
        %v433 = vunpack.c.l.b16 %v346
        %v434 = vunpack.c.l.b16 %v347
        %v435 = vunpack.c.l.b16 %v348
        %v436 = vunpack.c.l.b16 %v349
        %v437 = vunpack.c.l.b16 %v350
        %v438 = vunpack.c.l.b16 %v351
        %v439 = vunpack.c.l.b16 %v352
        %v440 = vunpack.c.l.b16 %v353
        %v441 = vunpack.c.l.b16 %v354
        %v442 = vpack.c.b16 %v427, %v426
        %v443 = vpack.c.b16 %v429, %v428
        %v444 = vpack.c.b16 %v431, %v430
        %v445 = vpack.c.b16 %v433, %v432
        %v446 = vpack.c.b16 %v435, %v434
        %v447 = vpack.c.b16 %v437, %v436
        %v448 = vpack.c.b16 %v439, %v438
        %v449 = vpack.c.b16 %v441, %v440
        %458 = vmatprep.subr.bf16.mxu0 0
        %459 = vmatpush1.bf16.msra.mxu0 %v442
        %460 = vmatprep.subr.bf16.mxu0 0
        %461 = vmatpush1.bf16.msra.mxu0 %v443
        %462 = vmatprep.subr.bf16.mxu0 0
        %463 = vmatpush1.bf16.msra.mxu0 %v444
        %464 = vmatprep.subr.bf16.mxu0 0
        %465 = vmatpush1.bf16.msra.mxu0 %v445
        %466 = vmatprep.subr.bf16.mxu0 0
        %467 = vmatpush1.bf16.msra.mxu0 %v446
        %468 = vmatprep.subr.bf16.mxu0 0
        %469 = vmatpush1.bf16.msra.mxu0 %v447
        %470 = vmatprep.subr.bf16.mxu0 0
        %471 = vmatpush1.bf16.msra.mxu0 %v448
        %472 = vmatprep.subr.bf16.mxu0 0
        %473 = vmatpush1.bf16.msra.mxu0 %v449
        %474 = vmatprep.subr.bf16.mxu0 0
        %475 = vmatpush1.bf16.msra.mxu0 0
        %476 = vmatprep.subr.bf16.mxu0 0
        %477 = vmatpush1.bf16.msra.mxu0 0
        %478 = vmatprep.subr.bf16.mxu0 0
        %479 = vmatpush1.bf16.msra.mxu0 0
        %480 = vmatprep.subr.bf16.mxu0 0
        %481 = vmatpush1.bf16.msra.mxu0 0
        %482 = vmatprep.subr.bf16.mxu0 0
        %483 = vmatpush1.bf16.msra.mxu0 0
        %484 = vmatprep.subr.bf16.mxu0 0
        %485 = vmatpush1.bf16.msra.mxu0 0
        %486 = vmatprep.subr.bf16.mxu0 0
        %487 = vmatpush1.bf16.msra.mxu0 0
        %488 = vmatprep.subr.bf16.mxu0 0
        %489 = vmatpush1.bf16.msra.mxu0 0
        %490 = vmatprep.mubr.bf16.mxu0 0
        %491 = vmatmul.mubr.bf16.gmra.mrb[0].mxu0 %v394
        %v492 = vpop.f32.mrb[0].mxu0
        %v493 = vadd.f32 %v360, %v492
        %v494 = vpop.f32.mrb[0].mxu0
        %v495 = vpop.f32.mrb[0].mxu0
        %v496 = vadd.f32 %v360, %v495
        %v497 = vpop.f32.mrb[0].mxu0
        %498 = vmatprep.mubr.bf16.mxu0 0
        %499 = vmatmul.mubr.bf16.gmra.mrb[0].mxu0 %v395
        %v500 = vpop.f32.mrb[0].mxu0
        %v501 = vadd.f32 %v360, %v500
        %v502 = vpop.f32.mrb[0].mxu0
        %v503 = vpop.f32.mrb[0].mxu0
        %v504 = vadd.f32 %v360, %v503
        %v505 = vpop.f32.mrb[0].mxu0
        %506 = vmatprep.mubr.bf16.mxu0 0
        %507 = vmatmul.mubr.bf16.gmra.mrb[0].mxu0 %v396
        %v508 = vpop.f32.mrb[0].mxu0
        %v509 = vadd.f32 %v360, %v508
        %v510 = vpop.f32.mrb[0].mxu0
        %v511 = vpop.f32.mrb[0].mxu0
        %v512 = vadd.f32 %v360, %v511
        %v513 = vpop.f32.mrb[0].mxu0
        %514 = vmatprep.mubr.bf16.mxu0 0
        %515 = vmatmul.mubr.bf16.gmra.mrb[0].mxu0 %v397
        %v516 = vpop.f32.mrb[0].mxu0
        %v517 = vadd.f32 %v360, %v516
        %v518 = vpop.f32.mrb[0].mxu0
        %v519 = vpop.f32.mrb[0].mxu0
        %v520 = vadd.f32 %v360, %v519
        %v521 = vpop.f32.mrb[0].mxu0
        %522 = vmatprep.mubr.bf16.mxu0 0
        %523 = vmatmul.mubr.bf16.gmra.mrb[0].mxu0 %v398
        %v524 = vpop.f32.mrb[0].mxu0
        %v525 = vadd.f32 %v360, %v524
        %v526 = vpop.f32.mrb[0].mxu0
        %v527 = vpop.f32.mrb[0].mxu0
        %v528 = vadd.f32 %v360, %v527
        %v529 = vpop.f32.mrb[0].mxu0
        %530 = vmatprep.mubr.bf16.mxu0 0
        %531 = vmatmul.mubr.bf16.gmra.mrb[0].mxu0 %v399
        %v532 = vpop.f32.mrb[0].mxu0
        %v533 = vadd.f32 %v360, %v532
        %v534 = vpop.f32.mrb[0].mxu0
        %v535 = vpop.f32.mrb[0].mxu0
        %v536 = vadd.f32 %v360, %v535
        %v537 = vpop.f32.mrb[0].mxu0
        %538 = vmatprep.mubr.bf16.mxu0 0
        %539 = vmatmul.mubr.bf16.gmra.mrb[0].mxu0 %v400
        %v540 = vpop.f32.mrb[0].mxu0
        %v541 = vadd.f32 %v360, %v540
        %v542 = vpop.f32.mrb[0].mxu0
        %v543 = vpop.f32.mrb[0].mxu0
        %v544 = vadd.f32 %v360, %v543
        %v545 = vpop.f32.mrb[0].mxu0
        %546 = vmatprep.mubr.bf16.mxu0 0
        %547 = vmatmul.mubr.bf16.gmra.mrb[0].mxu0 %v401
        %v548 = vpop.f32.mrb[0].mxu0
        %v549 = vadd.f32 %v360, %v548
        %v550 = vpop.f32.mrb[0].mxu0
        %v551 = vpop.f32.mrb[0].mxu0
        %v552 = vadd.f32 %v360, %v551
        %v553 = vpop.f32.mrb[0].mxu0
        %554 = vdwg.mxu0
        %vm555 = vcmask 64512
        %v556 = vsel %vm555, %v493, -inf
        %557 = vmax.xlane.f32.xlu0 %v556
        %v558 = vpop.xlane.xlu0 %557
        %v559 = vsel %vm555, %v496, -inf
        %560 = vmax.xlane.f32.xlu0 %v559
        %v561 = vpop.xlane.xlu0 %560
        %v562 = vsel %vm555, %v501, -inf
        %563 = vmax.xlane.f32.xlu0 %v562
        %v564 = vpop.xlane.xlu0 %563
        %v565 = vsel %vm555, %v504, -inf
        %566 = vmax.xlane.f32.xlu0 %v565
        %v567 = vpop.xlane.xlu0 %566
        %v568 = vsel %vm555, %v509, -inf
        %569 = vmax.xlane.f32.xlu0 %v568
        %v570 = vpop.xlane.xlu0 %569
        %v571 = vsel %vm555, %v512, -inf
        %572 = vmax.xlane.f32.xlu0 %v571
        %v573 = vpop.xlane.xlu0 %572
        %v574 = vsel %vm555, %v517, -inf
        %575 = vmax.xlane.f32.xlu0 %v574
        %v576 = vpop.xlane.xlu0 %575
        %v577 = vsel %vm555, %v520, -inf
        %578 = vmax.xlane.f32.xlu0 %v577
        %v579 = vpop.xlane.xlu0 %578
        %v580 = vsel %vm555, %v525, -inf
        %581 = vmax.xlane.f32.xlu0 %v580
        %v582 = vpop.xlane.xlu0 %581
        %v583 = vsel %vm555, %v528, -inf
        %584 = vmax.xlane.f32.xlu0 %v583
        %v585 = vpop.xlane.xlu0 %584
        %v586 = vsel %vm555, %v533, -inf
        %587 = vmax.xlane.f32.xlu0 %v586
        %v588 = vpop.xlane.xlu0 %587
        %v589 = vsel %vm555, %v536, -inf
        %590 = vmax.xlane.f32.xlu0 %v589
        %v591 = vpop.xlane.xlu0 %590
        %v592 = vsel %vm555, %v541, -inf
        %593 = vmax.xlane.f32.xlu0 %v592
        %v594 = vpop.xlane.xlu0 %593
        %v595 = vsel %vm555, %v544, -inf
        %596 = vmax.xlane.f32.xlu0 %v595
        %v597 = vpop.xlane.xlu0 %596
        %v598 = vsel %vm555, %v549, -inf
        %599 = vmax.xlane.f32.xlu0 %v598
        %v600 = vpop.xlane.xlu0 %599
        %v601 = vsel %vm555, %v552, -inf
        %602 = vmax.xlane.f32.xlu0 %v601
        %v603 = vpop.xlane.xlu0 %602
        %v604 = vsub.f32 %v493, %v558
        %v605 = vsub.f32 %v496, %v561
        %v606 = vsub.f32 %v501, %v564
        %v607 = vsub.f32 %v504, %v567
        %v608 = vsub.f32 %v509, %v570
        %v609 = vsub.f32 %v512, %v573
        %v610 = vsub.f32 %v517, %v576
        %v611 = vsub.f32 %v520, %v579
        %v612 = vsub.f32 %v525, %v582
        %v613 = vsub.f32 %v528, %v585
        %v614 = vsub.f32 %v533, %v588
        %v615 = vsub.f32 %v536, %v591
        %v616 = vsub.f32 %v541, %v594
        %v617 = vsub.f32 %v544, %v597
        %v618 = vsub.f32 %v549, %v600
        %v619 = vsub.f32 %v552, %v603
        %v620 = vmul.f32 %v604, 1.442695
        %v621 = vpow.pop %v620
        %v622 = vmul.f32 %v605, 1.442695
        %v623 = vpow.pop %v622
        %v624 = vmul.f32 %v606, 1.442695
        %v625 = vpow.pop %v624
        %v626 = vmul.f32 %v607, 1.442695
        %v627 = vpow.pop %v626
        %v628 = vmul.f32 %v608, 1.442695
        %v629 = vpow.pop %v628
        %v630 = vmul.f32 %v609, 1.442695
        %v631 = vpow.pop %v630
        %v632 = vmul.f32 %v610, 1.442695
        %v633 = vpow.pop %v632
        %v634 = vmul.f32 %v611, 1.442695
        %v635 = vpow.pop %v634
        %v636 = vmul.f32 %v612, 1.442695
        %v637 = vpow.pop %v636
        %v638 = vmul.f32 %v613, 1.442695
        %v639 = vpow.pop %v638
        %v640 = vmul.f32 %v614, 1.442695
        %v641 = vpow.pop %v640
        %v642 = vmul.f32 %v615, 1.442695
        %v643 = vpow.pop %v642
        %v644 = vmul.f32 %v616, 1.442695
        %v645 = vpow.pop %v644
        %v646 = vmul.f32 %v617, 1.442695
        %v647 = vpow.pop %v646
        %v648 = vmul.f32 %v618, 1.442695
        %v649 = vpow.pop %v648
        %v650 = vmul.f32 %v619, 1.442695
        %v651 = vpow.pop %v650
        %v652 = vsel %vm555, %v621, 0.0
        %653 = vadd.xlane.f32.xlu0 %v652
        %v654 = vpop.xlane.xlu0 %653
        %v655 = vsel %vm555, %v623, 0.0
        %656 = vadd.xlane.f32.xlu0 %v655
        %v657 = vpop.xlane.xlu0 %656
        %v658 = vsel %vm555, %v625, 0.0
        %659 = vadd.xlane.f32.xlu0 %v658
        %v660 = vpop.xlane.xlu0 %659
        %v661 = vsel %vm555, %v627, 0.0
        %662 = vadd.xlane.f32.xlu0 %v661
        %v663 = vpop.xlane.xlu0 %662
        %v664 = vsel %vm555, %v629, 0.0
        %665 = vadd.xlane.f32.xlu0 %v664
        %v666 = vpop.xlane.xlu0 %665
        %v667 = vsel %vm555, %v631, 0.0
        %668 = vadd.xlane.f32.xlu0 %v667
        %v669 = vpop.xlane.xlu0 %668
        %v670 = vsel %vm555, %v633, 0.0
        %671 = vadd.xlane.f32.xlu0 %v670
        %v672 = vpop.xlane.xlu0 %671
        %v673 = vsel %vm555, %v635, 0.0
        %674 = vadd.xlane.f32.xlu0 %v673
        %v675 = vpop.xlane.xlu0 %674
        %v676 = vsel %vm555, %v637, 0.0
        %677 = vadd.xlane.f32.xlu0 %v676
        %v678 = vpop.xlane.xlu0 %677
        %v679 = vsel %vm555, %v639, 0.0
        %680 = vadd.xlane.f32.xlu0 %v679
        %v681 = vpop.xlane.xlu0 %680
        %v682 = vsel %vm555, %v641, 0.0
        %683 = vadd.xlane.f32.xlu0 %v682
        %v684 = vpop.xlane.xlu0 %683
        %v685 = vsel %vm555, %v643, 0.0
        %686 = vadd.xlane.f32.xlu0 %v685
        %v687 = vpop.xlane.xlu0 %686
        %v688 = vsel %vm555, %v645, 0.0
        %689 = vadd.xlane.f32.xlu0 %v688
        %v690 = vpop.xlane.xlu0 %689
        %v691 = vsel %vm555, %v647, 0.0
        %692 = vadd.xlane.f32.xlu0 %v691
        %v693 = vpop.xlane.xlu0 %692
        %v694 = vsel %vm555, %v649, 0.0
        %695 = vadd.xlane.f32.xlu0 %v694
        %v696 = vpop.xlane.xlu0 %695
        %v697 = vsel %vm555, %v651, 0.0
        %698 = vadd.xlane.f32.xlu0 %v697
        %v699 = vpop.xlane.xlu0 %698
        %v700 = vrcp.pop %v654
        %v701 = vmul.f32 %v621, %v700
        %v702 = vrcp.pop %v657
        %v703 = vmul.f32 %v623, %v702
        %v704 = vrcp.pop %v660
        %v705 = vmul.f32 %v625, %v704
        %v706 = vrcp.pop %v663
        %v707 = vmul.f32 %v627, %v706
        %v708 = vrcp.pop %v666
        %v709 = vmul.f32 %v629, %v708
        %v710 = vrcp.pop %v669
        %v711 = vmul.f32 %v631, %v710
        %v712 = vrcp.pop %v672
        %v713 = vmul.f32 %v633, %v712
        %v714 = vrcp.pop %v675
        %v715 = vmul.f32 %v635, %v714
        %v716 = vrcp.pop %v678
        %v717 = vmul.f32 %v637, %v716
        %v718 = vrcp.pop %v681
        %v719 = vmul.f32 %v639, %v718
        %v720 = vrcp.pop %v684
        %v721 = vmul.f32 %v641, %v720
        %v722 = vrcp.pop %v687
        %v723 = vmul.f32 %v643, %v722
        %v724 = vrcp.pop %v690
        %v725 = vmul.f32 %v645, %v724
        %v726 = vrcp.pop %v693
        %v727 = vmul.f32 %v647, %v726
        %v728 = vrcp.pop %v696
        %v729 = vmul.f32 %v649, %v728
        %v730 = vrcp.pop %v699
        %v731 = vmul.f32 %v651, %v730
        %v732 = vadd.f32 %v701, 1e-08
        %v733 = vadd.f32 %v703, 1e-08
        %v734 = vadd.f32 %v705, 1e-08
        %v735 = vadd.f32 %v707, 1e-08
        %v736 = vadd.f32 %v709, 1e-08
        %v737 = vadd.f32 %v711, 1e-08
        %v738 = vadd.f32 %v713, 1e-08
        %v739 = vadd.f32 %v715, 1e-08
        %v740 = vadd.f32 %v717, 1e-08
        %v741 = vadd.f32 %v719, 1e-08
        %v742 = vadd.f32 %v721, 1e-08
        %v743 = vadd.f32 %v723, 1e-08
        %v744 = vadd.f32 %v725, 1e-08
        %v745 = vadd.f32 %v727, 1e-08
        %v746 = vadd.f32 %v729, 1e-08
        %v747 = vadd.f32 %v731, 1e-08
        %v748 = vlog2.pop %v732
        %v749 = vmul.f32 %v748, 0.6931472
        %v750 = vlog2.pop %v733
        %v751 = vmul.f32 %v750, 0.6931472
        %v752 = vlog2.pop %v734
        %v753 = vmul.f32 %v752, 0.6931472
        %v754 = vlog2.pop %v735
        %v755 = vmul.f32 %v754, 0.6931472
        %v756 = vlog2.pop %v736
        %v757 = vmul.f32 %v756, 0.6931472
        %v758 = vlog2.pop %v737
        %v759 = vmul.f32 %v758, 0.6931472
        %v760 = vlog2.pop %v738
        %v761 = vmul.f32 %v760, 0.6931472
        %v762 = vlog2.pop %v739
        %v763 = vmul.f32 %v762, 0.6931472
        %v764 = vlog2.pop %v740
        %v765 = vmul.f32 %v764, 0.6931472
        %v766 = vlog2.pop %v741
        %v767 = vmul.f32 %v766, 0.6931472
        %v768 = vlog2.pop %v742
        %v769 = vmul.f32 %v768, 0.6931472
        %v770 = vlog2.pop %v743
        %v771 = vmul.f32 %v770, 0.6931472
        %v772 = vlog2.pop %v744
        %v773 = vmul.f32 %v772, 0.6931472
        %v774 = vlog2.pop %v745
        %v775 = vmul.f32 %v774, 0.6931472
        %v776 = vlog2.pop %v746
        %v777 = vmul.f32 %v776, 0.6931472
        %v778 = vlog2.pop %v747
        %v779 = vmul.f32 %v778, 0.6931472
        %v780 = vmul.f32 %v701, %v749
        %v781 = vmul.f32 %v703, %v751
        %v782 = vmul.f32 %v705, %v753
        %v783 = vmul.f32 %v707, %v755
        %v784 = vmul.f32 %v709, %v757
        %v785 = vmul.f32 %v711, %v759
        %v786 = vmul.f32 %v713, %v761
        %v787 = vmul.f32 %v715, %v763
        %v788 = vmul.f32 %v717, %v765
        %v789 = vmul.f32 %v719, %v767
        %v790 = vmul.f32 %v721, %v769
        %v791 = vmul.f32 %v723, %v771
        %v792 = vmul.f32 %v725, %v773
        %v793 = vmul.f32 %v727, %v775
        %v794 = vmul.f32 %v729, %v777
        %v795 = vmul.f32 %v731, %v779
        %v796 = vsel %vm555, %v780, 0.0
        %797 = vadd.xlane.f32.xlu0 %v796
        %v798 = vpop.xlane.xlu0 %797
        %v799 = vsel %vm555, %v781, 0.0
        %800 = vadd.xlane.f32.xlu0 %v799
        %v801 = vpop.xlane.xlu0 %800
        %v802 = vsel %vm555, %v782, 0.0
        %803 = vadd.xlane.f32.xlu0 %v802
        %v804 = vpop.xlane.xlu0 %803
        %v805 = vsel %vm555, %v783, 0.0
        %806 = vadd.xlane.f32.xlu0 %v805
        %v807 = vpop.xlane.xlu0 %806
        %v808 = vsel %vm555, %v784, 0.0
        %809 = vadd.xlane.f32.xlu0 %v808
        %v810 = vpop.xlane.xlu0 %809
        %v811 = vsel %vm555, %v785, 0.0
        %812 = vadd.xlane.f32.xlu0 %v811
        %v813 = vpop.xlane.xlu0 %812
        %v814 = vsel %vm555, %v786, 0.0
        %815 = vadd.xlane.f32.xlu0 %v814
        %v816 = vpop.xlane.xlu0 %815
        %v817 = vsel %vm555, %v787, 0.0
        %818 = vadd.xlane.f32.xlu0 %v817
        %v819 = vpop.xlane.xlu0 %818
        %v820 = vsel %vm555, %v788, 0.0
        %821 = vadd.xlane.f32.xlu0 %v820
        %v822 = vpop.xlane.xlu0 %821
        %v823 = vsel %vm555, %v789, 0.0
        %824 = vadd.xlane.f32.xlu0 %v823
        %v825 = vpop.xlane.xlu0 %824
        %v826 = vsel %vm555, %v790, 0.0
        %827 = vadd.xlane.f32.xlu0 %v826
        %v828 = vpop.xlane.xlu0 %827
        %v829 = vsel %vm555, %v791, 0.0
        %830 = vadd.xlane.f32.xlu0 %v829
        %v831 = vpop.xlane.xlu0 %830
        %v832 = vsel %vm555, %v792, 0.0
        %833 = vadd.xlane.f32.xlu0 %v832
        %v834 = vpop.xlane.xlu0 %833
        %v835 = vsel %vm555, %v793, 0.0
        %836 = vadd.xlane.f32.xlu0 %v835
        %v837 = vpop.xlane.xlu0 %836
        %v838 = vsel %vm555, %v794, 0.0
        %839 = vadd.xlane.f32.xlu0 %v838
        %v840 = vpop.xlane.xlu0 %839
        %v841 = vsel %vm555, %v795, 0.0
        %842 = vadd.xlane.f32.xlu0 %v841
        %v843 = vpop.xlane.xlu0 %842
        %v844 = vsub.f32 0.0, %v798
        %v845 = vsub.f32 0.0, %v801
        %v846 = vsub.f32 0.0, %v804
        %v847 = vsub.f32 0.0, %v807
        %v848 = vsub.f32 0.0, %v810
        %v849 = vsub.f32 0.0, %v813
        %v850 = vsub.f32 0.0, %v816
        %v851 = vsub.f32 0.0, %v819
        %v852 = vsub.f32 0.0, %v822
        %v853 = vsub.f32 0.0, %v825
        %v854 = vsub.f32 0.0, %v828
        %v855 = vsub.f32 0.0, %v831
        %v856 = vsub.f32 0.0, %v834
        %v857 = vsub.f32 0.0, %v837
        %v858 = vsub.f32 0.0, %v840
        %v859 = vsub.f32 0.0, %v843
        %vm860 = vcmask 7168
        %861 = vst.msk [vmem:[%s314] sm:$0xff] %vm860, %v844
        %862 = vst.msk [vmem:[%s314 + $0x8] sm:$0xff] %vm860, %v845
        %863 = vst.msk [vmem:[%s314 + $0x10] sm:$0xff] %vm860, %v846
        %864 = vst.msk [vmem:[%s314 + $0x18] sm:$0xff] %vm860, %v847
        %865 = vst.msk [vmem:[%s314 + $0x20] sm:$0xff] %vm860, %v848
        %866 = vst.msk [vmem:[%s314 + $0x28] sm:$0xff] %vm860, %v849
        %867 = vst.msk [vmem:[%s314 + $0x30] sm:$0xff] %vm860, %v850
        %868 = vst.msk [vmem:[%s314 + $0x38] sm:$0xff] %vm860, %v851
        %869 = vst.msk [vmem:[%s314 + $0x40] sm:$0xff] %vm860, %v852
        %870 = vst.msk [vmem:[%s314 + $0x48] sm:$0xff] %vm860, %v853
        %871 = vst.msk [vmem:[%s314 + $0x50] sm:$0xff] %vm860, %v854
        %872 = vst.msk [vmem:[%s314 + $0x58] sm:$0xff] %vm860, %v855
        %873 = vst.msk [vmem:[%s314 + $0x60] sm:$0xff] %vm860, %v856
        %874 = vst.msk [vmem:[%s314 + $0x68] sm:$0xff] %vm860, %v857
        %875 = vst.msk [vmem:[%s314 + $0x70] sm:$0xff] %vm860, %v858
        %876 = vst.msk [vmem:[%s314 + $0x78] sm:$0xff] %vm860, %v859
        %v877 = vlaneseq
        %v878 = vand.u32 %v877, 127
        %v879 = vsel %vm555, %v701, -inf
        %880 = vmax.xlane.f32.xlu0 %v879
        %v881 = vpop.xlane.xlu0 %880
        %v882 = vsel %vm555, %v703, -inf
        %883 = vmax.xlane.f32.xlu0 %v882
        %v884 = vpop.xlane.xlu0 %883
        %v885 = vsel %vm555, %v705, -inf
        %886 = vmax.xlane.f32.xlu0 %v885
        %v887 = vpop.xlane.xlu0 %886
        %v888 = vsel %vm555, %v707, -inf
        %889 = vmax.xlane.f32.xlu0 %v888
        %v890 = vpop.xlane.xlu0 %889
        %v891 = vsel %vm555, %v709, -inf
        %892 = vmax.xlane.f32.xlu0 %v891
        %v893 = vpop.xlane.xlu0 %892
        %v894 = vsel %vm555, %v711, -inf
        %895 = vmax.xlane.f32.xlu0 %v894
        %v896 = vpop.xlane.xlu0 %895
        %v897 = vsel %vm555, %v713, -inf
        %898 = vmax.xlane.f32.xlu0 %v897
        %v899 = vpop.xlane.xlu0 %898
        %v900 = vsel %vm555, %v715, -inf
        %901 = vmax.xlane.f32.xlu0 %v900
        %v902 = vpop.xlane.xlu0 %901
        %v903 = vsel %vm555, %v717, -inf
        %904 = vmax.xlane.f32.xlu0 %v903
        %v905 = vpop.xlane.xlu0 %904
        %v906 = vsel %vm555, %v719, -inf
        %907 = vmax.xlane.f32.xlu0 %v906
        %v908 = vpop.xlane.xlu0 %907
        %v909 = vsel %vm555, %v721, -inf
        %910 = vmax.xlane.f32.xlu0 %v909
        %v911 = vpop.xlane.xlu0 %910
        %v912 = vsel %vm555, %v723, -inf
        %913 = vmax.xlane.f32.xlu0 %v912
        %v914 = vpop.xlane.xlu0 %913
        %v915 = vsel %vm555, %v725, -inf
        %916 = vmax.xlane.f32.xlu0 %v915
        %v917 = vpop.xlane.xlu0 %916
        %v918 = vsel %vm555, %v727, -inf
        %919 = vmax.xlane.f32.xlu0 %v918
        %v920 = vpop.xlane.xlu0 %919
        %v921 = vsel %vm555, %v729, -inf
        %922 = vmax.xlane.f32.xlu0 %v921
        %v923 = vpop.xlane.xlu0 %922
        %v924 = vsel %vm555, %v731, -inf
        %925 = vmax.xlane.f32.xlu0 %v924
        %v926 = vpop.xlane.xlu0 %925
        %vm927 = vcmp.eq.f32.partialorder %v701, %v881
        %vm928 = vcmp.eq.f32.partialorder %v703, %v884
        %vm929 = vcmp.eq.f32.partialorder %v705, %v887
        %vm930 = vcmp.eq.f32.partialorder %v707, %v890
        %vm931 = vcmp.eq.f32.partialorder %v709, %v893
        %vm932 = vcmp.eq.f32.partialorder %v711, %v896
        %vm933 = vcmp.eq.f32.partialorder %v713, %v899
        %vm934 = vcmp.eq.f32.partialorder %v715, %v902
        %vm935 = vcmp.eq.f32.partialorder %v717, %v905
        %vm936 = vcmp.eq.f32.partialorder %v719, %v908
        %vm937 = vcmp.eq.f32.partialorder %v721, %v911
        %vm938 = vcmp.eq.f32.partialorder %v723, %v914
        %vm939 = vcmp.eq.f32.partialorder %v725, %v917
        %vm940 = vcmp.eq.f32.partialorder %v727, %v920
        %vm941 = vcmp.eq.f32.partialorder %v729, %v923
        %vm942 = vcmp.eq.f32.partialorder %v731, %v926
        %v943 = vsel %vm927, %v878, 8
        %v944 = vsel %vm928, %v878, 8
        %v945 = vsel %vm929, %v878, 8
        %v946 = vsel %vm930, %v878, 8
        %v947 = vsel %vm931, %v878, 8
        %v948 = vsel %vm932, %v878, 8
        %v949 = vsel %vm933, %v878, 8
        %v950 = vsel %vm934, %v878, 8
        %v951 = vsel %vm935, %v878, 8
        %v952 = vsel %vm936, %v878, 8
        %v953 = vsel %vm937, %v878, 8
        %v954 = vsel %vm938, %v878, 8
        %v955 = vsel %vm939, %v878, 8
        %v956 = vsel %vm940, %v878, 8
        %v957 = vsel %vm941, %v878, 8
        %v958 = vsel %vm942, %v878, 8
        %v959 = vsel %vm555, %v943, 2147483647
        %v960 = vand.u32 %v959, 65535
        %v961 = vshra.s32 %v959, 16
        %v962 = vcvt.s32.f32 %v960
        %v963 = vcvt.s32.f32 %v961
        %964 = vmin.xlane.f32.xlu0 %v963
        %v965 = vpop.xlane.xlu0 %964
        %vm966 = vcmp.eq.f32.partialorder %v963, %v965
        %v967 = vsel %vm966, %v962, inf
        %968 = vmin.xlane.f32.xlu0 %v967
        %v969 = vpop.xlane.xlu0 %968
        %v970 = vcvt.f32.s32 %v969
        %v971 = vcvt.f32.s32 %v965
        %v972 = vshll.u32 %v971, 16
        %v973 = vadd.s32 %v972, %v970
        %v974 = vsel %vm555, %v944, 2147483647
        %v975 = vand.u32 %v974, 65535
        %v976 = vshra.s32 %v974, 16
        %v977 = vcvt.s32.f32 %v975
        %v978 = vcvt.s32.f32 %v976
        %979 = vmin.xlane.f32.xlu0 %v978
        %v980 = vpop.xlane.xlu0 %979
        %vm981 = vcmp.eq.f32.partialorder %v978, %v980
        %v982 = vsel %vm981, %v977, inf
        %983 = vmin.xlane.f32.xlu0 %v982
        %v984 = vpop.xlane.xlu0 %983
        %v985 = vcvt.f32.s32 %v984
        %v986 = vcvt.f32.s32 %v980
        %v987 = vshll.u32 %v986, 16
        %v988 = vadd.s32 %v987, %v985
        %v989 = vsel %vm555, %v945, 2147483647
        %v990 = vand.u32 %v989, 65535
        %v991 = vshra.s32 %v989, 16
        %v992 = vcvt.s32.f32 %v990
        %v993 = vcvt.s32.f32 %v991
        %994 = vmin.xlane.f32.xlu0 %v993
        %v995 = vpop.xlane.xlu0 %994
        %vm996 = vcmp.eq.f32.partialorder %v993, %v995
        %v997 = vsel %vm996, %v992, inf
        %998 = vmin.xlane.f32.xlu0 %v997
        %v999 = vpop.xlane.xlu0 %998
        %v1000 = vcvt.f32.s32 %v999
        %v1001 = vcvt.f32.s32 %v995
        %v1002 = vshll.u32 %v1001, 16
        %v1003 = vadd.s32 %v1002, %v1000
        %v1004 = vsel %vm555, %v946, 2147483647
        %v1005 = vand.u32 %v1004, 65535
        %v1006 = vshra.s32 %v1004, 16
        %v1007 = vcvt.s32.f32 %v1005
        %v1008 = vcvt.s32.f32 %v1006
        %1009 = vmin.xlane.f32.xlu0 %v1008
        %v1010 = vpop.xlane.xlu0 %1009
        %vm1011 = vcmp.eq.f32.partialorder %v1008, %v1010
        %v1012 = vsel %vm1011, %v1007, inf
        %1013 = vmin.xlane.f32.xlu0 %v1012
        %v1014 = vpop.xlane.xlu0 %1013
        %v1015 = vcvt.f32.s32 %v1014
        %v1016 = vcvt.f32.s32 %v1010
        %v1017 = vshll.u32 %v1016, 16
        %v1018 = vadd.s32 %v1017, %v1015
        %v1019 = vsel %vm555, %v947, 2147483647
        %v1020 = vand.u32 %v1019, 65535
        %v1021 = vshra.s32 %v1019, 16
        %v1022 = vcvt.s32.f32 %v1020
        %v1023 = vcvt.s32.f32 %v1021
        %1024 = vmin.xlane.f32.xlu0 %v1023
        %v1025 = vpop.xlane.xlu0 %1024
        %vm1026 = vcmp.eq.f32.partialorder %v1023, %v1025
        %v1027 = vsel %vm1026, %v1022, inf
        %1028 = vmin.xlane.f32.xlu0 %v1027
        %v1029 = vpop.xlane.xlu0 %1028
        %v1030 = vcvt.f32.s32 %v1029
        %v1031 = vcvt.f32.s32 %v1025
        %v1032 = vshll.u32 %v1031, 16
        %v1033 = vadd.s32 %v1032, %v1030
        %v1034 = vsel %vm555, %v948, 2147483647
        %v1035 = vand.u32 %v1034, 65535
        %v1036 = vshra.s32 %v1034, 16
        %v1037 = vcvt.s32.f32 %v1035
        %v1038 = vcvt.s32.f32 %v1036
        %1039 = vmin.xlane.f32.xlu0 %v1038
        %v1040 = vpop.xlane.xlu0 %1039
        %vm1041 = vcmp.eq.f32.partialorder %v1038, %v1040
        %v1042 = vsel %vm1041, %v1037, inf
        %1043 = vmin.xlane.f32.xlu0 %v1042
        %v1044 = vpop.xlane.xlu0 %1043
        %v1045 = vcvt.f32.s32 %v1044
        %v1046 = vcvt.f32.s32 %v1040
        %v1047 = vshll.u32 %v1046, 16
        %v1048 = vadd.s32 %v1047, %v1045
        %v1049 = vsel %vm555, %v949, 2147483647
        %v1050 = vand.u32 %v1049, 65535
        %v1051 = vshra.s32 %v1049, 16
        %v1052 = vcvt.s32.f32 %v1050
        %v1053 = vcvt.s32.f32 %v1051
        %1054 = vmin.xlane.f32.xlu0 %v1053
        %v1055 = vpop.xlane.xlu0 %1054
        %vm1056 = vcmp.eq.f32.partialorder %v1053, %v1055
        %v1057 = vsel %vm1056, %v1052, inf
        %1058 = vmin.xlane.f32.xlu0 %v1057
        %v1059 = vpop.xlane.xlu0 %1058
        %v1060 = vcvt.f32.s32 %v1059
        %v1061 = vcvt.f32.s32 %v1055
        %v1062 = vshll.u32 %v1061, 16
        %v1063 = vadd.s32 %v1062, %v1060
        %v1064 = vsel %vm555, %v950, 2147483647
        %v1065 = vand.u32 %v1064, 65535
        %v1066 = vshra.s32 %v1064, 16
        %v1067 = vcvt.s32.f32 %v1065
        %v1068 = vcvt.s32.f32 %v1066
        %1069 = vmin.xlane.f32.xlu0 %v1068
        %v1070 = vpop.xlane.xlu0 %1069
        %vm1071 = vcmp.eq.f32.partialorder %v1068, %v1070
        %v1072 = vsel %vm1071, %v1067, inf
        %1073 = vmin.xlane.f32.xlu0 %v1072
        %v1074 = vpop.xlane.xlu0 %1073
        %v1075 = vcvt.f32.s32 %v1074
        %v1076 = vcvt.f32.s32 %v1070
        %v1077 = vshll.u32 %v1076, 16
        %v1078 = vadd.s32 %v1077, %v1075
        %v1079 = vsel %vm555, %v951, 2147483647
        %v1080 = vand.u32 %v1079, 65535
        %v1081 = vshra.s32 %v1079, 16
        %v1082 = vcvt.s32.f32 %v1080
        %v1083 = vcvt.s32.f32 %v1081
        %1084 = vmin.xlane.f32.xlu0 %v1083
        %v1085 = vpop.xlane.xlu0 %1084
        %vm1086 = vcmp.eq.f32.partialorder %v1083, %v1085
        %v1087 = vsel %vm1086, %v1082, inf
        %1088 = vmin.xlane.f32.xlu0 %v1087
        %v1089 = vpop.xlane.xlu0 %1088
        %v1090 = vcvt.f32.s32 %v1089
        %v1091 = vcvt.f32.s32 %v1085
        %v1092 = vshll.u32 %v1091, 16
        %v1093 = vadd.s32 %v1092, %v1090
        %v1094 = vsel %vm555, %v952, 2147483647
        %v1095 = vand.u32 %v1094, 65535
        %v1096 = vshra.s32 %v1094, 16
        %v1097 = vcvt.s32.f32 %v1095
        %v1098 = vcvt.s32.f32 %v1096
        %1099 = vmin.xlane.f32.xlu0 %v1098
        %v1100 = vpop.xlane.xlu0 %1099
        %vm1101 = vcmp.eq.f32.partialorder %v1098, %v1100
        %v1102 = vsel %vm1101, %v1097, inf
        %1103 = vmin.xlane.f32.xlu0 %v1102
        %v1104 = vpop.xlane.xlu0 %1103
        %v1105 = vcvt.f32.s32 %v1104
        %v1106 = vcvt.f32.s32 %v1100
        %v1107 = vshll.u32 %v1106, 16
        %v1108 = vadd.s32 %v1107, %v1105
        %v1109 = vsel %vm555, %v953, 2147483647
        %v1110 = vand.u32 %v1109, 65535
        %v1111 = vshra.s32 %v1109, 16
        %v1112 = vcvt.s32.f32 %v1110
        %v1113 = vcvt.s32.f32 %v1111
        %1114 = vmin.xlane.f32.xlu0 %v1113
        %v1115 = vpop.xlane.xlu0 %1114
        %vm1116 = vcmp.eq.f32.partialorder %v1113, %v1115
        %v1117 = vsel %vm1116, %v1112, inf
        %1118 = vmin.xlane.f32.xlu0 %v1117
        %v1119 = vpop.xlane.xlu0 %1118
        %v1120 = vcvt.f32.s32 %v1119
        %v1121 = vcvt.f32.s32 %v1115
        %v1122 = vshll.u32 %v1121, 16
        %v1123 = vadd.s32 %v1122, %v1120
        %v1124 = vsel %vm555, %v954, 2147483647
        %v1125 = vand.u32 %v1124, 65535
        %v1126 = vshra.s32 %v1124, 16
        %v1127 = vcvt.s32.f32 %v1125
        %v1128 = vcvt.s32.f32 %v1126
        %1129 = vmin.xlane.f32.xlu0 %v1128
        %v1130 = vpop.xlane.xlu0 %1129
        %vm1131 = vcmp.eq.f32.partialorder %v1128, %v1130
        %v1132 = vsel %vm1131, %v1127, inf
        %1133 = vmin.xlane.f32.xlu0 %v1132
        %v1134 = vpop.xlane.xlu0 %1133
        %v1135 = vcvt.f32.s32 %v1134
        %v1136 = vcvt.f32.s32 %v1130
        %v1137 = vshll.u32 %v1136, 16
        %v1138 = vadd.s32 %v1137, %v1135
        %v1139 = vsel %vm555, %v955, 2147483647
        %v1140 = vand.u32 %v1139, 65535
        %v1141 = vshra.s32 %v1139, 16
        %v1142 = vcvt.s32.f32 %v1140
        %v1143 = vcvt.s32.f32 %v1141
        %1144 = vmin.xlane.f32.xlu0 %v1143
        %v1145 = vpop.xlane.xlu0 %1144
        %vm1146 = vcmp.eq.f32.partialorder %v1143, %v1145
        %v1147 = vsel %vm1146, %v1142, inf
        %1148 = vmin.xlane.f32.xlu0 %v1147
        %v1149 = vpop.xlane.xlu0 %1148
        %v1150 = vcvt.f32.s32 %v1149
        %v1151 = vcvt.f32.s32 %v1145
        %v1152 = vshll.u32 %v1151, 16
        %v1153 = vadd.s32 %v1152, %v1150
        %v1154 = vsel %vm555, %v956, 2147483647
        %v1155 = vand.u32 %v1154, 65535
        %v1156 = vshra.s32 %v1154, 16
        %v1157 = vcvt.s32.f32 %v1155
        %v1158 = vcvt.s32.f32 %v1156
        %1159 = vmin.xlane.f32.xlu0 %v1158
        %v1160 = vpop.xlane.xlu0 %1159
        %vm1161 = vcmp.eq.f32.partialorder %v1158, %v1160
        %v1162 = vsel %vm1161, %v1157, inf
        %1163 = vmin.xlane.f32.xlu0 %v1162
        %v1164 = vpop.xlane.xlu0 %1163
        %v1165 = vcvt.f32.s32 %v1164
        %v1166 = vcvt.f32.s32 %v1160
        %v1167 = vshll.u32 %v1166, 16
        %v1168 = vadd.s32 %v1167, %v1165
        %v1169 = vsel %vm555, %v957, 2147483647
        %v1170 = vand.u32 %v1169, 65535
        %v1171 = vshra.s32 %v1169, 16
        %v1172 = vcvt.s32.f32 %v1170
        %v1173 = vcvt.s32.f32 %v1171
        %1174 = vmin.xlane.f32.xlu0 %v1173
        %v1175 = vpop.xlane.xlu0 %1174
        %vm1176 = vcmp.eq.f32.partialorder %v1173, %v1175
        %v1177 = vsel %vm1176, %v1172, inf
        %1178 = vmin.xlane.f32.xlu0 %v1177
        %v1179 = vpop.xlane.xlu0 %1178
        %v1180 = vcvt.f32.s32 %v1179
        %v1181 = vcvt.f32.s32 %v1175
        %v1182 = vshll.u32 %v1181, 16
        %v1183 = vadd.s32 %v1182, %v1180
        %v1184 = vsel %vm555, %v958, 2147483647
        %v1185 = vand.u32 %v1184, 65535
        %v1186 = vshra.s32 %v1184, 16
        %v1187 = vcvt.s32.f32 %v1185
        %v1188 = vcvt.s32.f32 %v1186
        %1189 = vmin.xlane.f32.xlu0 %v1188
        %v1190 = vpop.xlane.xlu0 %1189
        %vm1191 = vcmp.eq.f32.partialorder %v1188, %v1190
        %v1192 = vsel %vm1191, %v1187, inf
        %1193 = vmin.xlane.f32.xlu0 %v1192
        %v1194 = vpop.xlane.xlu0 %1193
        %v1195 = vcvt.f32.s32 %v1194
        %v1196 = vcvt.f32.s32 %v1190
        %v1197 = vshll.u32 %v1196, 16
        %v1198 = vadd.s32 %v1197, %v1195
        %vm1199 = vcmp.eq.s32.totalorder %v878, %v973
        %vm1200 = vcmp.eq.s32.totalorder %v878, %v988
        %vm1201 = vcmp.eq.s32.totalorder %v878, %v1003
        %vm1202 = vcmp.eq.s32.totalorder %v878, %v1018
        %vm1203 = vcmp.eq.s32.totalorder %v878, %v1033
        %vm1204 = vcmp.eq.s32.totalorder %v878, %v1048
        %vm1205 = vcmp.eq.s32.totalorder %v878, %v1063
        %vm1206 = vcmp.eq.s32.totalorder %v878, %v1078
        %vm1207 = vcmp.eq.s32.totalorder %v878, %v1093
        %vm1208 = vcmp.eq.s32.totalorder %v878, %v1108
        %vm1209 = vcmp.eq.s32.totalorder %v878, %v1123
        %vm1210 = vcmp.eq.s32.totalorder %v878, %v1138
        %vm1211 = vcmp.eq.s32.totalorder %v878, %v1153
        %vm1212 = vcmp.eq.s32.totalorder %v878, %v1168
        %vm1213 = vcmp.eq.s32.totalorder %v878, %v1183
        %vm1214 = vcmp.eq.s32.totalorder %v878, %v1198
        %v1215 = vsel %vm1199, %v701, 0.0
        %v1216 = vsel %vm1200, %v703, 0.0
        %v1217 = vsel %vm1201, %v705, 0.0
        %v1218 = vsel %vm1202, %v707, 0.0
        %v1219 = vsel %vm1203, %v709, 0.0
        %v1220 = vsel %vm1204, %v711, 0.0
        %v1221 = vsel %vm1205, %v713, 0.0
        %v1222 = vsel %vm1206, %v715, 0.0
        %v1223 = vsel %vm1207, %v717, 0.0
        %v1224 = vsel %vm1208, %v719, 0.0
        %v1225 = vsel %vm1209, %v721, 0.0
        %v1226 = vsel %vm1210, %v723, 0.0
        %v1227 = vsel %vm1211, %v725, 0.0
        %v1228 = vsel %vm1212, %v727, 0.0
        %v1229 = vsel %vm1213, %v729, 0.0
        %v1230 = vsel %vm1214, %v731, 0.0
        %v1231 = vadd.f32 %v1215, 0.0
        %v1232 = vadd.f32 %v1216, 0.0
        %v1233 = vadd.f32 %v1217, 0.0
        %v1234 = vadd.f32 %v1218, 0.0
        %v1235 = vadd.f32 %v1219, 0.0
        %v1236 = vadd.f32 %v1220, 0.0
        %v1237 = vadd.f32 %v1221, 0.0
        %v1238 = vadd.f32 %v1222, 0.0
        %v1239 = vadd.f32 %v1223, 0.0
        %v1240 = vadd.f32 %v1224, 0.0
        %v1241 = vadd.f32 %v1225, 0.0
        %v1242 = vadd.f32 %v1226, 0.0
        %v1243 = vadd.f32 %v1227, 0.0
        %v1244 = vadd.f32 %v1228, 0.0
        %v1245 = vadd.f32 %v1229, 0.0
        %v1246 = vadd.f32 %v1230, 0.0
        %v1247 = vsel %vm1199, 1, 0
        %v1248 = vsel %vm1200, 1, 0
        %v1249 = vsel %vm1201, 1, 0
        %v1250 = vsel %vm1202, 1, 0
        %v1251 = vsel %vm1203, 1, 0
        %v1252 = vsel %vm1204, 1, 0
        %v1253 = vsel %vm1205, 1, 0
        %v1254 = vsel %vm1206, 1, 0
        %v1255 = vsel %vm1207, 1, 0
        %v1256 = vsel %vm1208, 1, 0
        %v1257 = vsel %vm1209, 1, 0
        %v1258 = vsel %vm1210, 1, 0
        %v1259 = vsel %vm1211, 1, 0
        %v1260 = vsel %vm1212, 1, 0
        %v1261 = vsel %vm1213, 1, 0
        %v1262 = vsel %vm1214, 1, 0
        %v1263 = vcvt.s32.f32 %v1247
        %v1264 = vcvt.s32.f32 %v1248
        %v1265 = vcvt.s32.f32 %v1249
        %v1266 = vcvt.s32.f32 %v1250
        %v1267 = vcvt.s32.f32 %v1251
        %v1268 = vcvt.s32.f32 %v1252
        %v1269 = vcvt.s32.f32 %v1253
        %v1270 = vcvt.s32.f32 %v1254
        %v1271 = vcvt.s32.f32 %v1255
        %v1272 = vcvt.s32.f32 %v1256
        %v1273 = vcvt.s32.f32 %v1257
        %v1274 = vcvt.s32.f32 %v1258
        %v1275 = vcvt.s32.f32 %v1259
        %v1276 = vcvt.s32.f32 %v1260
        %v1277 = vcvt.s32.f32 %v1261
        %v1278 = vcvt.s32.f32 %v1262
        %v1279 = vadd.f32 %v1263, 0.0
        %v1280 = vadd.f32 %v1264, 0.0
        %v1281 = vadd.f32 %v1265, 0.0
        %v1282 = vadd.f32 %v1266, 0.0
        %v1283 = vadd.f32 %v1267, 0.0
        %v1284 = vadd.f32 %v1268, 0.0
        %v1285 = vadd.f32 %v1269, 0.0
        %v1286 = vadd.f32 %v1270, 0.0
        %v1287 = vadd.f32 %v1271, 0.0
        %v1288 = vadd.f32 %v1272, 0.0
        %v1289 = vadd.f32 %v1273, 0.0
        %v1290 = vadd.f32 %v1274, 0.0
        %v1291 = vadd.f32 %v1275, 0.0
        %v1292 = vadd.f32 %v1276, 0.0
        %v1293 = vadd.f32 %v1277, 0.0
        %v1294 = vadd.f32 %v1278, 0.0
        %v1295 = vsel %vm1199, -1.0, %v701
        %v1296 = vsel %vm1200, -1.0, %v703
        %v1297 = vsel %vm1201, -1.0, %v705
        %v1298 = vsel %vm1202, -1.0, %v707
        %v1299 = vsel %vm1203, -1.0, %v709
        %v1300 = vsel %vm1204, -1.0, %v711
        %v1301 = vsel %vm1205, -1.0, %v713
        %v1302 = vsel %vm1206, -1.0, %v715
        %v1303 = vsel %vm1207, -1.0, %v717
        %v1304 = vsel %vm1208, -1.0, %v719
        %v1305 = vsel %vm1209, -1.0, %v721
        %v1306 = vsel %vm1210, -1.0, %v723
        %v1307 = vsel %vm1211, -1.0, %v725
        %v1308 = vsel %vm1212, -1.0, %v727
        %v1309 = vsel %vm1213, -1.0, %v729
        %v1310 = vsel %vm1214, -1.0, %v731
        %v1311 = vsel %vm555, %v1295, -inf
        %1312 = vmax.xlane.f32.xlu0 %v1311
        %v1313 = vpop.xlane.xlu0 %1312
        %v1314 = vsel %vm555, %v1296, -inf
        %1315 = vmax.xlane.f32.xlu0 %v1314
        %v1316 = vpop.xlane.xlu0 %1315
        %v1317 = vsel %vm555, %v1297, -inf
        %1318 = vmax.xlane.f32.xlu0 %v1317
        %v1319 = vpop.xlane.xlu0 %1318
        %v1320 = vsel %vm555, %v1298, -inf
        %1321 = vmax.xlane.f32.xlu0 %v1320
        %v1322 = vpop.xlane.xlu0 %1321
        %v1323 = vsel %vm555, %v1299, -inf
        %1324 = vmax.xlane.f32.xlu0 %v1323
        %v1325 = vpop.xlane.xlu0 %1324
        %v1326 = vsel %vm555, %v1300, -inf
        %1327 = vmax.xlane.f32.xlu0 %v1326
        %v1328 = vpop.xlane.xlu0 %1327
        %v1329 = vsel %vm555, %v1301, -inf
        %1330 = vmax.xlane.f32.xlu0 %v1329
        %v1331 = vpop.xlane.xlu0 %1330
        %v1332 = vsel %vm555, %v1302, -inf
        %1333 = vmax.xlane.f32.xlu0 %v1332
        %v1334 = vpop.xlane.xlu0 %1333
        %v1335 = vsel %vm555, %v1303, -inf
        %1336 = vmax.xlane.f32.xlu0 %v1335
        %v1337 = vpop.xlane.xlu0 %1336
        %v1338 = vsel %vm555, %v1304, -inf
        %1339 = vmax.xlane.f32.xlu0 %v1338
        %v1340 = vpop.xlane.xlu0 %1339
        %v1341 = vsel %vm555, %v1305, -inf
        %1342 = vmax.xlane.f32.xlu0 %v1341
        %v1343 = vpop.xlane.xlu0 %1342
        %v1344 = vsel %vm555, %v1306, -inf
        %1345 = vmax.xlane.f32.xlu0 %v1344
        %v1346 = vpop.xlane.xlu0 %1345
        %v1347 = vsel %vm555, %v1307, -inf
        %1348 = vmax.xlane.f32.xlu0 %v1347
        %v1349 = vpop.xlane.xlu0 %1348
        %v1350 = vsel %vm555, %v1308, -inf
        %1351 = vmax.xlane.f32.xlu0 %v1350
        %v1352 = vpop.xlane.xlu0 %1351
        %v1353 = vsel %vm555, %v1309, -inf
        %1354 = vmax.xlane.f32.xlu0 %v1353
        %v1355 = vpop.xlane.xlu0 %1354
        %v1356 = vsel %vm555, %v1310, -inf
        %1357 = vmax.xlane.f32.xlu0 %v1356
        %v1358 = vpop.xlane.xlu0 %1357
        %vm1359 = vcmp.eq.f32.partialorder %v1295, %v1313
        %vm1360 = vcmp.eq.f32.partialorder %v1296, %v1316
        %vm1361 = vcmp.eq.f32.partialorder %v1297, %v1319
        %vm1362 = vcmp.eq.f32.partialorder %v1298, %v1322
        %vm1363 = vcmp.eq.f32.partialorder %v1299, %v1325
        %vm1364 = vcmp.eq.f32.partialorder %v1300, %v1328
        %vm1365 = vcmp.eq.f32.partialorder %v1301, %v1331
        %vm1366 = vcmp.eq.f32.partialorder %v1302, %v1334
        %vm1367 = vcmp.eq.f32.partialorder %v1303, %v1337
        %vm1368 = vcmp.eq.f32.partialorder %v1304, %v1340
        %vm1369 = vcmp.eq.f32.partialorder %v1305, %v1343
        %vm1370 = vcmp.eq.f32.partialorder %v1306, %v1346
        %vm1371 = vcmp.eq.f32.partialorder %v1307, %v1349
        %vm1372 = vcmp.eq.f32.partialorder %v1308, %v1352
        %vm1373 = vcmp.eq.f32.partialorder %v1309, %v1355
        %vm1374 = vcmp.eq.f32.partialorder %v1310, %v1358
        %v1375 = vsel %vm1359, %v878, 8
        %v1376 = vsel %vm1360, %v878, 8
        %v1377 = vsel %vm1361, %v878, 8
        %v1378 = vsel %vm1362, %v878, 8
        %v1379 = vsel %vm1363, %v878, 8
        %v1380 = vsel %vm1364, %v878, 8
        %v1381 = vsel %vm1365, %v878, 8
        %v1382 = vsel %vm1366, %v878, 8
        %v1383 = vsel %vm1367, %v878, 8
        %v1384 = vsel %vm1368, %v878, 8
        %v1385 = vsel %vm1369, %v878, 8
        %v1386 = vsel %vm1370, %v878, 8
        %v1387 = vsel %vm1371, %v878, 8
        %v1388 = vsel %vm1372, %v878, 8
        %v1389 = vsel %vm1373, %v878, 8
        %v1390 = vsel %vm1374, %v878, 8
        %v1391 = vsel %vm555, %v1375, 2147483647
        %v1392 = vand.u32 %v1391, 65535
        %v1393 = vshra.s32 %v1391, 16
        %v1394 = vcvt.s32.f32 %v1392
        %v1395 = vcvt.s32.f32 %v1393
        %1396 = vmin.xlane.f32.xlu0 %v1395
        %v1397 = vpop.xlane.xlu0 %1396
        %vm1398 = vcmp.eq.f32.partialorder %v1395, %v1397
        %v1399 = vsel %vm1398, %v1394, inf
        %1400 = vmin.xlane.f32.xlu0 %v1399
        %v1401 = vpop.xlane.xlu0 %1400
        %v1402 = vcvt.f32.s32 %v1401
        %v1403 = vcvt.f32.s32 %v1397
        %v1404 = vshll.u32 %v1403, 16
        %v1405 = vadd.s32 %v1404, %v1402
        %v1406 = vsel %vm555, %v1376, 2147483647
        %v1407 = vand.u32 %v1406, 65535
        %v1408 = vshra.s32 %v1406, 16
        %v1409 = vcvt.s32.f32 %v1407
        %v1410 = vcvt.s32.f32 %v1408
        %1411 = vmin.xlane.f32.xlu0 %v1410
        %v1412 = vpop.xlane.xlu0 %1411
        %vm1413 = vcmp.eq.f32.partialorder %v1410, %v1412
        %v1414 = vsel %vm1413, %v1409, inf
        %1415 = vmin.xlane.f32.xlu0 %v1414
        %v1416 = vpop.xlane.xlu0 %1415
        %v1417 = vcvt.f32.s32 %v1416
        %v1418 = vcvt.f32.s32 %v1412
        %v1419 = vshll.u32 %v1418, 16
        %v1420 = vadd.s32 %v1419, %v1417
        %v1421 = vsel %vm555, %v1377, 2147483647
        %v1422 = vand.u32 %v1421, 65535
        %v1423 = vshra.s32 %v1421, 16
        %v1424 = vcvt.s32.f32 %v1422
        %v1425 = vcvt.s32.f32 %v1423
        %1426 = vmin.xlane.f32.xlu0 %v1425
        %v1427 = vpop.xlane.xlu0 %1426
        %vm1428 = vcmp.eq.f32.partialorder %v1425, %v1427
        %v1429 = vsel %vm1428, %v1424, inf
        %1430 = vmin.xlane.f32.xlu0 %v1429
        %v1431 = vpop.xlane.xlu0 %1430
        %v1432 = vcvt.f32.s32 %v1431
        %v1433 = vcvt.f32.s32 %v1427
        %v1434 = vshll.u32 %v1433, 16
        %v1435 = vadd.s32 %v1434, %v1432
        %v1436 = vsel %vm555, %v1378, 2147483647
        %v1437 = vand.u32 %v1436, 65535
        %v1438 = vshra.s32 %v1436, 16
        %v1439 = vcvt.s32.f32 %v1437
        %v1440 = vcvt.s32.f32 %v1438
        %1441 = vmin.xlane.f32.xlu0 %v1440
        %v1442 = vpop.xlane.xlu0 %1441
        %vm1443 = vcmp.eq.f32.partialorder %v1440, %v1442
        %v1444 = vsel %vm1443, %v1439, inf
        %1445 = vmin.xlane.f32.xlu0 %v1444
        %v1446 = vpop.xlane.xlu0 %1445
        %v1447 = vcvt.f32.s32 %v1446
        %v1448 = vcvt.f32.s32 %v1442
        %v1449 = vshll.u32 %v1448, 16
        %v1450 = vadd.s32 %v1449, %v1447
        %v1451 = vsel %vm555, %v1379, 2147483647
        %v1452 = vand.u32 %v1451, 65535
        %v1453 = vshra.s32 %v1451, 16
        %v1454 = vcvt.s32.f32 %v1452
        %v1455 = vcvt.s32.f32 %v1453
        %1456 = vmin.xlane.f32.xlu0 %v1455
        %v1457 = vpop.xlane.xlu0 %1456
        %vm1458 = vcmp.eq.f32.partialorder %v1455, %v1457
        %v1459 = vsel %vm1458, %v1454, inf
        %1460 = vmin.xlane.f32.xlu0 %v1459
        %v1461 = vpop.xlane.xlu0 %1460
        %v1462 = vcvt.f32.s32 %v1461
        %v1463 = vcvt.f32.s32 %v1457
        %v1464 = vshll.u32 %v1463, 16
        %v1465 = vadd.s32 %v1464, %v1462
        %v1466 = vsel %vm555, %v1380, 2147483647
        %v1467 = vand.u32 %v1466, 65535
        %v1468 = vshra.s32 %v1466, 16
        %v1469 = vcvt.s32.f32 %v1467
        %v1470 = vcvt.s32.f32 %v1468
        %1471 = vmin.xlane.f32.xlu0 %v1470
        %v1472 = vpop.xlane.xlu0 %1471
        %vm1473 = vcmp.eq.f32.partialorder %v1470, %v1472
        %v1474 = vsel %vm1473, %v1469, inf
        %1475 = vmin.xlane.f32.xlu0 %v1474
        %v1476 = vpop.xlane.xlu0 %1475
        %v1477 = vcvt.f32.s32 %v1476
        %v1478 = vcvt.f32.s32 %v1472
        %v1479 = vshll.u32 %v1478, 16
        %v1480 = vadd.s32 %v1479, %v1477
        %v1481 = vsel %vm555, %v1381, 2147483647
        %v1482 = vand.u32 %v1481, 65535
        %v1483 = vshra.s32 %v1481, 16
        %v1484 = vcvt.s32.f32 %v1482
        %v1485 = vcvt.s32.f32 %v1483
        %1486 = vmin.xlane.f32.xlu0 %v1485
        %v1487 = vpop.xlane.xlu0 %1486
        %vm1488 = vcmp.eq.f32.partialorder %v1485, %v1487
        %v1489 = vsel %vm1488, %v1484, inf
        %1490 = vmin.xlane.f32.xlu0 %v1489
        %v1491 = vpop.xlane.xlu0 %1490
        %v1492 = vcvt.f32.s32 %v1491
        %v1493 = vcvt.f32.s32 %v1487
        %v1494 = vshll.u32 %v1493, 16
        %v1495 = vadd.s32 %v1494, %v1492
        %v1496 = vsel %vm555, %v1382, 2147483647
        %v1497 = vand.u32 %v1496, 65535
        %v1498 = vshra.s32 %v1496, 16
        %v1499 = vcvt.s32.f32 %v1497
        %v1500 = vcvt.s32.f32 %v1498
        %1501 = vmin.xlane.f32.xlu0 %v1500
        %v1502 = vpop.xlane.xlu0 %1501
        %vm1503 = vcmp.eq.f32.partialorder %v1500, %v1502
        %v1504 = vsel %vm1503, %v1499, inf
        %1505 = vmin.xlane.f32.xlu0 %v1504
        %v1506 = vpop.xlane.xlu0 %1505
        %v1507 = vcvt.f32.s32 %v1506
        %v1508 = vcvt.f32.s32 %v1502
        %v1509 = vshll.u32 %v1508, 16
        %v1510 = vadd.s32 %v1509, %v1507
        %v1511 = vsel %vm555, %v1383, 2147483647
        %v1512 = vand.u32 %v1511, 65535
        %v1513 = vshra.s32 %v1511, 16
        %v1514 = vcvt.s32.f32 %v1512
        %v1515 = vcvt.s32.f32 %v1513
        %1516 = vmin.xlane.f32.xlu0 %v1515
        %v1517 = vpop.xlane.xlu0 %1516
        %vm1518 = vcmp.eq.f32.partialorder %v1515, %v1517
        %v1519 = vsel %vm1518, %v1514, inf
        %1520 = vmin.xlane.f32.xlu0 %v1519
        %v1521 = vpop.xlane.xlu0 %1520
        %v1522 = vcvt.f32.s32 %v1521
        %v1523 = vcvt.f32.s32 %v1517
        %v1524 = vshll.u32 %v1523, 16
        %v1525 = vadd.s32 %v1524, %v1522
        %v1526 = vsel %vm555, %v1384, 2147483647
        %v1527 = vand.u32 %v1526, 65535
        %v1528 = vshra.s32 %v1526, 16
        %v1529 = vcvt.s32.f32 %v1527
        %v1530 = vcvt.s32.f32 %v1528
        %1531 = vmin.xlane.f32.xlu0 %v1530
        %v1532 = vpop.xlane.xlu0 %1531
        %vm1533 = vcmp.eq.f32.partialorder %v1530, %v1532
        %v1534 = vsel %vm1533, %v1529, inf
        %1535 = vmin.xlane.f32.xlu0 %v1534
        %v1536 = vpop.xlane.xlu0 %1535
        %v1537 = vcvt.f32.s32 %v1536
        %v1538 = vcvt.f32.s32 %v1532
        %v1539 = vshll.u32 %v1538, 16
        %v1540 = vadd.s32 %v1539, %v1537
        %v1541 = vsel %vm555, %v1385, 2147483647
        %v1542 = vand.u32 %v1541, 65535
        %v1543 = vshra.s32 %v1541, 16
        %v1544 = vcvt.s32.f32 %v1542
        %v1545 = vcvt.s32.f32 %v1543
        %1546 = vmin.xlane.f32.xlu0 %v1545
        %v1547 = vpop.xlane.xlu0 %1546
        %vm1548 = vcmp.eq.f32.partialorder %v1545, %v1547
        %v1549 = vsel %vm1548, %v1544, inf
        %1550 = vmin.xlane.f32.xlu0 %v1549
        %v1551 = vpop.xlane.xlu0 %1550
        %v1552 = vcvt.f32.s32 %v1551
        %v1553 = vcvt.f32.s32 %v1547
        %v1554 = vshll.u32 %v1553, 16
        %v1555 = vadd.s32 %v1554, %v1552
        %v1556 = vsel %vm555, %v1386, 2147483647
        %v1557 = vand.u32 %v1556, 65535
        %v1558 = vshra.s32 %v1556, 16
        %v1559 = vcvt.s32.f32 %v1557
        %v1560 = vcvt.s32.f32 %v1558
        %1561 = vmin.xlane.f32.xlu0 %v1560
        %v1562 = vpop.xlane.xlu0 %1561
        %vm1563 = vcmp.eq.f32.partialorder %v1560, %v1562
        %v1564 = vsel %vm1563, %v1559, inf
        %1565 = vmin.xlane.f32.xlu0 %v1564
        %v1566 = vpop.xlane.xlu0 %1565
        %v1567 = vcvt.f32.s32 %v1566
        %v1568 = vcvt.f32.s32 %v1562
        %v1569 = vshll.u32 %v1568, 16
        %v1570 = vadd.s32 %v1569, %v1567
        %v1571 = vsel %vm555, %v1387, 2147483647
        %v1572 = vand.u32 %v1571, 65535
        %v1573 = vshra.s32 %v1571, 16
        %v1574 = vcvt.s32.f32 %v1572
        %v1575 = vcvt.s32.f32 %v1573
        %1576 = vmin.xlane.f32.xlu0 %v1575
        %v1577 = vpop.xlane.xlu0 %1576
        %vm1578 = vcmp.eq.f32.partialorder %v1575, %v1577
        %v1579 = vsel %vm1578, %v1574, inf
        %1580 = vmin.xlane.f32.xlu0 %v1579
        %v1581 = vpop.xlane.xlu0 %1580
        %v1582 = vcvt.f32.s32 %v1581
        %v1583 = vcvt.f32.s32 %v1577
        %v1584 = vshll.u32 %v1583, 16
        %v1585 = vadd.s32 %v1584, %v1582
        %v1586 = vsel %vm555, %v1388, 2147483647
        %v1587 = vand.u32 %v1586, 65535
        %v1588 = vshra.s32 %v1586, 16
        %v1589 = vcvt.s32.f32 %v1587
        %v1590 = vcvt.s32.f32 %v1588
        %1591 = vmin.xlane.f32.xlu0 %v1590
        %v1592 = vpop.xlane.xlu0 %1591
        %vm1593 = vcmp.eq.f32.partialorder %v1590, %v1592
        %v1594 = vsel %vm1593, %v1589, inf
        %1595 = vmin.xlane.f32.xlu0 %v1594
        %v1596 = vpop.xlane.xlu0 %1595
        %v1597 = vcvt.f32.s32 %v1596
        %v1598 = vcvt.f32.s32 %v1592
        %v1599 = vshll.u32 %v1598, 16
        %v1600 = vadd.s32 %v1599, %v1597
        %v1601 = vsel %vm555, %v1389, 2147483647
        %v1602 = vand.u32 %v1601, 65535
        %v1603 = vshra.s32 %v1601, 16
        %v1604 = vcvt.s32.f32 %v1602
        %v1605 = vcvt.s32.f32 %v1603
        %1606 = vmin.xlane.f32.xlu0 %v1605
        %v1607 = vpop.xlane.xlu0 %1606
        %vm1608 = vcmp.eq.f32.partialorder %v1605, %v1607
        %v1609 = vsel %vm1608, %v1604, inf
        %1610 = vmin.xlane.f32.xlu0 %v1609
        %v1611 = vpop.xlane.xlu0 %1610
        %v1612 = vcvt.f32.s32 %v1611
        %v1613 = vcvt.f32.s32 %v1607
        %v1614 = vshll.u32 %v1613, 16
        %v1615 = vadd.s32 %v1614, %v1612
        %v1616 = vsel %vm555, %v1390, 2147483647
        %v1617 = vand.u32 %v1616, 65535
        %v1618 = vshra.s32 %v1616, 16
        %v1619 = vcvt.s32.f32 %v1617
        %v1620 = vcvt.s32.f32 %v1618
        %1621 = vmin.xlane.f32.xlu0 %v1620
        %v1622 = vpop.xlane.xlu0 %1621
        %vm1623 = vcmp.eq.f32.partialorder %v1620, %v1622
        %v1624 = vsel %vm1623, %v1619, inf
        %1625 = vmin.xlane.f32.xlu0 %v1624
        %v1626 = vpop.xlane.xlu0 %1625
        %v1627 = vcvt.f32.s32 %v1626
        %v1628 = vcvt.f32.s32 %v1622
        %v1629 = vshll.u32 %v1628, 16
        %v1630 = vadd.s32 %v1629, %v1627
        %vm1631 = vcmp.eq.s32.totalorder %v878, %v1405
        %vm1632 = vcmp.eq.s32.totalorder %v878, %v1420
        %vm1633 = vcmp.eq.s32.totalorder %v878, %v1435
        %vm1634 = vcmp.eq.s32.totalorder %v878, %v1450
        %vm1635 = vcmp.eq.s32.totalorder %v878, %v1465
        %vm1636 = vcmp.eq.s32.totalorder %v878, %v1480
        %vm1637 = vcmp.eq.s32.totalorder %v878, %v1495
        %vm1638 = vcmp.eq.s32.totalorder %v878, %v1510
        %vm1639 = vcmp.eq.s32.totalorder %v878, %v1525
        %vm1640 = vcmp.eq.s32.totalorder %v878, %v1540
        %vm1641 = vcmp.eq.s32.totalorder %v878, %v1555
        %vm1642 = vcmp.eq.s32.totalorder %v878, %v1570
        %vm1643 = vcmp.eq.s32.totalorder %v878, %v1585
        %vm1644 = vcmp.eq.s32.totalorder %v878, %v1600
        %vm1645 = vcmp.eq.s32.totalorder %v878, %v1615
        %vm1646 = vcmp.eq.s32.totalorder %v878, %v1630
        %v1647 = vsel %vm1631, %v701, 0.0
        %v1648 = vsel %vm1632, %v703, 0.0
        %v1649 = vsel %vm1633, %v705, 0.0
        %v1650 = vsel %vm1634, %v707, 0.0
        %v1651 = vsel %vm1635, %v709, 0.0
        %v1652 = vsel %vm1636, %v711, 0.0
        %v1653 = vsel %vm1637, %v713, 0.0
        %v1654 = vsel %vm1638, %v715, 0.0
        %v1655 = vsel %vm1639, %v717, 0.0
        %v1656 = vsel %vm1640, %v719, 0.0
        %v1657 = vsel %vm1641, %v721, 0.0
        %v1658 = vsel %vm1642, %v723, 0.0
        %v1659 = vsel %vm1643, %v725, 0.0
        %v1660 = vsel %vm1644, %v727, 0.0
        %v1661 = vsel %vm1645, %v729, 0.0
        %v1662 = vsel %vm1646, %v731, 0.0
        %v1663 = vadd.f32 %v1231, %v1647
        %v1664 = vadd.f32 %v1232, %v1648
        %v1665 = vadd.f32 %v1233, %v1649
        %v1666 = vadd.f32 %v1234, %v1650
        %v1667 = vadd.f32 %v1235, %v1651
        %v1668 = vadd.f32 %v1236, %v1652
        %v1669 = vadd.f32 %v1237, %v1653
        %v1670 = vadd.f32 %v1238, %v1654
        %v1671 = vadd.f32 %v1239, %v1655
        %v1672 = vadd.f32 %v1240, %v1656
        %v1673 = vadd.f32 %v1241, %v1657
        %v1674 = vadd.f32 %v1242, %v1658
        %v1675 = vadd.f32 %v1243, %v1659
        %v1676 = vadd.f32 %v1244, %v1660
        %v1677 = vadd.f32 %v1245, %v1661
        %v1678 = vadd.f32 %v1246, %v1662
        %v1679 = vsel %vm1631, 1, 0
        %v1680 = vsel %vm1632, 1, 0
        %v1681 = vsel %vm1633, 1, 0
        %v1682 = vsel %vm1634, 1, 0
        %v1683 = vsel %vm1635, 1, 0
        %v1684 = vsel %vm1636, 1, 0
        %v1685 = vsel %vm1637, 1, 0
        %v1686 = vsel %vm1638, 1, 0
        %v1687 = vsel %vm1639, 1, 0
        %v1688 = vsel %vm1640, 1, 0
        %v1689 = vsel %vm1641, 1, 0
        %v1690 = vsel %vm1642, 1, 0
        %v1691 = vsel %vm1643, 1, 0
        %v1692 = vsel %vm1644, 1, 0
        %v1693 = vsel %vm1645, 1, 0
        %v1694 = vsel %vm1646, 1, 0
        %v1695 = vcvt.s32.f32 %v1679
        %v1696 = vcvt.s32.f32 %v1680
        %v1697 = vcvt.s32.f32 %v1681
        %v1698 = vcvt.s32.f32 %v1682
        %v1699 = vcvt.s32.f32 %v1683
        %v1700 = vcvt.s32.f32 %v1684
        %v1701 = vcvt.s32.f32 %v1685
        %v1702 = vcvt.s32.f32 %v1686
        %v1703 = vcvt.s32.f32 %v1687
        %v1704 = vcvt.s32.f32 %v1688
        %v1705 = vcvt.s32.f32 %v1689
        %v1706 = vcvt.s32.f32 %v1690
        %v1707 = vcvt.s32.f32 %v1691
        %v1708 = vcvt.s32.f32 %v1692
        %v1709 = vcvt.s32.f32 %v1693
        %v1710 = vcvt.s32.f32 %v1694
        %v1711 = vadd.f32 %v1279, %v1695
        %v1712 = vadd.f32 %v1280, %v1696
        %v1713 = vadd.f32 %v1281, %v1697
        %v1714 = vadd.f32 %v1282, %v1698
        %v1715 = vadd.f32 %v1283, %v1699
        %v1716 = vadd.f32 %v1284, %v1700
        %v1717 = vadd.f32 %v1285, %v1701
        %v1718 = vadd.f32 %v1286, %v1702
        %v1719 = vadd.f32 %v1287, %v1703
        %v1720 = vadd.f32 %v1288, %v1704
        %v1721 = vadd.f32 %v1289, %v1705
        %v1722 = vadd.f32 %v1290, %v1706
        %v1723 = vadd.f32 %v1291, %v1707
        %v1724 = vadd.f32 %v1292, %v1708
        %v1725 = vadd.f32 %v1293, %v1709
        %v1726 = vadd.f32 %v1294, %v1710
        %1727 = vst.msk [vmem:[%s320] sm:$0xff] %vm555, %v1711
        %1728 = vst.msk [vmem:[%s320 + $0x8] sm:$0xff] %vm555, %v1712
        %1729 = vst.msk [vmem:[%s320 + $0x10] sm:$0xff] %vm555, %v1713
        %1730 = vst.msk [vmem:[%s320 + $0x18] sm:$0xff] %vm555, %v1714
        %1731 = vst.msk [vmem:[%s320 + $0x20] sm:$0xff] %vm555, %v1715
        %1732 = vst.msk [vmem:[%s320 + $0x28] sm:$0xff] %vm555, %v1716
        %1733 = vst.msk [vmem:[%s320 + $0x30] sm:$0xff] %vm555, %v1717
        %1734 = vst.msk [vmem:[%s320 + $0x38] sm:$0xff] %vm555, %v1718
        %1735 = vst.msk [vmem:[%s320 + $0x40] sm:$0xff] %vm555, %v1719
        %1736 = vst.msk [vmem:[%s320 + $0x48] sm:$0xff] %vm555, %v1720
        %1737 = vst.msk [vmem:[%s320 + $0x50] sm:$0xff] %vm555, %v1721
        %1738 = vst.msk [vmem:[%s320 + $0x58] sm:$0xff] %vm555, %v1722
        %1739 = vst.msk [vmem:[%s320 + $0x60] sm:$0xff] %vm555, %v1723
        %1740 = vst.msk [vmem:[%s320 + $0x68] sm:$0xff] %vm555, %v1724
        %1741 = vst.msk [vmem:[%s320 + $0x70] sm:$0xff] %vm555, %v1725
        %1742 = vst.msk [vmem:[%s320 + $0x78] sm:$0xff] %vm555, %v1726
        %v1743 = vld [vmem:[%s4] sm:$0xff]
        %v1744 = vld [vmem:[#allocation2] sm:$0xf]
        %v1745 = vld [vmem:[#allocation2 + $0x4] sm:$0xf]
        %v1746 = vld [vmem:[#allocation2 + $0x8] sm:$0xf]
        %v1747 = vld [vmem:[#allocation2 + $0xc] sm:$0xf]
        %v1748 = vld [vmem:[#allocation2 + $0x10] sm:$0xf]
        %v1749 = vld [vmem:[#allocation2 + $0x14] sm:$0xf]
        %v1750 = vld [vmem:[#allocation2 + $0x18] sm:$0xf]
        %v1751 = vld [vmem:[#allocation2 + $0x1c] sm:$0xf]
        %v1752 = vld [vmem:[#allocation2 + $0x20] sm:$0xf]
        %v1753 = vld [vmem:[#allocation2 + $0x24] sm:$0xf]
        %v1754 = vld [vmem:[#allocation2 + $0x28] sm:$0xf]
        %v1755 = vld [vmem:[#allocation2 + $0x2c] sm:$0xf]
        %v1756 = vld [vmem:[#allocation2 + $0x30] sm:$0xf]
        %v1757 = vld [vmem:[#allocation2 + $0x34] sm:$0xf]
        %v1758 = vld [vmem:[#allocation2 + $0x38] sm:$0xf]
        %v1759 = vld [vmem:[#allocation2 + $0x3c] sm:$0xf]
        %v1760 = vlaneseq
        %v1761 = vshrl.u32 %v1760, 7
        %v1762 = vsub.s32 0, %v1761
        %v1763 = vrot.slane %v1743, %v1762
        %v1780 = vunpack.c.l.b16 %v1744
        %v1781 = vunpack.c.l.b16 %v1745
        %v1782 = vunpack.c.l.b16 %v1746
        %v1783 = vunpack.c.l.b16 %v1747
        %v1784 = vunpack.c.l.b16 %v1748
        %v1785 = vunpack.c.l.b16 %v1749
        %v1786 = vunpack.c.l.b16 %v1750
        %v1787 = vunpack.c.l.b16 %v1751
        %v1788 = vunpack.c.l.b16 %v1752
        %v1789 = vunpack.c.l.b16 %v1753
        %v1790 = vunpack.c.l.b16 %v1754
        %v1791 = vunpack.c.l.b16 %v1755
        %v1792 = vunpack.c.l.b16 %v1756
        %v1793 = vunpack.c.l.b16 %v1757
        %v1794 = vunpack.c.l.b16 %v1758
        %v1795 = vunpack.c.l.b16 %v1759
        %v1796 = vpack.c.b16 %v1781, %v1780
        %v1797 = vpack.c.b16 %v1783, %v1782
        %v1798 = vpack.c.b16 %v1785, %v1784
        %v1799 = vpack.c.b16 %v1787, %v1786
        %v1800 = vpack.c.b16 %v1789, %v1788
        %v1801 = vpack.c.b16 %v1791, %v1790
        %v1802 = vpack.c.b16 %v1793, %v1792
        %v1803 = vpack.c.b16 %v1795, %v1794
        %1812 = vmatprep.subr.bf16.mxu0 0
        %1813 = vmatpush1.bf16.msra.mxu0 %v1796
        %1814 = vmatprep.subr.bf16.mxu0 0
        %1815 = vmatpush1.bf16.msra.mxu0 %v1797
        %1816 = vmatprep.subr.bf16.mxu0 0
        %1817 = vmatpush1.bf16.msra.mxu0 %v1798
        %1818 = vmatprep.subr.bf16.mxu0 0
        %1819 = vmatpush1.bf16.msra.mxu0 %v1799
        %1820 = vmatprep.subr.bf16.mxu0 0
        %1821 = vmatpush1.bf16.msra.mxu0 %v1800
        %1822 = vmatprep.subr.bf16.mxu0 0
        %1823 = vmatpush1.bf16.msra.mxu0 %v1801
        %1824 = vmatprep.subr.bf16.mxu0 0
        %1825 = vmatpush1.bf16.msra.mxu0 %v1802
        %1826 = vmatprep.subr.bf16.mxu0 0
        %1827 = vmatpush1.bf16.msra.mxu0 %v1803
        %1828 = vmatprep.subr.bf16.mxu0 0
        %1829 = vmatpush1.bf16.msra.mxu0 0
        %1830 = vmatprep.subr.bf16.mxu0 0
        %1831 = vmatpush1.bf16.msra.mxu0 0
        %1832 = vmatprep.subr.bf16.mxu0 0
        %1833 = vmatpush1.bf16.msra.mxu0 0
        %1834 = vmatprep.subr.bf16.mxu0 0
        %1835 = vmatpush1.bf16.msra.mxu0 0
        %1836 = vmatprep.subr.bf16.mxu0 0
        %1837 = vmatpush1.bf16.msra.mxu0 0
        %1838 = vmatprep.subr.bf16.mxu0 0
        %1839 = vmatpush1.bf16.msra.mxu0 0
        %1840 = vmatprep.subr.bf16.mxu0 0
        %1841 = vmatpush1.bf16.msra.mxu0 0
        %1842 = vmatprep.subr.bf16.mxu0 0
        %1843 = vmatpush1.bf16.msra.mxu0 0
        %1844 = vmatprep.mubr.bf16.mxu0 0
        %1845 = vmatmul.mubr.bf16.gmra.mrb[0].mxu0 %v394
        %v1846 = vpop.f32.mrb[0].mxu0
        %v1847 = vadd.f32 %v1763, %v1846
        %v1848 = vpop.f32.mrb[0].mxu0
        %v1849 = vpop.f32.mrb[0].mxu0
        %v1850 = vadd.f32 %v1763, %v1849
        %v1851 = vpop.f32.mrb[0].mxu0
        %1852 = vmatprep.mubr.bf16.mxu0 0
        %1853 = vmatmul.mubr.bf16.gmra.mrb[0].mxu0 %v395
        %v1854 = vpop.f32.mrb[0].mxu0
        %v1855 = vadd.f32 %v1763, %v1854
        %v1856 = vpop.f32.mrb[0].mxu0
        %v1857 = vpop.f32.mrb[0].mxu0
        %v1858 = vadd.f32 %v1763, %v1857
        %v1859 = vpop.f32.mrb[0].mxu0
        %1860 = vmatprep.mubr.bf16.mxu0 0
        %1861 = vmatmul.mubr.bf16.gmra.mrb[0].mxu0 %v396
        %v1862 = vpop.f32.mrb[0].mxu0
        %v1863 = vadd.f32 %v1763, %v1862
        %v1864 = vpop.f32.mrb[0].mxu0
        %v1865 = vpop.f32.mrb[0].mxu0
        %v1866 = vadd.f32 %v1763, %v1865
        %v1867 = vpop.f32.mrb[0].mxu0
        %1868 = vmatprep.mubr.bf16.mxu0 0
        %1869 = vmatmul.mubr.bf16.gmra.mrb[0].mxu0 %v397
        %v1870 = vpop.f32.mrb[0].mxu0
        %v1871 = vadd.f32 %v1763, %v1870
        %v1872 = vpop.f32.mrb[0].mxu0
        %v1873 = vpop.f32.mrb[0].mxu0
        %v1874 = vadd.f32 %v1763, %v1873
        %v1875 = vpop.f32.mrb[0].mxu0
        %1876 = vmatprep.mubr.bf16.mxu0 0
        %1877 = vmatmul.mubr.bf16.gmra.mrb[0].mxu0 %v398
        %v1878 = vpop.f32.mrb[0].mxu0
        %v1879 = vadd.f32 %v1763, %v1878
        %v1880 = vpop.f32.mrb[0].mxu0
        %v1881 = vpop.f32.mrb[0].mxu0
        %v1882 = vadd.f32 %v1763, %v1881
        %v1883 = vpop.f32.mrb[0].mxu0
        %1884 = vmatprep.mubr.bf16.mxu0 0
        %1885 = vmatmul.mubr.bf16.gmra.mrb[0].mxu0 %v399
        %v1886 = vpop.f32.mrb[0].mxu0
        %v1887 = vadd.f32 %v1763, %v1886
        %v1888 = vpop.f32.mrb[0].mxu0
        %v1889 = vpop.f32.mrb[0].mxu0
        %v1890 = vadd.f32 %v1763, %v1889
        %v1891 = vpop.f32.mrb[0].mxu0
        %1892 = vmatprep.mubr.bf16.mxu0 0
        %1893 = vmatmul.mubr.bf16.gmra.mrb[0].mxu0 %v400
        %v1894 = vpop.f32.mrb[0].mxu0
        %v1895 = vadd.f32 %v1763, %v1894
        %v1896 = vpop.f32.mrb[0].mxu0
        %v1897 = vpop.f32.mrb[0].mxu0
        %v1898 = vadd.f32 %v1763, %v1897
        %v1899 = vpop.f32.mrb[0].mxu0
        %1900 = vmatprep.mubr.bf16.mxu0 0
        %1901 = vmatmul.mubr.bf16.gmra.mrb[0].mxu0 %v401
        %v1902 = vpop.f32.mrb[0].mxu0
        %v1903 = vadd.f32 %v1763, %v1902
        %v1904 = vpop.f32.mrb[0].mxu0
        %v1905 = vpop.f32.mrb[0].mxu0
        %v1906 = vadd.f32 %v1763, %v1905
        %v1907 = vpop.f32.mrb[0].mxu0
        %1908 = vdwg.mxu0
        %1910 = vset.pattern.permute.xlu0 0
        %1911 = vperm.xlu0 %1910, %v1663
        %v1912 = vpop.permute.xlu0 %1911
        %1915 = vset.pattern.permute.xlu0 0
        %1916 = vperm.xlu0 %1915, %v1664
        %v1917 = vpop.permute.xlu0 %1916
        %1920 = vset.pattern.permute.xlu0 0
        %1921 = vperm.xlu0 %1920, %v1665
        %v1922 = vpop.permute.xlu0 %1921
        %1925 = vset.pattern.permute.xlu0 0
        %1926 = vperm.xlu0 %1925, %v1666
        %v1927 = vpop.permute.xlu0 %1926
        %1930 = vset.pattern.permute.xlu0 0
        %1931 = vperm.xlu0 %1930, %v1667
        %v1932 = vpop.permute.xlu0 %1931
        %1935 = vset.pattern.permute.xlu0 0
        %1936 = vperm.xlu0 %1935, %v1668
        %v1937 = vpop.permute.xlu0 %1936
        %1940 = vset.pattern.permute.xlu0 0
        %1941 = vperm.xlu0 %1940, %v1669
        %v1942 = vpop.permute.xlu0 %1941
        %1945 = vset.pattern.permute.xlu0 0
        %1946 = vperm.xlu0 %1945, %v1670
        %v1947 = vpop.permute.xlu0 %1946
        %1950 = vset.pattern.permute.xlu0 0
        %1951 = vperm.xlu0 %1950, %v1671
        %v1952 = vpop.permute.xlu0 %1951
        %1955 = vset.pattern.permute.xlu0 0
        %1956 = vperm.xlu0 %1955, %v1672
        %v1957 = vpop.permute.xlu0 %1956
        %1960 = vset.pattern.permute.xlu0 0
        %1961 = vperm.xlu0 %1960, %v1673
        %v1962 = vpop.permute.xlu0 %1961
        %1965 = vset.pattern.permute.xlu0 0
        %1966 = vperm.xlu0 %1965, %v1674
        %v1967 = vpop.permute.xlu0 %1966
        %1970 = vset.pattern.permute.xlu0 0
        %1971 = vperm.xlu0 %1970, %v1675
        %v1972 = vpop.permute.xlu0 %1971
        %1975 = vset.pattern.permute.xlu0 0
        %1976 = vperm.xlu0 %1975, %v1676
        %v1977 = vpop.permute.xlu0 %1976
        %1980 = vset.pattern.permute.xlu0 0
        %1981 = vperm.xlu0 %1980, %v1677
        %v1982 = vpop.permute.xlu0 %1981
        %1985 = vset.pattern.permute.xlu0 0
        %1986 = vperm.xlu0 %1985, %v1678
        %v1987 = vpop.permute.xlu0 %1986
        %v1989 = vmul.f32 %v1912, %v1847
        %v1990 = vmul.f32 %v1917, %v1850
        %v1991 = vmul.f32 %v1922, %v1855
        %v1992 = vmul.f32 %v1927, %v1858
        %v1993 = vmul.f32 %v1932, %v1863
        %v1994 = vmul.f32 %v1937, %v1866
        %v1995 = vmul.f32 %v1942, %v1871
        %v1996 = vmul.f32 %v1947, %v1874
        %v1997 = vmul.f32 %v1952, %v1879
        %v1998 = vmul.f32 %v1957, %v1882
        %v1999 = vmul.f32 %v1962, %v1887
        %v2000 = vmul.f32 %v1967, %v1890
        %v2001 = vmul.f32 %v1972, %v1895
        %v2002 = vmul.f32 %v1977, %v1898
        %v2003 = vmul.f32 %v1982, %v1903
        %v2004 = vmul.f32 %v1987, %v1906
        %v2005 = vadd.f32 %v1989, 0.0
        %v2006 = vadd.f32 %v1990, 0.0
        %v2007 = vadd.f32 %v1991, 0.0
        %v2008 = vadd.f32 %v1992, 0.0
        %v2009 = vadd.f32 %v1993, 0.0
        %v2010 = vadd.f32 %v1994, 0.0
        %v2011 = vadd.f32 %v1995, 0.0
        %v2012 = vadd.f32 %v1996, 0.0
        %v2013 = vadd.f32 %v1997, 0.0
        %v2014 = vadd.f32 %v1998, 0.0
        %v2015 = vadd.f32 %v1999, 0.0
        %v2016 = vadd.f32 %v2000, 0.0
        %v2017 = vadd.f32 %v2001, 0.0
        %v2018 = vadd.f32 %v2002, 0.0
        %v2019 = vadd.f32 %v2003, 0.0
        %v2020 = vadd.f32 %v2004, 0.0
        %s2021 = scalar_lea.vmem [#allocation2], 64
        %v2022 = vld [vmem:[%s2021] sm:$0xf]
        %v2023 = vld [vmem:[%s2021 + $0x4] sm:$0xf]
        %v2024 = vld [vmem:[%s2021 + $0x8] sm:$0xf]
        %v2025 = vld [vmem:[%s2021 + $0xc] sm:$0xf]
        %v2026 = vld [vmem:[%s2021 + $0x10] sm:$0xf]
        %v2027 = vld [vmem:[%s2021 + $0x14] sm:$0xf]
        %v2028 = vld [vmem:[%s2021 + $0x18] sm:$0xf]
        %v2029 = vld [vmem:[%s2021 + $0x1c] sm:$0xf]
        %v2030 = vld [vmem:[%s2021 + $0x20] sm:$0xf]
        %v2031 = vld [vmem:[%s2021 + $0x24] sm:$0xf]
        %v2032 = vld [vmem:[%s2021 + $0x28] sm:$0xf]
        %v2033 = vld [vmem:[%s2021 + $0x2c] sm:$0xf]
        %v2034 = vld [vmem:[%s2021 + $0x30] sm:$0xf]
        %v2035 = vld [vmem:[%s2021 + $0x34] sm:$0xf]
        %v2036 = vld [vmem:[%s2021 + $0x38] sm:$0xf]
        %v2037 = vld [vmem:[%s2021 + $0x3c] sm:$0xf]
        %v2038 = vlaneseq
        %v2039 = vshrl.u32 %v2038, 7
        %v2040 = vsub.s32 1, %v2039
        %v2041 = vrot.slane %v1743, %v2040
        %v2058 = vunpack.c.l.b16 %v2022
        %v2059 = vunpack.c.l.b16 %v2023
        %v2060 = vunpack.c.l.b16 %v2024
        %v2061 = vunpack.c.l.b16 %v2025
        %v2062 = vunpack.c.l.b16 %v2026
        %v2063 = vunpack.c.l.b16 %v2027
        %v2064 = vunpack.c.l.b16 %v2028
        %v2065 = vunpack.c.l.b16 %v2029
        %v2066 = vunpack.c.l.b16 %v2030
        %v2067 = vunpack.c.l.b16 %v2031
        %v2068 = vunpack.c.l.b16 %v2032
        %v2069 = vunpack.c.l.b16 %v2033
        %v2070 = vunpack.c.l.b16 %v2034
        %v2071 = vunpack.c.l.b16 %v2035
        %v2072 = vunpack.c.l.b16 %v2036
        %v2073 = vunpack.c.l.b16 %v2037
        %v2074 = vpack.c.b16 %v2059, %v2058
        %v2075 = vpack.c.b16 %v2061, %v2060
        %v2076 = vpack.c.b16 %v2063, %v2062
        %v2077 = vpack.c.b16 %v2065, %v2064
        %v2078 = vpack.c.b16 %v2067, %v2066
        %v2079 = vpack.c.b16 %v2069, %v2068
        %v2080 = vpack.c.b16 %v2071, %v2070
        %v2081 = vpack.c.b16 %v2073, %v2072
        %2090 = vmatprep.subr.bf16.mxu0 0
        %2091 = vmatpush1.bf16.msra.mxu0 %v2074
        %2092 = vmatprep.subr.bf16.mxu0 0
        %2093 = vmatpush1.bf16.msra.mxu0 %v2075
        %2094 = vmatprep.subr.bf16.mxu0 0
        %2095 = vmatpush1.bf16.msra.mxu0 %v2076
        %2096 = vmatprep.subr.bf16.mxu0 0
        %2097 = vmatpush1.bf16.msra.mxu0 %v2077
        %2098 = vmatprep.subr.bf16.mxu0 0
        %2099 = vmatpush1.bf16.msra.mxu0 %v2078
        %2100 = vmatprep.subr.bf16.mxu0 0
        %2101 = vmatpush1.bf16.msra.mxu0 %v2079
        %2102 = vmatprep.subr.bf16.mxu0 0
        %2103 = vmatpush1.bf16.msra.mxu0 %v2080
        %2104 = vmatprep.subr.bf16.mxu0 0
        %2105 = vmatpush1.bf16.msra.mxu0 %v2081
        %2106 = vmatprep.subr.bf16.mxu0 0
        %2107 = vmatpush1.bf16.msra.mxu0 0
        %2108 = vmatprep.subr.bf16.mxu0 0
        %2109 = vmatpush1.bf16.msra.mxu0 0
        %2110 = vmatprep.subr.bf16.mxu0 0
        %2111 = vmatpush1.bf16.msra.mxu0 0
        %2112 = vmatprep.subr.bf16.mxu0 0
        %2113 = vmatpush1.bf16.msra.mxu0 0
        %2114 = vmatprep.subr.bf16.mxu0 0
        %2115 = vmatpush1.bf16.msra.mxu0 0
        %2116 = vmatprep.subr.bf16.mxu0 0
        %2117 = vmatpush1.bf16.msra.mxu0 0
        %2118 = vmatprep.subr.bf16.mxu0 0
        %2119 = vmatpush1.bf16.msra.mxu0 0
        %2120 = vmatprep.subr.bf16.mxu0 0
        %2121 = vmatpush1.bf16.msra.mxu0 0
        %2122 = vmatprep.mubr.bf16.mxu0 0
        %2123 = vmatmul.mubr.bf16.gmra.mrb[0].mxu0 %v394
        %v2124 = vpop.f32.mrb[0].mxu0
        %v2125 = vadd.f32 %v2041, %v2124
        %v2126 = vpop.f32.mrb[0].mxu0
        %v2127 = vpop.f32.mrb[0].mxu0
        %v2128 = vadd.f32 %v2041, %v2127
        %v2129 = vpop.f32.mrb[0].mxu0
        %2130 = vmatprep.mubr.bf16.mxu0 0
        %2131 = vmatmul.mubr.bf16.gmra.mrb[0].mxu0 %v395
        %v2132 = vpop.f32.mrb[0].mxu0
        %v2133 = vadd.f32 %v2041, %v2132
        %v2134 = vpop.f32.mrb[0].mxu0
        %v2135 = vpop.f32.mrb[0].mxu0
        %v2136 = vadd.f32 %v2041, %v2135
        %v2137 = vpop.f32.mrb[0].mxu0
        %2138 = vmatprep.mubr.bf16.mxu0 0
        %2139 = vmatmul.mubr.bf16.gmra.mrb[0].mxu0 %v396
        %v2140 = vpop.f32.mrb[0].mxu0
        %v2141 = vadd.f32 %v2041, %v2140
        %v2142 = vpop.f32.mrb[0].mxu0
        %v2143 = vpop.f32.mrb[0].mxu0
        %v2144 = vadd.f32 %v2041, %v2143
        %v2145 = vpop.f32.mrb[0].mxu0
        %2146 = vmatprep.mubr.bf16.mxu0 0
        %2147 = vmatmul.mubr.bf16.gmra.mrb[0].mxu0 %v397
        %v2148 = vpop.f32.mrb[0].mxu0
        %v2149 = vadd.f32 %v2041, %v2148
        %v2150 = vpop.f32.mrb[0].mxu0
        %v2151 = vpop.f32.mrb[0].mxu0
        %v2152 = vadd.f32 %v2041, %v2151
        %v2153 = vpop.f32.mrb[0].mxu0
        %2154 = vmatprep.mubr.bf16.mxu0 0
        %2155 = vmatmul.mubr.bf16.gmra.mrb[0].mxu0 %v398
        %v2156 = vpop.f32.mrb[0].mxu0
        %v2157 = vadd.f32 %v2041, %v2156
        %v2158 = vpop.f32.mrb[0].mxu0
        %v2159 = vpop.f32.mrb[0].mxu0
        %v2160 = vadd.f32 %v2041, %v2159
        %v2161 = vpop.f32.mrb[0].mxu0
        %2162 = vmatprep.mubr.bf16.mxu0 0
        %2163 = vmatmul.mubr.bf16.gmra.mrb[0].mxu0 %v399
        %v2164 = vpop.f32.mrb[0].mxu0
        %v2165 = vadd.f32 %v2041, %v2164
        %v2166 = vpop.f32.mrb[0].mxu0
        %v2167 = vpop.f32.mrb[0].mxu0
        %v2168 = vadd.f32 %v2041, %v2167
        %v2169 = vpop.f32.mrb[0].mxu0
        %2170 = vmatprep.mubr.bf16.mxu0 0
        %2171 = vmatmul.mubr.bf16.gmra.mrb[0].mxu0 %v400
        %v2172 = vpop.f32.mrb[0].mxu0
        %v2173 = vadd.f32 %v2041, %v2172
        %v2174 = vpop.f32.mrb[0].mxu0
        %v2175 = vpop.f32.mrb[0].mxu0
        %v2176 = vadd.f32 %v2041, %v2175
        %v2177 = vpop.f32.mrb[0].mxu0
        %2178 = vmatprep.mubr.bf16.mxu0 0
        %2179 = vmatmul.mubr.bf16.gmra.mrb[0].mxu0 %v401
        %v2180 = vpop.f32.mrb[0].mxu0
        %v2181 = vadd.f32 %v2041, %v2180
        %v2182 = vpop.f32.mrb[0].mxu0
        %v2183 = vpop.f32.mrb[0].mxu0
        %v2184 = vadd.f32 %v2041, %v2183
        %v2185 = vpop.f32.mrb[0].mxu0
        %2186 = vdwg.mxu0
        %2187 = vset.pattern.permute.xlu0 1
        %2188 = vperm.xlu0 %2187, %v1663
        %v2189 = vpop.permute.xlu0 %2188
        %2191 = vset.pattern.permute.xlu0 1
        %2192 = vperm.xlu0 %2191, %v1664
        %v2193 = vpop.permute.xlu0 %2192
        %2195 = vset.pattern.permute.xlu0 1
        %2196 = vperm.xlu0 %2195, %v1665
        %v2197 = vpop.permute.xlu0 %2196
        %2199 = vset.pattern.permute.xlu0 1
        %2200 = vperm.xlu0 %2199, %v1666
        %v2201 = vpop.permute.xlu0 %2200
        %2203 = vset.pattern.permute.xlu0 1
        %2204 = vperm.xlu0 %2203, %v1667
        %v2205 = vpop.permute.xlu0 %2204
        %2207 = vset.pattern.permute.xlu0 1
        %2208 = vperm.xlu0 %2207, %v1668
        %v2209 = vpop.permute.xlu0 %2208
        %2211 = vset.pattern.permute.xlu0 1
        %2212 = vperm.xlu0 %2211, %v1669
        %v2213 = vpop.permute.xlu0 %2212
        %2215 = vset.pattern.permute.xlu0 1
        %2216 = vperm.xlu0 %2215, %v1670
        %v2217 = vpop.permute.xlu0 %2216
        %2219 = vset.pattern.permute.xlu0 1
        %2220 = vperm.xlu0 %2219, %v1671
        %v2221 = vpop.permute.xlu0 %2220
        %2223 = vset.pattern.permute.xlu0 1
        %2224 = vperm.xlu0 %2223, %v1672
        %v2225 = vpop.permute.xlu0 %2224
        %2227 = vset.pattern.permute.xlu0 1
        %2228 = vperm.xlu0 %2227, %v1673
        %v2229 = vpop.permute.xlu0 %2228
        %2231 = vset.pattern.permute.xlu0 1
        %2232 = vperm.xlu0 %2231, %v1674
        %v2233 = vpop.permute.xlu0 %2232
        %2235 = vset.pattern.permute.xlu0 1
        %2236 = vperm.xlu0 %2235, %v1675
        %v2237 = vpop.permute.xlu0 %2236
        %2239 = vset.pattern.permute.xlu0 1
        %2240 = vperm.xlu0 %2239, %v1676
        %v2241 = vpop.permute.xlu0 %2240
        %2243 = vset.pattern.permute.xlu0 1
        %2244 = vperm.xlu0 %2243, %v1677
        %v2245 = vpop.permute.xlu0 %2244
        %2247 = vset.pattern.permute.xlu0 1
        %2248 = vperm.xlu0 %2247, %v1678
        %v2249 = vpop.permute.xlu0 %2248
        %v2251 = vmul.f32 %v2189, %v2125
        %v2252 = vmul.f32 %v2193, %v2128
        %v2253 = vmul.f32 %v2197, %v2133
        %v2254 = vmul.f32 %v2201, %v2136
        %v2255 = vmul.f32 %v2205, %v2141
        %v2256 = vmul.f32 %v2209, %v2144
        %v2257 = vmul.f32 %v2213, %v2149
        %v2258 = vmul.f32 %v2217, %v2152
        %v2259 = vmul.f32 %v2221, %v2157
        %v2260 = vmul.f32 %v2225, %v2160
        %v2261 = vmul.f32 %v2229, %v2165
        %v2262 = vmul.f32 %v2233, %v2168
        %v2263 = vmul.f32 %v2237, %v2173
        %v2264 = vmul.f32 %v2241, %v2176
        %v2265 = vmul.f32 %v2245, %v2181
        %v2266 = vmul.f32 %v2249, %v2184
        %v2267 = vadd.f32 %v2005, %v2251
        %v2268 = vadd.f32 %v2006, %v2252
        %v2269 = vadd.f32 %v2007, %v2253
        %v2270 = vadd.f32 %v2008, %v2254
        %v2271 = vadd.f32 %v2009, %v2255
        %v2272 = vadd.f32 %v2010, %v2256
        %v2273 = vadd.f32 %v2011, %v2257
        %v2274 = vadd.f32 %v2012, %v2258
        %v2275 = vadd.f32 %v2013, %v2259
        %v2276 = vadd.f32 %v2014, %v2260
        %v2277 = vadd.f32 %v2015, %v2261
        %v2278 = vadd.f32 %v2016, %v2262
        %v2279 = vadd.f32 %v2017, %v2263
        %v2280 = vadd.f32 %v2018, %v2264
        %v2281 = vadd.f32 %v2019, %v2265
        %v2282 = vadd.f32 %v2020, %v2266
        %s2283 = scalar_lea.vmem [#allocation2], 128
        %v2284 = vld [vmem:[%s2283] sm:$0xf]
        %v2285 = vld [vmem:[%s2283 + $0x4] sm:$0xf]
        %v2286 = vld [vmem:[%s2283 + $0x8] sm:$0xf]
        %v2287 = vld [vmem:[%s2283 + $0xc] sm:$0xf]
        %v2288 = vld [vmem:[%s2283 + $0x10] sm:$0xf]
        %v2289 = vld [vmem:[%s2283 + $0x14] sm:$0xf]
        %v2290 = vld [vmem:[%s2283 + $0x18] sm:$0xf]
        %v2291 = vld [vmem:[%s2283 + $0x1c] sm:$0xf]
        %v2292 = vld [vmem:[%s2283 + $0x20] sm:$0xf]
        %v2293 = vld [vmem:[%s2283 + $0x24] sm:$0xf]
        %v2294 = vld [vmem:[%s2283 + $0x28] sm:$0xf]
        %v2295 = vld [vmem:[%s2283 + $0x2c] sm:$0xf]
        %v2296 = vld [vmem:[%s2283 + $0x30] sm:$0xf]
        %v2297 = vld [vmem:[%s2283 + $0x34] sm:$0xf]
        %v2298 = vld [vmem:[%s2283 + $0x38] sm:$0xf]
        %v2299 = vld [vmem:[%s2283 + $0x3c] sm:$0xf]
        %v2300 = vlaneseq
        %v2301 = vshrl.u32 %v2300, 7
        %v2302 = vsub.s32 2, %v2301
        %v2303 = vrot.slane %v1743, %v2302
        %v2320 = vunpack.c.l.b16 %v2284
        %v2321 = vunpack.c.l.b16 %v2285
        %v2322 = vunpack.c.l.b16 %v2286
        %v2323 = vunpack.c.l.b16 %v2287
        %v2324 = vunpack.c.l.b16 %v2288
        %v2325 = vunpack.c.l.b16 %v2289
        %v2326 = vunpack.c.l.b16 %v2290
        %v2327 = vunpack.c.l.b16 %v2291
        %v2328 = vunpack.c.l.b16 %v2292
        %v2329 = vunpack.c.l.b16 %v2293
        %v2330 = vunpack.c.l.b16 %v2294
        %v2331 = vunpack.c.l.b16 %v2295
        %v2332 = vunpack.c.l.b16 %v2296
        %v2333 = vunpack.c.l.b16 %v2297
        %v2334 = vunpack.c.l.b16 %v2298
        %v2335 = vunpack.c.l.b16 %v2299
        %v2336 = vpack.c.b16 %v2321, %v2320
        %v2337 = vpack.c.b16 %v2323, %v2322
        %v2338 = vpack.c.b16 %v2325, %v2324
        %v2339 = vpack.c.b16 %v2327, %v2326
        %v2340 = vpack.c.b16 %v2329, %v2328
        %v2341 = vpack.c.b16 %v2331, %v2330
        %v2342 = vpack.c.b16 %v2333, %v2332
        %v2343 = vpack.c.b16 %v2335, %v2334
        %2352 = vmatprep.subr.bf16.mxu0 0
        %2353 = vmatpush1.bf16.msra.mxu0 %v2336
        %2354 = vmatprep.subr.bf16.mxu0 0
        %2355 = vmatpush1.bf16.msra.mxu0 %v2337
        %2356 = vmatprep.subr.bf16.mxu0 0
        %2357 = vmatpush1.bf16.msra.mxu0 %v2338
        %2358 = vmatprep.subr.bf16.mxu0 0
        %2359 = vmatpush1.bf16.msra.mxu0 %v2339
        %2360 = vmatprep.subr.bf16.mxu0 0
        %2361 = vmatpush1.bf16.msra.mxu0 %v2340
        %2362 = vmatprep.subr.bf16.mxu0 0
        %2363 = vmatpush1.bf16.msra.mxu0 %v2341
        %2364 = vmatprep.subr.bf16.mxu0 0
        %2365 = vmatpush1.bf16.msra.mxu0 %v2342
        %2366 = vmatprep.subr.bf16.mxu0 0
        %2367 = vmatpush1.bf16.msra.mxu0 %v2343
        %2368 = vmatprep.subr.bf16.mxu0 0
        %2369 = vmatpush1.bf16.msra.mxu0 0
        %2370 = vmatprep.subr.bf16.mxu0 0
        %2371 = vmatpush1.bf16.msra.mxu0 0
        %2372 = vmatprep.subr.bf16.mxu0 0
        %2373 = vmatpush1.bf16.msra.mxu0 0
        %2374 = vmatprep.subr.bf16.mxu0 0
        %2375 = vmatpush1.bf16.msra.mxu0 0
        %2376 = vmatprep.subr.bf16.mxu0 0
        %2377 = vmatpush1.bf16.msra.mxu0 0
        %2378 = vmatprep.subr.bf16.mxu0 0
        %2379 = vmatpush1.bf16.msra.mxu0 0
        %2380 = vmatprep.subr.bf16.mxu0 0
        %2381 = vmatpush1.bf16.msra.mxu0 0
        %2382 = vmatprep.subr.bf16.mxu0 0
        %2383 = vmatpush1.bf16.msra.mxu0 0
        %2384 = vmatprep.mubr.bf16.mxu0 0
        %2385 = vmatmul.mubr.bf16.gmra.mrb[0].mxu0 %v394
        %v2386 = vpop.f32.mrb[0].mxu0
        %v2387 = vadd.f32 %v2303, %v2386
        %v2388 = vpop.f32.mrb[0].mxu0
        %v2389 = vpop.f32.mrb[0].mxu0
        %v2390 = vadd.f32 %v2303, %v2389
        %v2391 = vpop.f32.mrb[0].mxu0
        %2392 = vmatprep.mubr.bf16.mxu0 0
        %2393 = vmatmul.mubr.bf16.gmra.mrb[0].mxu0 %v395
        %v2394 = vpop.f32.mrb[0].mxu0
        %v2395 = vadd.f32 %v2303, %v2394
        %v2396 = vpop.f32.mrb[0].mxu0
        %v2397 = vpop.f32.mrb[0].mxu0
        %v2398 = vadd.f32 %v2303, %v2397
        %v2399 = vpop.f32.mrb[0].mxu0
        %2400 = vmatprep.mubr.bf16.mxu0 0
        %2401 = vmatmul.mubr.bf16.gmra.mrb[0].mxu0 %v396
        %v2402 = vpop.f32.mrb[0].mxu0
        %v2403 = vadd.f32 %v2303, %v2402
        %v2404 = vpop.f32.mrb[0].mxu0
        %v2405 = vpop.f32.mrb[0].mxu0
        %v2406 = vadd.f32 %v2303, %v2405
        %v2407 = vpop.f32.mrb[0].mxu0
        %2408 = vmatprep.mubr.bf16.mxu0 0
        %2409 = vmatmul.mubr.bf16.gmra.mrb[0].mxu0 %v397
        %v2410 = vpop.f32.mrb[0].mxu0
        %v2411 = vadd.f32 %v2303, %v2410
        %v2412 = vpop.f32.mrb[0].mxu0
        %v2413 = vpop.f32.mrb[0].mxu0
        %v2414 = vadd.f32 %v2303, %v2413
        %v2415 = vpop.f32.mrb[0].mxu0
        %2416 = vmatprep.mubr.bf16.mxu0 0
        %2417 = vmatmul.mubr.bf16.gmra.mrb[0].mxu0 %v398
        %v2418 = vpop.f32.mrb[0].mxu0
        %v2419 = vadd.f32 %v2303, %v2418
        %v2420 = vpop.f32.mrb[0].mxu0
        %v2421 = vpop.f32.mrb[0].mxu0
        %v2422 = vadd.f32 %v2303, %v2421
        %v2423 = vpop.f32.mrb[0].mxu0
        %2424 = vmatprep.mubr.bf16.mxu0 0
        %2425 = vmatmul.mubr.bf16.gmra.mrb[0].mxu0 %v399
        %v2426 = vpop.f32.mrb[0].mxu0
        %v2427 = vadd.f32 %v2303, %v2426
        %v2428 = vpop.f32.mrb[0].mxu0
        %v2429 = vpop.f32.mrb[0].mxu0
        %v2430 = vadd.f32 %v2303, %v2429
        %v2431 = vpop.f32.mrb[0].mxu0
        %2432 = vmatprep.mubr.bf16.mxu0 0
        %2433 = vmatmul.mubr.bf16.gmra.mrb[0].mxu0 %v400
        %v2434 = vpop.f32.mrb[0].mxu0
        %v2435 = vadd.f32 %v2303, %v2434
        %v2436 = vpop.f32.mrb[0].mxu0
        %v2437 = vpop.f32.mrb[0].mxu0
        %v2438 = vadd.f32 %v2303, %v2437
        %v2439 = vpop.f32.mrb[0].mxu0
        %2440 = vmatprep.mubr.bf16.mxu0 0
        %2441 = vmatmul.mubr.bf16.gmra.mrb[0].mxu0 %v401
        %v2442 = vpop.f32.mrb[0].mxu0
        %v2443 = vadd.f32 %v2303, %v2442
        %v2444 = vpop.f32.mrb[0].mxu0
        %v2445 = vpop.f32.mrb[0].mxu0
        %v2446 = vadd.f32 %v2303, %v2445
        %v2447 = vpop.f32.mrb[0].mxu0
        %2448 = vdwg.mxu0
        %2449 = vset.pattern.permute.xlu0 2
        %2450 = vperm.xlu0 %2449, %v1663
        %v2451 = vpop.permute.xlu0 %2450
        %2453 = vset.pattern.permute.xlu0 2
        %2454 = vperm.xlu0 %2453, %v1664
        %v2455 = vpop.permute.xlu0 %2454
        %2457 = vset.pattern.permute.xlu0 2
        %2458 = vperm.xlu0 %2457, %v1665
        %v2459 = vpop.permute.xlu0 %2458
        %2461 = vset.pattern.permute.xlu0 2
        %2462 = vperm.xlu0 %2461, %v1666
        %v2463 = vpop.permute.xlu0 %2462
        %2465 = vset.pattern.permute.xlu0 2
        %2466 = vperm.xlu0 %2465, %v1667
        %v2467 = vpop.permute.xlu0 %2466
        %2469 = vset.pattern.permute.xlu0 2
        %2470 = vperm.xlu0 %2469, %v1668
        %v2471 = vpop.permute.xlu0 %2470
        %2473 = vset.pattern.permute.xlu0 2
        %2474 = vperm.xlu0 %2473, %v1669
        %v2475 = vpop.permute.xlu0 %2474
        %2477 = vset.pattern.permute.xlu0 2
        %2478 = vperm.xlu0 %2477, %v1670
        %v2479 = vpop.permute.xlu0 %2478
        %2481 = vset.pattern.permute.xlu0 2
        %2482 = vperm.xlu0 %2481, %v1671
        %v2483 = vpop.permute.xlu0 %2482
        %2485 = vset.pattern.permute.xlu0 2
        %2486 = vperm.xlu0 %2485, %v1672
        %v2487 = vpop.permute.xlu0 %2486
        %2489 = vset.pattern.permute.xlu0 2
        %2490 = vperm.xlu0 %2489, %v1673
        %v2491 = vpop.permute.xlu0 %2490
        %2493 = vset.pattern.permute.xlu0 2
        %2494 = vperm.xlu0 %2493, %v1674
        %v2495 = vpop.permute.xlu0 %2494
        %2497 = vset.pattern.permute.xlu0 2
        %2498 = vperm.xlu0 %2497, %v1675
        %v2499 = vpop.permute.xlu0 %2498
        %2501 = vset.pattern.permute.xlu0 2
        %2502 = vperm.xlu0 %2501, %v1676
        %v2503 = vpop.permute.xlu0 %2502
        %2505 = vset.pattern.permute.xlu0 2
        %2506 = vperm.xlu0 %2505, %v1677
        %v2507 = vpop.permute.xlu0 %2506
        %2509 = vset.pattern.permute.xlu0 2
        %2510 = vperm.xlu0 %2509, %v1678
        %v2511 = vpop.permute.xlu0 %2510
        %v2513 = vmul.f32 %v2451, %v2387
        %v2514 = vmul.f32 %v2455, %v2390
        %v2515 = vmul.f32 %v2459, %v2395
        %v2516 = vmul.f32 %v2463, %v2398
        %v2517 = vmul.f32 %v2467, %v2403
        %v2518 = vmul.f32 %v2471, %v2406
        %v2519 = vmul.f32 %v2475, %v2411
        %v2520 = vmul.f32 %v2479, %v2414
        %v2521 = vmul.f32 %v2483, %v2419
        %v2522 = vmul.f32 %v2487, %v2422
        %v2523 = vmul.f32 %v2491, %v2427
        %v2524 = vmul.f32 %v2495, %v2430
        %v2525 = vmul.f32 %v2499, %v2435
        %v2526 = vmul.f32 %v2503, %v2438
        %v2527 = vmul.f32 %v2507, %v2443
        %v2528 = vmul.f32 %v2511, %v2446
        %v2529 = vadd.f32 %v2267, %v2513
        %v2530 = vadd.f32 %v2268, %v2514
        %v2531 = vadd.f32 %v2269, %v2515
        %v2532 = vadd.f32 %v2270, %v2516
        %v2533 = vadd.f32 %v2271, %v2517
        %v2534 = vadd.f32 %v2272, %v2518
        %v2535 = vadd.f32 %v2273, %v2519
        %v2536 = vadd.f32 %v2274, %v2520
        %v2537 = vadd.f32 %v2275, %v2521
        %v2538 = vadd.f32 %v2276, %v2522
        %v2539 = vadd.f32 %v2277, %v2523
        %v2540 = vadd.f32 %v2278, %v2524
        %v2541 = vadd.f32 %v2279, %v2525
        %v2542 = vadd.f32 %v2280, %v2526
        %v2543 = vadd.f32 %v2281, %v2527
        %v2544 = vadd.f32 %v2282, %v2528
        %s2545 = scalar_lea.vmem [#allocation2], 192
        %v2546 = vld [vmem:[%s2545] sm:$0xf]
        %v2547 = vld [vmem:[%s2545 + $0x4] sm:$0xf]
        %v2548 = vld [vmem:[%s2545 + $0x8] sm:$0xf]
        %v2549 = vld [vmem:[%s2545 + $0xc] sm:$0xf]
        %v2550 = vld [vmem:[%s2545 + $0x10] sm:$0xf]
        %v2551 = vld [vmem:[%s2545 + $0x14] sm:$0xf]
        %v2552 = vld [vmem:[%s2545 + $0x18] sm:$0xf]
        %v2553 = vld [vmem:[%s2545 + $0x1c] sm:$0xf]
        %v2554 = vld [vmem:[%s2545 + $0x20] sm:$0xf]
        %v2555 = vld [vmem:[%s2545 + $0x24] sm:$0xf]
        %v2556 = vld [vmem:[%s2545 + $0x28] sm:$0xf]
        %v2557 = vld [vmem:[%s2545 + $0x2c] sm:$0xf]
        %v2558 = vld [vmem:[%s2545 + $0x30] sm:$0xf]
        %v2559 = vld [vmem:[%s2545 + $0x34] sm:$0xf]
        %v2560 = vld [vmem:[%s2545 + $0x38] sm:$0xf]
        %v2561 = vld [vmem:[%s2545 + $0x3c] sm:$0xf]
        %v2562 = vlaneseq
        %v2563 = vshrl.u32 %v2562, 7
        %v2564 = vsub.s32 3, %v2563
        %v2565 = vrot.slane %v1743, %v2564
        %v2582 = vunpack.c.l.b16 %v2546
        %v2583 = vunpack.c.l.b16 %v2547
        %v2584 = vunpack.c.l.b16 %v2548
        %v2585 = vunpack.c.l.b16 %v2549
        %v2586 = vunpack.c.l.b16 %v2550
        %v2587 = vunpack.c.l.b16 %v2551
        %v2588 = vunpack.c.l.b16 %v2552
        %v2589 = vunpack.c.l.b16 %v2553
        %v2590 = vunpack.c.l.b16 %v2554
        %v2591 = vunpack.c.l.b16 %v2555
        %v2592 = vunpack.c.l.b16 %v2556
        %v2593 = vunpack.c.l.b16 %v2557
        %v2594 = vunpack.c.l.b16 %v2558
        %v2595 = vunpack.c.l.b16 %v2559
        %v2596 = vunpack.c.l.b16 %v2560
        %v2597 = vunpack.c.l.b16 %v2561
        %v2598 = vpack.c.b16 %v2583, %v2582
        %v2599 = vpack.c.b16 %v2585, %v2584
        %v2600 = vpack.c.b16 %v2587, %v2586
        %v2601 = vpack.c.b16 %v2589, %v2588
        %v2602 = vpack.c.b16 %v2591, %v2590
        %v2603 = vpack.c.b16 %v2593, %v2592
        %v2604 = vpack.c.b16 %v2595, %v2594
        %v2605 = vpack.c.b16 %v2597, %v2596
        %2614 = vmatprep.subr.bf16.mxu0 0
        %2615 = vmatpush1.bf16.msra.mxu0 %v2598
        %2616 = vmatprep.subr.bf16.mxu0 0
        %2617 = vmatpush1.bf16.msra.mxu0 %v2599
        %2618 = vmatprep.subr.bf16.mxu0 0
        %2619 = vmatpush1.bf16.msra.mxu0 %v2600
        %2620 = vmatprep.subr.bf16.mxu0 0
        %2621 = vmatpush1.bf16.msra.mxu0 %v2601
        %2622 = vmatprep.subr.bf16.mxu0 0
        %2623 = vmatpush1.bf16.msra.mxu0 %v2602
        %2624 = vmatprep.subr.bf16.mxu0 0
        %2625 = vmatpush1.bf16.msra.mxu0 %v2603
        %2626 = vmatprep.subr.bf16.mxu0 0
        %2627 = vmatpush1.bf16.msra.mxu0 %v2604
        %2628 = vmatprep.subr.bf16.mxu0 0
        %2629 = vmatpush1.bf16.msra.mxu0 %v2605
        %2630 = vmatprep.subr.bf16.mxu0 0
        %2631 = vmatpush1.bf16.msra.mxu0 0
        %2632 = vmatprep.subr.bf16.mxu0 0
        %2633 = vmatpush1.bf16.msra.mxu0 0
        %2634 = vmatprep.subr.bf16.mxu0 0
        %2635 = vmatpush1.bf16.msra.mxu0 0
        %2636 = vmatprep.subr.bf16.mxu0 0
        %2637 = vmatpush1.bf16.msra.mxu0 0
        %2638 = vmatprep.subr.bf16.mxu0 0
        %2639 = vmatpush1.bf16.msra.mxu0 0
        %2640 = vmatprep.subr.bf16.mxu0 0
        %2641 = vmatpush1.bf16.msra.mxu0 0
        %2642 = vmatprep.subr.bf16.mxu0 0
        %2643 = vmatpush1.bf16.msra.mxu0 0
        %2644 = vmatprep.subr.bf16.mxu0 0
        %2645 = vmatpush1.bf16.msra.mxu0 0
        %2646 = vmatprep.mubr.bf16.mxu0 0
        %2647 = vmatmul.mubr.bf16.gmra.mrb[0].mxu0 %v394
        %v2648 = vpop.f32.mrb[0].mxu0
        %v2649 = vadd.f32 %v2565, %v2648
        %v2650 = vpop.f32.mrb[0].mxu0
        %v2651 = vpop.f32.mrb[0].mxu0
        %v2652 = vadd.f32 %v2565, %v2651
        %v2653 = vpop.f32.mrb[0].mxu0
        %2654 = vmatprep.mubr.bf16.mxu0 0
        %2655 = vmatmul.mubr.bf16.gmra.mrb[0].mxu0 %v395
        %v2656 = vpop.f32.mrb[0].mxu0
        %v2657 = vadd.f32 %v2565, %v2656
        %v2658 = vpop.f32.mrb[0].mxu0
        %v2659 = vpop.f32.mrb[0].mxu0
        %v2660 = vadd.f32 %v2565, %v2659
        %v2661 = vpop.f32.mrb[0].mxu0
        %2662 = vmatprep.mubr.bf16.mxu0 0
        %2663 = vmatmul.mubr.bf16.gmra.mrb[0].mxu0 %v396
        %v2664 = vpop.f32.mrb[0].mxu0
        %v2665 = vadd.f32 %v2565, %v2664
        %v2666 = vpop.f32.mrb[0].mxu0
        %v2667 = vpop.f32.mrb[0].mxu0
        %v2668 = vadd.f32 %v2565, %v2667
        %v2669 = vpop.f32.mrb[0].mxu0
        %2670 = vmatprep.mubr.bf16.mxu0 0
        %2671 = vmatmul.mubr.bf16.gmra.mrb[0].mxu0 %v397
        %v2672 = vpop.f32.mrb[0].mxu0
        %v2673 = vadd.f32 %v2565, %v2672
        %v2674 = vpop.f32.mrb[0].mxu0
        %v2675 = vpop.f32.mrb[0].mxu0
        %v2676 = vadd.f32 %v2565, %v2675
        %v2677 = vpop.f32.mrb[0].mxu0
        %2678 = vmatprep.mubr.bf16.mxu0 0
        %2679 = vmatmul.mubr.bf16.gmra.mrb[0].mxu0 %v398
        %v2680 = vpop.f32.mrb[0].mxu0
        %v2681 = vadd.f32 %v2565, %v2680
        %v2682 = vpop.f32.mrb[0].mxu0
        %v2683 = vpop.f32.mrb[0].mxu0
        %v2684 = vadd.f32 %v2565, %v2683
        %v2685 = vpop.f32.mrb[0].mxu0
        %2686 = vmatprep.mubr.bf16.mxu0 0
        %2687 = vmatmul.mubr.bf16.gmra.mrb[0].mxu0 %v399
        %v2688 = vpop.f32.mrb[0].mxu0
        %v2689 = vadd.f32 %v2565, %v2688
        %v2690 = vpop.f32.mrb[0].mxu0
        %v2691 = vpop.f32.mrb[0].mxu0
        %v2692 = vadd.f32 %v2565, %v2691
        %v2693 = vpop.f32.mrb[0].mxu0
        %2694 = vmatprep.mubr.bf16.mxu0 0
        %2695 = vmatmul.mubr.bf16.gmra.mrb[0].mxu0 %v400
        %v2696 = vpop.f32.mrb[0].mxu0
        %v2697 = vadd.f32 %v2565, %v2696
        %v2698 = vpop.f32.mrb[0].mxu0
        %v2699 = vpop.f32.mrb[0].mxu0
        %v2700 = vadd.f32 %v2565, %v2699
        %v2701 = vpop.f32.mrb[0].mxu0
        %2702 = vmatprep.mubr.bf16.mxu0 0
        %2703 = vmatmul.mubr.bf16.gmra.mrb[0].mxu0 %v401
        %v2704 = vpop.f32.mrb[0].mxu0
        %v2705 = vadd.f32 %v2565, %v2704
        %v2706 = vpop.f32.mrb[0].mxu0
        %v2707 = vpop.f32.mrb[0].mxu0
        %v2708 = vadd.f32 %v2565, %v2707
        %v2709 = vpop.f32.mrb[0].mxu0
        %2710 = vdwg.mxu0
        %2711 = vset.pattern.permute.xlu0 3
        %2712 = vperm.xlu0 %2711, %v1663
        %v2713 = vpop.permute.xlu0 %2712
        %2715 = vset.pattern.permute.xlu0 3
        %2716 = vperm.xlu0 %2715, %v1664
        %v2717 = vpop.permute.xlu0 %2716
        %2719 = vset.pattern.permute.xlu0 3
        %2720 = vperm.xlu0 %2719, %v1665
        %v2721 = vpop.permute.xlu0 %2720
        %2723 = vset.pattern.permute.xlu0 3
        %2724 = vperm.xlu0 %2723, %v1666
        %v2725 = vpop.permute.xlu0 %2724
        %2727 = vset.pattern.permute.xlu0 3
        %2728 = vperm.xlu0 %2727, %v1667
        %v2729 = vpop.permute.xlu0 %2728
        %2731 = vset.pattern.permute.xlu0 3
        %2732 = vperm.xlu0 %2731, %v1668
        %v2733 = vpop.permute.xlu0 %2732
        %2735 = vset.pattern.permute.xlu0 3
        %2736 = vperm.xlu0 %2735, %v1669
        %v2737 = vpop.permute.xlu0 %2736
        %2739 = vset.pattern.permute.xlu0 3
        %2740 = vperm.xlu0 %2739, %v1670
        %v2741 = vpop.permute.xlu0 %2740
        %2743 = vset.pattern.permute.xlu0 3
        %2744 = vperm.xlu0 %2743, %v1671
        %v2745 = vpop.permute.xlu0 %2744
        %2747 = vset.pattern.permute.xlu0 3
        %2748 = vperm.xlu0 %2747, %v1672
        %v2749 = vpop.permute.xlu0 %2748
        %2751 = vset.pattern.permute.xlu0 3
        %2752 = vperm.xlu0 %2751, %v1673
        %v2753 = vpop.permute.xlu0 %2752
        %2755 = vset.pattern.permute.xlu0 3
        %2756 = vperm.xlu0 %2755, %v1674
        %v2757 = vpop.permute.xlu0 %2756
        %2759 = vset.pattern.permute.xlu0 3
        %2760 = vperm.xlu0 %2759, %v1675
        %v2761 = vpop.permute.xlu0 %2760
        %2763 = vset.pattern.permute.xlu0 3
        %2764 = vperm.xlu0 %2763, %v1676
        %v2765 = vpop.permute.xlu0 %2764
        %2767 = vset.pattern.permute.xlu0 3
        %2768 = vperm.xlu0 %2767, %v1677
        %v2769 = vpop.permute.xlu0 %2768
        %2771 = vset.pattern.permute.xlu0 3
        %2772 = vperm.xlu0 %2771, %v1678
        %v2773 = vpop.permute.xlu0 %2772
        %v2775 = vmul.f32 %v2713, %v2649
        %v2776 = vmul.f32 %v2717, %v2652
        %v2777 = vmul.f32 %v2721, %v2657
        %v2778 = vmul.f32 %v2725, %v2660
        %v2779 = vmul.f32 %v2729, %v2665
        %v2780 = vmul.f32 %v2733, %v2668
        %v2781 = vmul.f32 %v2737, %v2673
        %v2782 = vmul.f32 %v2741, %v2676
        %v2783 = vmul.f32 %v2745, %v2681
        %v2784 = vmul.f32 %v2749, %v2684
        %v2785 = vmul.f32 %v2753, %v2689
        %v2786 = vmul.f32 %v2757, %v2692
        %v2787 = vmul.f32 %v2761, %v2697
        %v2788 = vmul.f32 %v2765, %v2700
        %v2789 = vmul.f32 %v2769, %v2705
        %v2790 = vmul.f32 %v2773, %v2708
        %v2791 = vadd.f32 %v2529, %v2775
        %v2792 = vadd.f32 %v2530, %v2776
        %v2793 = vadd.f32 %v2531, %v2777
        %v2794 = vadd.f32 %v2532, %v2778
        %v2795 = vadd.f32 %v2533, %v2779
        %v2796 = vadd.f32 %v2534, %v2780
        %v2797 = vadd.f32 %v2535, %v2781
        %v2798 = vadd.f32 %v2536, %v2782
        %v2799 = vadd.f32 %v2537, %v2783
        %v2800 = vadd.f32 %v2538, %v2784
        %v2801 = vadd.f32 %v2539, %v2785
        %v2802 = vadd.f32 %v2540, %v2786
        %v2803 = vadd.f32 %v2541, %v2787
        %v2804 = vadd.f32 %v2542, %v2788
        %v2805 = vadd.f32 %v2543, %v2789
        %v2806 = vadd.f32 %v2544, %v2790
        %s2807 = scalar_lea.vmem [#allocation2], 256
        %v2808 = vld [vmem:[%s2807] sm:$0xf]
        %v2809 = vld [vmem:[%s2807 + $0x4] sm:$0xf]
        %v2810 = vld [vmem:[%s2807 + $0x8] sm:$0xf]
        %v2811 = vld [vmem:[%s2807 + $0xc] sm:$0xf]
        %v2812 = vld [vmem:[%s2807 + $0x10] sm:$0xf]
        %v2813 = vld [vmem:[%s2807 + $0x14] sm:$0xf]
        %v2814 = vld [vmem:[%s2807 + $0x18] sm:$0xf]
        %v2815 = vld [vmem:[%s2807 + $0x1c] sm:$0xf]
        %v2816 = vld [vmem:[%s2807 + $0x20] sm:$0xf]
        %v2817 = vld [vmem:[%s2807 + $0x24] sm:$0xf]
        %v2818 = vld [vmem:[%s2807 + $0x28] sm:$0xf]
        %v2819 = vld [vmem:[%s2807 + $0x2c] sm:$0xf]
        %v2820 = vld [vmem:[%s2807 + $0x30] sm:$0xf]
        %v2821 = vld [vmem:[%s2807 + $0x34] sm:$0xf]
        %v2822 = vld [vmem:[%s2807 + $0x38] sm:$0xf]
        %v2823 = vld [vmem:[%s2807 + $0x3c] sm:$0xf]
        %v2824 = vlaneseq
        %v2825 = vshrl.u32 %v2824, 7
        %v2826 = vsub.s32 4, %v2825
        %v2827 = vrot.slane %v1743, %v2826
        %v2844 = vunpack.c.l.b16 %v2808
        %v2845 = vunpack.c.l.b16 %v2809
        %v2846 = vunpack.c.l.b16 %v2810
        %v2847 = vunpack.c.l.b16 %v2811
        %v2848 = vunpack.c.l.b16 %v2812
        %v2849 = vunpack.c.l.b16 %v2813
        %v2850 = vunpack.c.l.b16 %v2814
        %v2851 = vunpack.c.l.b16 %v2815
        %v2852 = vunpack.c.l.b16 %v2816
        %v2853 = vunpack.c.l.b16 %v2817
        %v2854 = vunpack.c.l.b16 %v2818
        %v2855 = vunpack.c.l.b16 %v2819
        %v2856 = vunpack.c.l.b16 %v2820
        %v2857 = vunpack.c.l.b16 %v2821
        %v2858 = vunpack.c.l.b16 %v2822
        %v2859 = vunpack.c.l.b16 %v2823
        %v2860 = vpack.c.b16 %v2845, %v2844
        %v2861 = vpack.c.b16 %v2847, %v2846
        %v2862 = vpack.c.b16 %v2849, %v2848
        %v2863 = vpack.c.b16 %v2851, %v2850
        %v2864 = vpack.c.b16 %v2853, %v2852
        %v2865 = vpack.c.b16 %v2855, %v2854
        %v2866 = vpack.c.b16 %v2857, %v2856
        %v2867 = vpack.c.b16 %v2859, %v2858
        %2876 = vmatprep.subr.bf16.mxu0 0
        %2877 = vmatpush1.bf16.msra.mxu0 %v2860
        %2878 = vmatprep.subr.bf16.mxu0 0
        %2879 = vmatpush1.bf16.msra.mxu0 %v2861
        %2880 = vmatprep.subr.bf16.mxu0 0
        %2881 = vmatpush1.bf16.msra.mxu0 %v2862
        %2882 = vmatprep.subr.bf16.mxu0 0
        %2883 = vmatpush1.bf16.msra.mxu0 %v2863
        %2884 = vmatprep.subr.bf16.mxu0 0
        %2885 = vmatpush1.bf16.msra.mxu0 %v2864
        %2886 = vmatprep.subr.bf16.mxu0 0
        %2887 = vmatpush1.bf16.msra.mxu0 %v2865
        %2888 = vmatprep.subr.bf16.mxu0 0
        %2889 = vmatpush1.bf16.msra.mxu0 %v2866
        %2890 = vmatprep.subr.bf16.mxu0 0
        %2891 = vmatpush1.bf16.msra.mxu0 %v2867
        %2892 = vmatprep.subr.bf16.mxu0 0
        %2893 = vmatpush1.bf16.msra.mxu0 0
        %2894 = vmatprep.subr.bf16.mxu0 0
        %2895 = vmatpush1.bf16.msra.mxu0 0
        %2896 = vmatprep.subr.bf16.mxu0 0
        %2897 = vmatpush1.bf16.msra.mxu0 0
        %2898 = vmatprep.subr.bf16.mxu0 0
        %2899 = vmatpush1.bf16.msra.mxu0 0
        %2900 = vmatprep.subr.bf16.mxu0 0
        %2901 = vmatpush1.bf16.msra.mxu0 0
        %2902 = vmatprep.subr.bf16.mxu0 0
        %2903 = vmatpush1.bf16.msra.mxu0 0
        %2904 = vmatprep.subr.bf16.mxu0 0
        %2905 = vmatpush1.bf16.msra.mxu0 0
        %2906 = vmatprep.subr.bf16.mxu0 0
        %2907 = vmatpush1.bf16.msra.mxu0 0
        %2908 = vmatprep.mubr.bf16.mxu0 0
        %2909 = vmatmul.mubr.bf16.gmra.mrb[0].mxu0 %v394
        %v2910 = vpop.f32.mrb[0].mxu0
        %v2911 = vadd.f32 %v2827, %v2910
        %v2912 = vpop.f32.mrb[0].mxu0
        %v2913 = vpop.f32.mrb[0].mxu0
        %v2914 = vadd.f32 %v2827, %v2913
        %v2915 = vpop.f32.mrb[0].mxu0
        %2916 = vmatprep.mubr.bf16.mxu0 0
        %2917 = vmatmul.mubr.bf16.gmra.mrb[0].mxu0 %v395
        %v2918 = vpop.f32.mrb[0].mxu0
        %v2919 = vadd.f32 %v2827, %v2918
        %v2920 = vpop.f32.mrb[0].mxu0
        %v2921 = vpop.f32.mrb[0].mxu0
        %v2922 = vadd.f32 %v2827, %v2921
        %v2923 = vpop.f32.mrb[0].mxu0
        %2924 = vmatprep.mubr.bf16.mxu0 0
        %2925 = vmatmul.mubr.bf16.gmra.mrb[0].mxu0 %v396
        %v2926 = vpop.f32.mrb[0].mxu0
        %v2927 = vadd.f32 %v2827, %v2926
        %v2928 = vpop.f32.mrb[0].mxu0
        %v2929 = vpop.f32.mrb[0].mxu0
        %v2930 = vadd.f32 %v2827, %v2929
        %v2931 = vpop.f32.mrb[0].mxu0
        %2932 = vmatprep.mubr.bf16.mxu0 0
        %2933 = vmatmul.mubr.bf16.gmra.mrb[0].mxu0 %v397
        %v2934 = vpop.f32.mrb[0].mxu0
        %v2935 = vadd.f32 %v2827, %v2934
        %v2936 = vpop.f32.mrb[0].mxu0
        %v2937 = vpop.f32.mrb[0].mxu0
        %v2938 = vadd.f32 %v2827, %v2937
        %v2939 = vpop.f32.mrb[0].mxu0
        %2940 = vmatprep.mubr.bf16.mxu0 0
        %2941 = vmatmul.mubr.bf16.gmra.mrb[0].mxu0 %v398
        %v2942 = vpop.f32.mrb[0].mxu0
        %v2943 = vadd.f32 %v2827, %v2942
        %v2944 = vpop.f32.mrb[0].mxu0
        %v2945 = vpop.f32.mrb[0].mxu0
        %v2946 = vadd.f32 %v2827, %v2945
        %v2947 = vpop.f32.mrb[0].mxu0
        %2948 = vmatprep.mubr.bf16.mxu0 0
        %2949 = vmatmul.mubr.bf16.gmra.mrb[0].mxu0 %v399
        %v2950 = vpop.f32.mrb[0].mxu0
        %v2951 = vadd.f32 %v2827, %v2950
        %v2952 = vpop.f32.mrb[0].mxu0
        %v2953 = vpop.f32.mrb[0].mxu0
        %v2954 = vadd.f32 %v2827, %v2953
        %v2955 = vpop.f32.mrb[0].mxu0
        %2956 = vmatprep.mubr.bf16.mxu0 0
        %2957 = vmatmul.mubr.bf16.gmra.mrb[0].mxu0 %v400
        %v2958 = vpop.f32.mrb[0].mxu0
        %v2959 = vadd.f32 %v2827, %v2958
        %v2960 = vpop.f32.mrb[0].mxu0
        %v2961 = vpop.f32.mrb[0].mxu0
        %v2962 = vadd.f32 %v2827, %v2961
        %v2963 = vpop.f32.mrb[0].mxu0
        %2964 = vmatprep.mubr.bf16.mxu0 0
        %2965 = vmatmul.mubr.bf16.gmra.mrb[0].mxu0 %v401
        %v2966 = vpop.f32.mrb[0].mxu0
        %v2967 = vadd.f32 %v2827, %v2966
        %v2968 = vpop.f32.mrb[0].mxu0
        %v2969 = vpop.f32.mrb[0].mxu0
        %v2970 = vadd.f32 %v2827, %v2969
        %v2971 = vpop.f32.mrb[0].mxu0
        %2972 = vdwg.mxu0
        %2973 = vset.pattern.permute.xlu0 4
        %2974 = vperm.xlu0 %2973, %v1663
        %v2975 = vpop.permute.xlu0 %2974
        %2977 = vset.pattern.permute.xlu0 4
        %2978 = vperm.xlu0 %2977, %v1664
        %v2979 = vpop.permute.xlu0 %2978
        %2981 = vset.pattern.permute.xlu0 4
        %2982 = vperm.xlu0 %2981, %v1665
        %v2983 = vpop.permute.xlu0 %2982
        %2985 = vset.pattern.permute.xlu0 4
        %2986 = vperm.xlu0 %2985, %v1666
        %v2987 = vpop.permute.xlu0 %2986
        %2989 = vset.pattern.permute.xlu0 4
        %2990 = vperm.xlu0 %2989, %v1667
        %v2991 = vpop.permute.xlu0 %2990
        %2993 = vset.pattern.permute.xlu0 4
        %2994 = vperm.xlu0 %2993, %v1668
        %v2995 = vpop.permute.xlu0 %2994
        %2997 = vset.pattern.permute.xlu0 4
        %2998 = vperm.xlu0 %2997, %v1669
        %v2999 = vpop.permute.xlu0 %2998
        %3001 = vset.pattern.permute.xlu0 4
        %3002 = vperm.xlu0 %3001, %v1670
        %v3003 = vpop.permute.xlu0 %3002
        %3005 = vset.pattern.permute.xlu0 4
        %3006 = vperm.xlu0 %3005, %v1671
        %v3007 = vpop.permute.xlu0 %3006
        %3009 = vset.pattern.permute.xlu0 4
        %3010 = vperm.xlu0 %3009, %v1672
        %v3011 = vpop.permute.xlu0 %3010
        %3013 = vset.pattern.permute.xlu0 4
        %3014 = vperm.xlu0 %3013, %v1673
        %v3015 = vpop.permute.xlu0 %3014
        %3017 = vset.pattern.permute.xlu0 4
        %3018 = vperm.xlu0 %3017, %v1674
        %v3019 = vpop.permute.xlu0 %3018
        %3021 = vset.pattern.permute.xlu0 4
        %3022 = vperm.xlu0 %3021, %v1675
        %v3023 = vpop.permute.xlu0 %3022
        %3025 = vset.pattern.permute.xlu0 4
        %3026 = vperm.xlu0 %3025, %v1676
        %v3027 = vpop.permute.xlu0 %3026
        %3029 = vset.pattern.permute.xlu0 4
        %3030 = vperm.xlu0 %3029, %v1677
        %v3031 = vpop.permute.xlu0 %3030
        %3033 = vset.pattern.permute.xlu0 4
        %3034 = vperm.xlu0 %3033, %v1678
        %v3035 = vpop.permute.xlu0 %3034
        %v3037 = vmul.f32 %v2975, %v2911
        %v3038 = vmul.f32 %v2979, %v2914
        %v3039 = vmul.f32 %v2983, %v2919
        %v3040 = vmul.f32 %v2987, %v2922
        %v3041 = vmul.f32 %v2991, %v2927
        %v3042 = vmul.f32 %v2995, %v2930
        %v3043 = vmul.f32 %v2999, %v2935
        %v3044 = vmul.f32 %v3003, %v2938
        %v3045 = vmul.f32 %v3007, %v2943
        %v3046 = vmul.f32 %v3011, %v2946
        %v3047 = vmul.f32 %v3015, %v2951
        %v3048 = vmul.f32 %v3019, %v2954
        %v3049 = vmul.f32 %v3023, %v2959
        %v3050 = vmul.f32 %v3027, %v2962
        %v3051 = vmul.f32 %v3031, %v2967
        %v3052 = vmul.f32 %v3035, %v2970
        %v3053 = vadd.f32 %v2791, %v3037
        %v3054 = vadd.f32 %v2792, %v3038
        %v3055 = vadd.f32 %v2793, %v3039
        %v3056 = vadd.f32 %v2794, %v3040
        %v3057 = vadd.f32 %v2795, %v3041
        %v3058 = vadd.f32 %v2796, %v3042
        %v3059 = vadd.f32 %v2797, %v3043
        %v3060 = vadd.f32 %v2798, %v3044
        %v3061 = vadd.f32 %v2799, %v3045
        %v3062 = vadd.f32 %v2800, %v3046
        %v3063 = vadd.f32 %v2801, %v3047
        %v3064 = vadd.f32 %v2802, %v3048
        %v3065 = vadd.f32 %v2803, %v3049
        %v3066 = vadd.f32 %v2804, %v3050
        %v3067 = vadd.f32 %v2805, %v3051
        %v3068 = vadd.f32 %v2806, %v3052
        %s3069 = scalar_lea.vmem [#allocation2], 320
        %v3070 = vld [vmem:[%s3069] sm:$0xf]
        %v3071 = vld [vmem:[%s3069 + $0x4] sm:$0xf]
        %v3072 = vld [vmem:[%s3069 + $0x8] sm:$0xf]
        %v3073 = vld [vmem:[%s3069 + $0xc] sm:$0xf]
        %v3074 = vld [vmem:[%s3069 + $0x10] sm:$0xf]
        %v3075 = vld [vmem:[%s3069 + $0x14] sm:$0xf]
        %v3076 = vld [vmem:[%s3069 + $0x18] sm:$0xf]
        %v3077 = vld [vmem:[%s3069 + $0x1c] sm:$0xf]
        %v3078 = vld [vmem:[%s3069 + $0x20] sm:$0xf]
        %v3079 = vld [vmem:[%s3069 + $0x24] sm:$0xf]
        %v3080 = vld [vmem:[%s3069 + $0x28] sm:$0xf]
        %v3081 = vld [vmem:[%s3069 + $0x2c] sm:$0xf]
        %v3082 = vld [vmem:[%s3069 + $0x30] sm:$0xf]
        %v3083 = vld [vmem:[%s3069 + $0x34] sm:$0xf]
        %v3084 = vld [vmem:[%s3069 + $0x38] sm:$0xf]
        %v3085 = vld [vmem:[%s3069 + $0x3c] sm:$0xf]
        %v3086 = vlaneseq
        %v3087 = vshrl.u32 %v3086, 7
        %v3088 = vsub.s32 5, %v3087
        %v3089 = vrot.slane %v1743, %v3088
        %v3106 = vunpack.c.l.b16 %v3070
        %v3107 = vunpack.c.l.b16 %v3071
        %v3108 = vunpack.c.l.b16 %v3072
        %v3109 = vunpack.c.l.b16 %v3073
        %v3110 = vunpack.c.l.b16 %v3074
        %v3111 = vunpack.c.l.b16 %v3075
        %v3112 = vunpack.c.l.b16 %v3076
        %v3113 = vunpack.c.l.b16 %v3077
        %v3114 = vunpack.c.l.b16 %v3078
        %v3115 = vunpack.c.l.b16 %v3079
        %v3116 = vunpack.c.l.b16 %v3080
        %v3117 = vunpack.c.l.b16 %v3081
        %v3118 = vunpack.c.l.b16 %v3082
        %v3119 = vunpack.c.l.b16 %v3083
        %v3120 = vunpack.c.l.b16 %v3084
        %v3121 = vunpack.c.l.b16 %v3085
        %v3122 = vpack.c.b16 %v3107, %v3106
        %v3123 = vpack.c.b16 %v3109, %v3108
        %v3124 = vpack.c.b16 %v3111, %v3110
        %v3125 = vpack.c.b16 %v3113, %v3112
        %v3126 = vpack.c.b16 %v3115, %v3114
        %v3127 = vpack.c.b16 %v3117, %v3116
        %v3128 = vpack.c.b16 %v3119, %v3118
        %v3129 = vpack.c.b16 %v3121, %v3120
        %3138 = vmatprep.subr.bf16.mxu0 0
        %3139 = vmatpush1.bf16.msra.mxu0 %v3122
        %3140 = vmatprep.subr.bf16.mxu0 0
        %3141 = vmatpush1.bf16.msra.mxu0 %v3123
        %3142 = vmatprep.subr.bf16.mxu0 0
        %3143 = vmatpush1.bf16.msra.mxu0 %v3124
        %3144 = vmatprep.subr.bf16.mxu0 0
        %3145 = vmatpush1.bf16.msra.mxu0 %v3125
        %3146 = vmatprep.subr.bf16.mxu0 0
        %3147 = vmatpush1.bf16.msra.mxu0 %v3126
        %3148 = vmatprep.subr.bf16.mxu0 0
        %3149 = vmatpush1.bf16.msra.mxu0 %v3127
        %3150 = vmatprep.subr.bf16.mxu0 0
        %3151 = vmatpush1.bf16.msra.mxu0 %v3128
        %3152 = vmatprep.subr.bf16.mxu0 0
        %3153 = vmatpush1.bf16.msra.mxu0 %v3129
        %3154 = vmatprep.subr.bf16.mxu0 0
        %3155 = vmatpush1.bf16.msra.mxu0 0
        %3156 = vmatprep.subr.bf16.mxu0 0
        %3157 = vmatpush1.bf16.msra.mxu0 0
        %3158 = vmatprep.subr.bf16.mxu0 0
        %3159 = vmatpush1.bf16.msra.mxu0 0
        %3160 = vmatprep.subr.bf16.mxu0 0
        %3161 = vmatpush1.bf16.msra.mxu0 0
        %3162 = vmatprep.subr.bf16.mxu0 0
        %3163 = vmatpush1.bf16.msra.mxu0 0
        %3164 = vmatprep.subr.bf16.mxu0 0
        %3165 = vmatpush1.bf16.msra.mxu0 0
        %3166 = vmatprep.subr.bf16.mxu0 0
        %3167 = vmatpush1.bf16.msra.mxu0 0
        %3168 = vmatprep.subr.bf16.mxu0 0
        %3169 = vmatpush1.bf16.msra.mxu0 0
        %3170 = vmatprep.mubr.bf16.mxu0 0
        %3171 = vmatmul.mubr.bf16.gmra.mrb[0].mxu0 %v394
        %v3172 = vpop.f32.mrb[0].mxu0
        %v3173 = vadd.f32 %v3089, %v3172
        %v3174 = vpop.f32.mrb[0].mxu0
        %v3175 = vpop.f32.mrb[0].mxu0
        %v3176 = vadd.f32 %v3089, %v3175
        %v3177 = vpop.f32.mrb[0].mxu0
        %3178 = vmatprep.mubr.bf16.mxu0 0
        %3179 = vmatmul.mubr.bf16.gmra.mrb[0].mxu0 %v395
        %v3180 = vpop.f32.mrb[0].mxu0
        %v3181 = vadd.f32 %v3089, %v3180
        %v3182 = vpop.f32.mrb[0].mxu0
        %v3183 = vpop.f32.mrb[0].mxu0
        %v3184 = vadd.f32 %v3089, %v3183
        %v3185 = vpop.f32.mrb[0].mxu0
        %3186 = vmatprep.mubr.bf16.mxu0 0
        %3187 = vmatmul.mubr.bf16.gmra.mrb[0].mxu0 %v396
        %v3188 = vpop.f32.mrb[0].mxu0
        %v3189 = vadd.f32 %v3089, %v3188
        %v3190 = vpop.f32.mrb[0].mxu0
        %v3191 = vpop.f32.mrb[0].mxu0
        %v3192 = vadd.f32 %v3089, %v3191
        %v3193 = vpop.f32.mrb[0].mxu0
        %3194 = vmatprep.mubr.bf16.mxu0 0
        %3195 = vmatmul.mubr.bf16.gmra.mrb[0].mxu0 %v397
        %v3196 = vpop.f32.mrb[0].mxu0
        %v3197 = vadd.f32 %v3089, %v3196
        %v3198 = vpop.f32.mrb[0].mxu0
        %v3199 = vpop.f32.mrb[0].mxu0
        %v3200 = vadd.f32 %v3089, %v3199
        %v3201 = vpop.f32.mrb[0].mxu0
        %3202 = vmatprep.mubr.bf16.mxu0 0
        %3203 = vmatmul.mubr.bf16.gmra.mrb[0].mxu0 %v398
        %v3204 = vpop.f32.mrb[0].mxu0
        %v3205 = vadd.f32 %v3089, %v3204
        %v3206 = vpop.f32.mrb[0].mxu0
        %v3207 = vpop.f32.mrb[0].mxu0
        %v3208 = vadd.f32 %v3089, %v3207
        %v3209 = vpop.f32.mrb[0].mxu0
        %3210 = vmatprep.mubr.bf16.mxu0 0
        %3211 = vmatmul.mubr.bf16.gmra.mrb[0].mxu0 %v399
        %v3212 = vpop.f32.mrb[0].mxu0
        %v3213 = vadd.f32 %v3089, %v3212
        %v3214 = vpop.f32.mrb[0].mxu0
        %v3215 = vpop.f32.mrb[0].mxu0
        %v3216 = vadd.f32 %v3089, %v3215
        %v3217 = vpop.f32.mrb[0].mxu0
        %3218 = vmatprep.mubr.bf16.mxu0 0
        %3219 = vmatmul.mubr.bf16.gmra.mrb[0].mxu0 %v400
        %v3220 = vpop.f32.mrb[0].mxu0
        %v3221 = vadd.f32 %v3089, %v3220
        %v3222 = vpop.f32.mrb[0].mxu0
        %v3223 = vpop.f32.mrb[0].mxu0
        %v3224 = vadd.f32 %v3089, %v3223
        %v3225 = vpop.f32.mrb[0].mxu0
        %3226 = vmatprep.mubr.bf16.mxu0 0
        %3227 = vmatmul.mubr.bf16.gmra.mrb[0].mxu0 %v401
        %v3228 = vpop.f32.mrb[0].mxu0
        %v3229 = vadd.f32 %v3089, %v3228
        %v3230 = vpop.f32.mrb[0].mxu0
        %v3231 = vpop.f32.mrb[0].mxu0
        %v3232 = vadd.f32 %v3089, %v3231
        %v3233 = vpop.f32.mrb[0].mxu0
        %3234 = vdwg.mxu0
        %3235 = vset.pattern.permute.xlu0 5
        %3236 = vperm.xlu0 %3235, %v1663
        %v3237 = vpop.permute.xlu0 %3236
        %3239 = vset.pattern.permute.xlu0 5
        %3240 = vperm.xlu0 %3239, %v1664
        %v3241 = vpop.permute.xlu0 %3240
        %3243 = vset.pattern.permute.xlu0 5
        %3244 = vperm.xlu0 %3243, %v1665
        %v3245 = vpop.permute.xlu0 %3244
        %3247 = vset.pattern.permute.xlu0 5
        %3248 = vperm.xlu0 %3247, %v1666
        %v3249 = vpop.permute.xlu0 %3248
        %3251 = vset.pattern.permute.xlu0 5
        %3252 = vperm.xlu0 %3251, %v1667
        %v3253 = vpop.permute.xlu0 %3252
        %3255 = vset.pattern.permute.xlu0 5
        %3256 = vperm.xlu0 %3255, %v1668
        %v3257 = vpop.permute.xlu0 %3256
        %3259 = vset.pattern.permute.xlu0 5
        %3260 = vperm.xlu0 %3259, %v1669
        %v3261 = vpop.permute.xlu0 %3260
        %3263 = vset.pattern.permute.xlu0 5
        %3264 = vperm.xlu0 %3263, %v1670
        %v3265 = vpop.permute.xlu0 %3264
        %3267 = vset.pattern.permute.xlu0 5
        %3268 = vperm.xlu0 %3267, %v1671
        %v3269 = vpop.permute.xlu0 %3268
        %3271 = vset.pattern.permute.xlu0 5
        %3272 = vperm.xlu0 %3271, %v1672
        %v3273 = vpop.permute.xlu0 %3272
        %3275 = vset.pattern.permute.xlu0 5
        %3276 = vperm.xlu0 %3275, %v1673
        %v3277 = vpop.permute.xlu0 %3276
        %3279 = vset.pattern.permute.xlu0 5
        %3280 = vperm.xlu0 %3279, %v1674
        %v3281 = vpop.permute.xlu0 %3280
        %3283 = vset.pattern.permute.xlu0 5
        %3284 = vperm.xlu0 %3283, %v1675
        %v3285 = vpop.permute.xlu0 %3284
        %3287 = vset.pattern.permute.xlu0 5
        %3288 = vperm.xlu0 %3287, %v1676
        %v3289 = vpop.permute.xlu0 %3288
        %3291 = vset.pattern.permute.xlu0 5
        %3292 = vperm.xlu0 %3291, %v1677
        %v3293 = vpop.permute.xlu0 %3292
        %3295 = vset.pattern.permute.xlu0 5
        %3296 = vperm.xlu0 %3295, %v1678
        %v3297 = vpop.permute.xlu0 %3296
        %v3299 = vmul.f32 %v3237, %v3173
        %v3300 = vmul.f32 %v3241, %v3176
        %v3301 = vmul.f32 %v3245, %v3181
        %v3302 = vmul.f32 %v3249, %v3184
        %v3303 = vmul.f32 %v3253, %v3189
        %v3304 = vmul.f32 %v3257, %v3192
        %v3305 = vmul.f32 %v3261, %v3197
        %v3306 = vmul.f32 %v3265, %v3200
        %v3307 = vmul.f32 %v3269, %v3205
        %v3308 = vmul.f32 %v3273, %v3208
        %v3309 = vmul.f32 %v3277, %v3213
        %v3310 = vmul.f32 %v3281, %v3216
        %v3311 = vmul.f32 %v3285, %v3221
        %v3312 = vmul.f32 %v3289, %v3224
        %v3313 = vmul.f32 %v3293, %v3229
        %v3314 = vmul.f32 %v3297, %v3232
        %v3315 = vadd.f32 %v3053, %v3299
        %v3316 = vadd.f32 %v3054, %v3300
        %v3317 = vadd.f32 %v3055, %v3301
        %v3318 = vadd.f32 %v3056, %v3302
        %v3319 = vadd.f32 %v3057, %v3303
        %v3320 = vadd.f32 %v3058, %v3304
        %v3321 = vadd.f32 %v3059, %v3305
        %v3322 = vadd.f32 %v3060, %v3306
        %v3323 = vadd.f32 %v3061, %v3307
        %v3324 = vadd.f32 %v3062, %v3308
        %v3325 = vadd.f32 %v3063, %v3309
        %v3326 = vadd.f32 %v3064, %v3310
        %v3327 = vadd.f32 %v3065, %v3311
        %v3328 = vadd.f32 %v3066, %v3312
        %v3329 = vadd.f32 %v3067, %v3313
        %v3330 = vadd.f32 %v3068, %v3314
        %s3331 = scalar_lea.vmem [#allocation2], 384
        %v3332 = vld [vmem:[%s3331] sm:$0xf]
        %v3333 = vld [vmem:[%s3331 + $0x4] sm:$0xf]
        %v3334 = vld [vmem:[%s3331 + $0x8] sm:$0xf]
        %v3335 = vld [vmem:[%s3331 + $0xc] sm:$0xf]
        %v3336 = vld [vmem:[%s3331 + $0x10] sm:$0xf]
        %v3337 = vld [vmem:[%s3331 + $0x14] sm:$0xf]
        %v3338 = vld [vmem:[%s3331 + $0x18] sm:$0xf]
        %v3339 = vld [vmem:[%s3331 + $0x1c] sm:$0xf]
        %v3340 = vld [vmem:[%s3331 + $0x20] sm:$0xf]
        %v3341 = vld [vmem:[%s3331 + $0x24] sm:$0xf]
        %v3342 = vld [vmem:[%s3331 + $0x28] sm:$0xf]
        %v3343 = vld [vmem:[%s3331 + $0x2c] sm:$0xf]
        %v3344 = vld [vmem:[%s3331 + $0x30] sm:$0xf]
        %v3345 = vld [vmem:[%s3331 + $0x34] sm:$0xf]
        %v3346 = vld [vmem:[%s3331 + $0x38] sm:$0xf]
        %v3347 = vld [vmem:[%s3331 + $0x3c] sm:$0xf]
        %v3348 = vlaneseq
        %v3349 = vshrl.u32 %v3348, 7
        %v3350 = vsub.s32 6, %v3349
        %v3351 = vrot.slane %v1743, %v3350
        %v3368 = vunpack.c.l.b16 %v3332
        %v3369 = vunpack.c.l.b16 %v3333
        %v3370 = vunpack.c.l.b16 %v3334
        %v3371 = vunpack.c.l.b16 %v3335
        %v3372 = vunpack.c.l.b16 %v3336
        %v3373 = vunpack.c.l.b16 %v3337
        %v3374 = vunpack.c.l.b16 %v3338
        %v3375 = vunpack.c.l.b16 %v3339
        %v3376 = vunpack.c.l.b16 %v3340
        %v3377 = vunpack.c.l.b16 %v3341
        %v3378 = vunpack.c.l.b16 %v3342
        %v3379 = vunpack.c.l.b16 %v3343
        %v3380 = vunpack.c.l.b16 %v3344
        %v3381 = vunpack.c.l.b16 %v3345
        %v3382 = vunpack.c.l.b16 %v3346
        %v3383 = vunpack.c.l.b16 %v3347
        %v3384 = vpack.c.b16 %v3369, %v3368
        %v3385 = vpack.c.b16 %v3371, %v3370
        %v3386 = vpack.c.b16 %v3373, %v3372
        %v3387 = vpack.c.b16 %v3375, %v3374
        %v3388 = vpack.c.b16 %v3377, %v3376
        %v3389 = vpack.c.b16 %v3379, %v3378
        %v3390 = vpack.c.b16 %v3381, %v3380
        %v3391 = vpack.c.b16 %v3383, %v3382
        %3400 = vmatprep.subr.bf16.mxu0 0
        %3401 = vmatpush1.bf16.msra.mxu0 %v3384
        %3402 = vmatprep.subr.bf16.mxu0 0
        %3403 = vmatpush1.bf16.msra.mxu0 %v3385
        %3404 = vmatprep.subr.bf16.mxu0 0
        %3405 = vmatpush1.bf16.msra.mxu0 %v3386
        %3406 = vmatprep.subr.bf16.mxu0 0
        %3407 = vmatpush1.bf16.msra.mxu0 %v3387
        %3408 = vmatprep.subr.bf16.mxu0 0
        %3409 = vmatpush1.bf16.msra.mxu0 %v3388
        %3410 = vmatprep.subr.bf16.mxu0 0
        %3411 = vmatpush1.bf16.msra.mxu0 %v3389
        %3412 = vmatprep.subr.bf16.mxu0 0
        %3413 = vmatpush1.bf16.msra.mxu0 %v3390
        %3414 = vmatprep.subr.bf16.mxu0 0
        %3415 = vmatpush1.bf16.msra.mxu0 %v3391
        %3416 = vmatprep.subr.bf16.mxu0 0
        %3417 = vmatpush1.bf16.msra.mxu0 0
        %3418 = vmatprep.subr.bf16.mxu0 0
        %3419 = vmatpush1.bf16.msra.mxu0 0
        %3420 = vmatprep.subr.bf16.mxu0 0
        %3421 = vmatpush1.bf16.msra.mxu0 0
        %3422 = vmatprep.subr.bf16.mxu0 0
        %3423 = vmatpush1.bf16.msra.mxu0 0
        %3424 = vmatprep.subr.bf16.mxu0 0
        %3425 = vmatpush1.bf16.msra.mxu0 0
        %3426 = vmatprep.subr.bf16.mxu0 0
        %3427 = vmatpush1.bf16.msra.mxu0 0
        %3428 = vmatprep.subr.bf16.mxu0 0
        %3429 = vmatpush1.bf16.msra.mxu0 0
        %3430 = vmatprep.subr.bf16.mxu0 0
        %3431 = vmatpush1.bf16.msra.mxu0 0
        %3432 = vmatprep.mubr.bf16.mxu0 0
        %3433 = vmatmul.mubr.bf16.gmra.mrb[0].mxu0 %v394
        %v3434 = vpop.f32.mrb[0].mxu0
        %v3435 = vadd.f32 %v3351, %v3434
        %v3436 = vpop.f32.mrb[0].mxu0
        %v3437 = vpop.f32.mrb[0].mxu0
        %v3438 = vadd.f32 %v3351, %v3437
        %v3439 = vpop.f32.mrb[0].mxu0
        %3440 = vmatprep.mubr.bf16.mxu0 0
        %3441 = vmatmul.mubr.bf16.gmra.mrb[0].mxu0 %v395
        %v3442 = vpop.f32.mrb[0].mxu0
        %v3443 = vadd.f32 %v3351, %v3442
        %v3444 = vpop.f32.mrb[0].mxu0
        %v3445 = vpop.f32.mrb[0].mxu0
        %v3446 = vadd.f32 %v3351, %v3445
        %v3447 = vpop.f32.mrb[0].mxu0
        %3448 = vmatprep.mubr.bf16.mxu0 0
        %3449 = vmatmul.mubr.bf16.gmra.mrb[0].mxu0 %v396
        %v3450 = vpop.f32.mrb[0].mxu0
        %v3451 = vadd.f32 %v3351, %v3450
        %v3452 = vpop.f32.mrb[0].mxu0
        %v3453 = vpop.f32.mrb[0].mxu0
        %v3454 = vadd.f32 %v3351, %v3453
        %v3455 = vpop.f32.mrb[0].mxu0
        %3456 = vmatprep.mubr.bf16.mxu0 0
        %3457 = vmatmul.mubr.bf16.gmra.mrb[0].mxu0 %v397
        %v3458 = vpop.f32.mrb[0].mxu0
        %v3459 = vadd.f32 %v3351, %v3458
        %v3460 = vpop.f32.mrb[0].mxu0
        %v3461 = vpop.f32.mrb[0].mxu0
        %v3462 = vadd.f32 %v3351, %v3461
        %v3463 = vpop.f32.mrb[0].mxu0
        %3464 = vmatprep.mubr.bf16.mxu0 0
        %3465 = vmatmul.mubr.bf16.gmra.mrb[0].mxu0 %v398
        %v3466 = vpop.f32.mrb[0].mxu0
        %v3467 = vadd.f32 %v3351, %v3466
        %v3468 = vpop.f32.mrb[0].mxu0
        %v3469 = vpop.f32.mrb[0].mxu0
        %v3470 = vadd.f32 %v3351, %v3469
        %v3471 = vpop.f32.mrb[0].mxu0
        %3472 = vmatprep.mubr.bf16.mxu0 0
        %3473 = vmatmul.mubr.bf16.gmra.mrb[0].mxu0 %v399
        %v3474 = vpop.f32.mrb[0].mxu0
        %v3475 = vadd.f32 %v3351, %v3474
        %v3476 = vpop.f32.mrb[0].mxu0
        %v3477 = vpop.f32.mrb[0].mxu0
        %v3478 = vadd.f32 %v3351, %v3477
        %v3479 = vpop.f32.mrb[0].mxu0
        %3480 = vmatprep.mubr.bf16.mxu0 0
        %3481 = vmatmul.mubr.bf16.gmra.mrb[0].mxu0 %v400
        %v3482 = vpop.f32.mrb[0].mxu0
        %v3483 = vadd.f32 %v3351, %v3482
        %v3484 = vpop.f32.mrb[0].mxu0
        %v3485 = vpop.f32.mrb[0].mxu0
        %v3486 = vadd.f32 %v3351, %v3485
        %v3487 = vpop.f32.mrb[0].mxu0
        %3488 = vmatprep.mubr.bf16.mxu0 0
        %3489 = vmatmul.mubr.bf16.gmra.mrb[0].mxu0 %v401
        %v3490 = vpop.f32.mrb[0].mxu0
        %v3491 = vadd.f32 %v3351, %v3490
        %v3492 = vpop.f32.mrb[0].mxu0
        %v3493 = vpop.f32.mrb[0].mxu0
        %v3494 = vadd.f32 %v3351, %v3493
        %v3495 = vpop.f32.mrb[0].mxu0
        %3496 = vdwg.mxu0
        %3497 = vset.pattern.permute.xlu0 6
        %3498 = vperm.xlu0 %3497, %v1663
        %v3499 = vpop.permute.xlu0 %3498
        %3501 = vset.pattern.permute.xlu0 6
        %3502 = vperm.xlu0 %3501, %v1664
        %v3503 = vpop.permute.xlu0 %3502
        %3505 = vset.pattern.permute.xlu0 6
        %3506 = vperm.xlu0 %3505, %v1665
        %v3507 = vpop.permute.xlu0 %3506
        %3509 = vset.pattern.permute.xlu0 6
        %3510 = vperm.xlu0 %3509, %v1666
        %v3511 = vpop.permute.xlu0 %3510
        %3513 = vset.pattern.permute.xlu0 6
        %3514 = vperm.xlu0 %3513, %v1667
        %v3515 = vpop.permute.xlu0 %3514
        %3517 = vset.pattern.permute.xlu0 6
        %3518 = vperm.xlu0 %3517, %v1668
        %v3519 = vpop.permute.xlu0 %3518
        %3521 = vset.pattern.permute.xlu0 6
        %3522 = vperm.xlu0 %3521, %v1669
        %v3523 = vpop.permute.xlu0 %3522
        %3525 = vset.pattern.permute.xlu0 6
        %3526 = vperm.xlu0 %3525, %v1670
        %v3527 = vpop.permute.xlu0 %3526
        %3529 = vset.pattern.permute.xlu0 6
        %3530 = vperm.xlu0 %3529, %v1671
        %v3531 = vpop.permute.xlu0 %3530
        %3533 = vset.pattern.permute.xlu0 6
        %3534 = vperm.xlu0 %3533, %v1672
        %v3535 = vpop.permute.xlu0 %3534
        %3537 = vset.pattern.permute.xlu0 6
        %3538 = vperm.xlu0 %3537, %v1673
        %v3539 = vpop.permute.xlu0 %3538
        %3541 = vset.pattern.permute.xlu0 6
        %3542 = vperm.xlu0 %3541, %v1674
        %v3543 = vpop.permute.xlu0 %3542
        %3545 = vset.pattern.permute.xlu0 6
        %3546 = vperm.xlu0 %3545, %v1675
        %v3547 = vpop.permute.xlu0 %3546
        %3549 = vset.pattern.permute.xlu0 6
        %3550 = vperm.xlu0 %3549, %v1676
        %v3551 = vpop.permute.xlu0 %3550
        %3553 = vset.pattern.permute.xlu0 6
        %3554 = vperm.xlu0 %3553, %v1677
        %v3555 = vpop.permute.xlu0 %3554
        %3557 = vset.pattern.permute.xlu0 6
        %3558 = vperm.xlu0 %3557, %v1678
        %v3559 = vpop.permute.xlu0 %3558
        %v3561 = vmul.f32 %v3499, %v3435
        %v3562 = vmul.f32 %v3503, %v3438
        %v3563 = vmul.f32 %v3507, %v3443
        %v3564 = vmul.f32 %v3511, %v3446
        %v3565 = vmul.f32 %v3515, %v3451
        %v3566 = vmul.f32 %v3519, %v3454
        %v3567 = vmul.f32 %v3523, %v3459
        %v3568 = vmul.f32 %v3527, %v3462
        %v3569 = vmul.f32 %v3531, %v3467
        %v3570 = vmul.f32 %v3535, %v3470
        %v3571 = vmul.f32 %v3539, %v3475
        %v3572 = vmul.f32 %v3543, %v3478
        %v3573 = vmul.f32 %v3547, %v3483
        %v3574 = vmul.f32 %v3551, %v3486
        %v3575 = vmul.f32 %v3555, %v3491
        %v3576 = vmul.f32 %v3559, %v3494
        %v3577 = vadd.f32 %v3315, %v3561
        %v3578 = vadd.f32 %v3316, %v3562
        %v3579 = vadd.f32 %v3317, %v3563
        %v3580 = vadd.f32 %v3318, %v3564
        %v3581 = vadd.f32 %v3319, %v3565
        %v3582 = vadd.f32 %v3320, %v3566
        %v3583 = vadd.f32 %v3321, %v3567
        %v3584 = vadd.f32 %v3322, %v3568
        %v3585 = vadd.f32 %v3323, %v3569
        %v3586 = vadd.f32 %v3324, %v3570
        %v3587 = vadd.f32 %v3325, %v3571
        %v3588 = vadd.f32 %v3326, %v3572
        %v3589 = vadd.f32 %v3327, %v3573
        %v3590 = vadd.f32 %v3328, %v3574
        %v3591 = vadd.f32 %v3329, %v3575
        %v3592 = vadd.f32 %v3330, %v3576
        %s3593 = scalar_lea.vmem [#allocation2], 448
        %v3594 = vld [vmem:[%s3593] sm:$0xf]
        %v3595 = vld [vmem:[%s3593 + $0x4] sm:$0xf]
        %v3596 = vld [vmem:[%s3593 + $0x8] sm:$0xf]
        %v3597 = vld [vmem:[%s3593 + $0xc] sm:$0xf]
        %v3598 = vld [vmem:[%s3593 + $0x10] sm:$0xf]
        %v3599 = vld [vmem:[%s3593 + $0x14] sm:$0xf]
        %v3600 = vld [vmem:[%s3593 + $0x18] sm:$0xf]
        %v3601 = vld [vmem:[%s3593 + $0x1c] sm:$0xf]
        %v3602 = vld [vmem:[%s3593 + $0x20] sm:$0xf]
        %v3603 = vld [vmem:[%s3593 + $0x24] sm:$0xf]
        %v3604 = vld [vmem:[%s3593 + $0x28] sm:$0xf]
        %v3605 = vld [vmem:[%s3593 + $0x2c] sm:$0xf]
        %v3606 = vld [vmem:[%s3593 + $0x30] sm:$0xf]
        %v3607 = vld [vmem:[%s3593 + $0x34] sm:$0xf]
        %v3608 = vld [vmem:[%s3593 + $0x38] sm:$0xf]
        %v3609 = vld [vmem:[%s3593 + $0x3c] sm:$0xf]
        %v3610 = vlaneseq
        %v3611 = vshrl.u32 %v3610, 7
        %v3612 = vsub.s32 7, %v3611
        %v3613 = vrot.slane %v1743, %v3612
        %v3630 = vunpack.c.l.b16 %v3594
        %v3631 = vunpack.c.l.b16 %v3595
        %v3632 = vunpack.c.l.b16 %v3596
        %v3633 = vunpack.c.l.b16 %v3597
        %v3634 = vunpack.c.l.b16 %v3598
        %v3635 = vunpack.c.l.b16 %v3599
        %v3636 = vunpack.c.l.b16 %v3600
        %v3637 = vunpack.c.l.b16 %v3601
        %v3638 = vunpack.c.l.b16 %v3602
        %v3639 = vunpack.c.l.b16 %v3603
        %v3640 = vunpack.c.l.b16 %v3604
        %v3641 = vunpack.c.l.b16 %v3605
        %v3642 = vunpack.c.l.b16 %v3606
        %v3643 = vunpack.c.l.b16 %v3607
        %v3644 = vunpack.c.l.b16 %v3608
        %v3645 = vunpack.c.l.b16 %v3609
        %v3646 = vpack.c.b16 %v3631, %v3630
        %v3647 = vpack.c.b16 %v3633, %v3632
        %v3648 = vpack.c.b16 %v3635, %v3634
        %v3649 = vpack.c.b16 %v3637, %v3636
        %v3650 = vpack.c.b16 %v3639, %v3638
        %v3651 = vpack.c.b16 %v3641, %v3640
        %v3652 = vpack.c.b16 %v3643, %v3642
        %v3653 = vpack.c.b16 %v3645, %v3644
        %3662 = vmatprep.subr.bf16.mxu0 0
        %3663 = vmatpush1.bf16.msra.mxu0 %v3646
        %3664 = vmatprep.subr.bf16.mxu0 0
        %3665 = vmatpush1.bf16.msra.mxu0 %v3647
        %3666 = vmatprep.subr.bf16.mxu0 0
        %3667 = vmatpush1.bf16.msra.mxu0 %v3648
        %3668 = vmatprep.subr.bf16.mxu0 0
        %3669 = vmatpush1.bf16.msra.mxu0 %v3649
        %3670 = vmatprep.subr.bf16.mxu0 0
        %3671 = vmatpush1.bf16.msra.mxu0 %v3650
        %3672 = vmatprep.subr.bf16.mxu0 0
        %3673 = vmatpush1.bf16.msra.mxu0 %v3651
        %3674 = vmatprep.subr.bf16.mxu0 0
        %3675 = vmatpush1.bf16.msra.mxu0 %v3652
        %3676 = vmatprep.subr.bf16.mxu0 0
        %3677 = vmatpush1.bf16.msra.mxu0 %v3653
        %3678 = vmatprep.subr.bf16.mxu0 0
        %3679 = vmatpush1.bf16.msra.mxu0 0
        %3680 = vmatprep.subr.bf16.mxu0 0
        %3681 = vmatpush1.bf16.msra.mxu0 0
        %3682 = vmatprep.subr.bf16.mxu0 0
        %3683 = vmatpush1.bf16.msra.mxu0 0
        %3684 = vmatprep.subr.bf16.mxu0 0
        %3685 = vmatpush1.bf16.msra.mxu0 0
        %3686 = vmatprep.subr.bf16.mxu0 0
        %3687 = vmatpush1.bf16.msra.mxu0 0
        %3688 = vmatprep.subr.bf16.mxu0 0
        %3689 = vmatpush1.bf16.msra.mxu0 0
        %3690 = vmatprep.subr.bf16.mxu0 0
        %3691 = vmatpush1.bf16.msra.mxu0 0
        %3692 = vmatprep.subr.bf16.mxu0 0
        %3693 = vmatpush1.bf16.msra.mxu0 0
        %3694 = vmatprep.mubr.bf16.mxu0 0
        %3695 = vmatmul.mubr.bf16.gmra.mrb[0].mxu0 %v394
        %v3696 = vpop.f32.mrb[0].mxu0
        %v3697 = vadd.f32 %v3613, %v3696
        %v3698 = vpop.f32.mrb[0].mxu0
        %v3699 = vpop.f32.mrb[0].mxu0
        %v3700 = vadd.f32 %v3613, %v3699
        %v3701 = vpop.f32.mrb[0].mxu0
        %3702 = vmatprep.mubr.bf16.mxu0 0
        %3703 = vmatmul.mubr.bf16.gmra.mrb[0].mxu0 %v395
        %v3704 = vpop.f32.mrb[0].mxu0
        %v3705 = vadd.f32 %v3613, %v3704
        %v3706 = vpop.f32.mrb[0].mxu0
        %v3707 = vpop.f32.mrb[0].mxu0
        %v3708 = vadd.f32 %v3613, %v3707
        %v3709 = vpop.f32.mrb[0].mxu0
        %3710 = vmatprep.mubr.bf16.mxu0 0
        %3711 = vmatmul.mubr.bf16.gmra.mrb[0].mxu0 %v396
        %v3712 = vpop.f32.mrb[0].mxu0
        %v3713 = vadd.f32 %v3613, %v3712
        %v3714 = vpop.f32.mrb[0].mxu0
        %v3715 = vpop.f32.mrb[0].mxu0
        %v3716 = vadd.f32 %v3613, %v3715
        %v3717 = vpop.f32.mrb[0].mxu0
        %3718 = vmatprep.mubr.bf16.mxu0 0
        %3719 = vmatmul.mubr.bf16.gmra.mrb[0].mxu0 %v397
        %v3720 = vpop.f32.mrb[0].mxu0
        %v3721 = vadd.f32 %v3613, %v3720
        %v3722 = vpop.f32.mrb[0].mxu0
        %v3723 = vpop.f32.mrb[0].mxu0
        %v3724 = vadd.f32 %v3613, %v3723
        %v3725 = vpop.f32.mrb[0].mxu0
        %3726 = vmatprep.mubr.bf16.mxu0 0
        %3727 = vmatmul.mubr.bf16.gmra.mrb[0].mxu0 %v398
        %v3728 = vpop.f32.mrb[0].mxu0
        %v3729 = vadd.f32 %v3613, %v3728
        %v3730 = vpop.f32.mrb[0].mxu0
        %v3731 = vpop.f32.mrb[0].mxu0
        %v3732 = vadd.f32 %v3613, %v3731
        %v3733 = vpop.f32.mrb[0].mxu0
        %3734 = vmatprep.mubr.bf16.mxu0 0
        %3735 = vmatmul.mubr.bf16.gmra.mrb[0].mxu0 %v399
        %v3736 = vpop.f32.mrb[0].mxu0
        %v3737 = vadd.f32 %v3613, %v3736
        %v3738 = vpop.f32.mrb[0].mxu0
        %v3739 = vpop.f32.mrb[0].mxu0
        %v3740 = vadd.f32 %v3613, %v3739
        %v3741 = vpop.f32.mrb[0].mxu0
        %3742 = vmatprep.mubr.bf16.mxu0 0
        %3743 = vmatmul.mubr.bf16.gmra.mrb[0].mxu0 %v400
        %v3744 = vpop.f32.mrb[0].mxu0
        %v3745 = vadd.f32 %v3613, %v3744
        %v3746 = vpop.f32.mrb[0].mxu0
        %v3747 = vpop.f32.mrb[0].mxu0
        %v3748 = vadd.f32 %v3613, %v3747
        %v3749 = vpop.f32.mrb[0].mxu0
        %3750 = vmatprep.mubr.bf16.mxu0 0
        %3751 = vmatmul.mubr.bf16.gmra.mrb[0].mxu0 %v401
        %v3752 = vpop.f32.mrb[0].mxu0
        %v3753 = vadd.f32 %v3613, %v3752
        %v3754 = vpop.f32.mrb[0].mxu0
        %v3755 = vpop.f32.mrb[0].mxu0
        %v3756 = vadd.f32 %v3613, %v3755
        %v3757 = vpop.f32.mrb[0].mxu0
        %3758 = vdwg.mxu0
        %3759 = vset.pattern.permute.xlu0 7
        %3760 = vperm.xlu0 %3759, %v1663
        %v3761 = vpop.permute.xlu0 %3760
        %3763 = vset.pattern.permute.xlu0 7
        %3764 = vperm.xlu0 %3763, %v1664
        %v3765 = vpop.permute.xlu0 %3764
        %3767 = vset.pattern.permute.xlu0 7
        %3768 = vperm.xlu0 %3767, %v1665
        %v3769 = vpop.permute.xlu0 %3768
        %3771 = vset.pattern.permute.xlu0 7
        %3772 = vperm.xlu0 %3771, %v1666
        %v3773 = vpop.permute.xlu0 %3772
        %3775 = vset.pattern.permute.xlu0 7
        %3776 = vperm.xlu0 %3775, %v1667
        %v3777 = vpop.permute.xlu0 %3776
        %3779 = vset.pattern.permute.xlu0 7
        %3780 = vperm.xlu0 %3779, %v1668
        %v3781 = vpop.permute.xlu0 %3780
        %3783 = vset.pattern.permute.xlu0 7
        %3784 = vperm.xlu0 %3783, %v1669
        %v3785 = vpop.permute.xlu0 %3784
        %3787 = vset.pattern.permute.xlu0 7
        %3788 = vperm.xlu0 %3787, %v1670
        %v3789 = vpop.permute.xlu0 %3788
        %3791 = vset.pattern.permute.xlu0 7
        %3792 = vperm.xlu0 %3791, %v1671
        %v3793 = vpop.permute.xlu0 %3792
        %3795 = vset.pattern.permute.xlu0 7
        %3796 = vperm.xlu0 %3795, %v1672
        %v3797 = vpop.permute.xlu0 %3796
        %3799 = vset.pattern.permute.xlu0 7
        %3800 = vperm.xlu0 %3799, %v1673
        %v3801 = vpop.permute.xlu0 %3800
        %3803 = vset.pattern.permute.xlu0 7
        %3804 = vperm.xlu0 %3803, %v1674
        %v3805 = vpop.permute.xlu0 %3804
        %3807 = vset.pattern.permute.xlu0 7
        %3808 = vperm.xlu0 %3807, %v1675
        %v3809 = vpop.permute.xlu0 %3808
        %3811 = vset.pattern.permute.xlu0 7
        %3812 = vperm.xlu0 %3811, %v1676
        %v3813 = vpop.permute.xlu0 %3812
        %3815 = vset.pattern.permute.xlu0 7
        %3816 = vperm.xlu0 %3815, %v1677
        %v3817 = vpop.permute.xlu0 %3816
        %3819 = vset.pattern.permute.xlu0 7
        %3820 = vperm.xlu0 %3819, %v1678
        %v3821 = vpop.permute.xlu0 %3820
        %v3823 = vmul.f32 %v3761, %v3697
        %v3824 = vmul.f32 %v3765, %v3700
        %v3825 = vmul.f32 %v3769, %v3705
        %v3826 = vmul.f32 %v3773, %v3708
        %v3827 = vmul.f32 %v3777, %v3713
        %v3828 = vmul.f32 %v3781, %v3716
        %v3829 = vmul.f32 %v3785, %v3721
        %v3830 = vmul.f32 %v3789, %v3724
        %v3831 = vmul.f32 %v3793, %v3729
        %v3832 = vmul.f32 %v3797, %v3732
        %v3833 = vmul.f32 %v3801, %v3737
        %v3834 = vmul.f32 %v3805, %v3740
        %v3835 = vmul.f32 %v3809, %v3745
        %v3836 = vmul.f32 %v3813, %v3748
        %v3837 = vmul.f32 %v3817, %v3753
        %v3838 = vmul.f32 %v3821, %v3756
        %v3839 = vadd.f32 %v3577, %v3823
        %v3840 = vadd.f32 %v3578, %v3824
        %v3841 = vadd.f32 %v3579, %v3825
        %v3842 = vadd.f32 %v3580, %v3826
        %v3843 = vadd.f32 %v3581, %v3827
        %v3844 = vadd.f32 %v3582, %v3828
        %v3845 = vadd.f32 %v3583, %v3829
        %v3846 = vadd.f32 %v3584, %v3830
        %v3847 = vadd.f32 %v3585, %v3831
        %v3848 = vadd.f32 %v3586, %v3832
        %v3849 = vadd.f32 %v3587, %v3833
        %v3850 = vadd.f32 %v3588, %v3834
        %v3851 = vadd.f32 %v3589, %v3835
        %v3852 = vadd.f32 %v3590, %v3836
        %v3853 = vadd.f32 %v3591, %v3837
        %v3854 = vadd.f32 %v3592, %v3838
        %3855 = vst [vmem:[%s288] sm:$0xff] %v3839
        %3856 = vst [vmem:[%s288 + $0x8] sm:$0xff] %v3840
        %3857 = vst [vmem:[%s288 + $0x10] sm:$0xff] %v3841
        %3858 = vst [vmem:[%s288 + $0x18] sm:$0xff] %v3842
        %3859 = vst [vmem:[%s288 + $0x20] sm:$0xff] %v3843
        %3860 = vst [vmem:[%s288 + $0x28] sm:$0xff] %v3844
        %3861 = vst [vmem:[%s288 + $0x30] sm:$0xff] %v3845
        %3862 = vst [vmem:[%s288 + $0x38] sm:$0xff] %v3846
        %3863 = vst [vmem:[%s288 + $0x40] sm:$0xff] %v3847
        %3864 = vst [vmem:[%s288 + $0x48] sm:$0xff] %v3848
        %3865 = vst [vmem:[%s288 + $0x50] sm:$0xff] %v3849
        %3866 = vst [vmem:[%s288 + $0x58] sm:$0xff] %v3850
        %3867 = vst [vmem:[%s288 + $0x60] sm:$0xff] %v3851
        %3868 = vst [vmem:[%s288 + $0x68] sm:$0xff] %v3852
        %3869 = vst [vmem:[%s288 + $0x70] sm:$0xff] %v3853
        %3870 = vst [vmem:[%s288 + $0x78] sm:$0xff] %v3854
        %s3871 = sand.u32 %s141, 1
        %s3872 = scalar_lea.sflag [#allocation4], %s3871
        %s3873 = sand.u32 %s141, 1
        %s3874 = smul.addr %s3873, 128
        %s3875 = scalar_lea.vmem [#allocation5], %s3874
        %s3876 = smul.u32 16, %s23
        %p3877 = scmp.lt.s32.totalorder %s3876, 31
        %s3878 = scalar_select %p3877, %s3876, 31
        %s3879 = smul.addr %s3878, 8
        %s3880 = scalar_lea.vmem %s6, %s3879
        %s3881 = smul.u32 16, %s23
        %p3882 = scmp.lt.s32.totalorder %s3881, 31
        %s3883 = scalar_select %p3882, %s3881, 31
        %s3884 = smul.addr %s3883, 8
        %s3885 = scalar_lea.vmem %s7, %s3884
        // Predicated region
        $region45: #{moe_forward.1} parent=39 // pred_check
          %p3886 = pneg %p151
        $region46: #{moe_forward.1} parent=39 // pred_check_branch
          %3888 = sbr.rel (%p3886) target = $region48
        $region47: #{moe_forward.1} parent=39 // pred_region
          %s3889 = smul.u32 16, %s23
          %s3891 = ssub.s32 2048, 2048
          %3892 = vsyncadd %s3872, %s3891
          %s3893 = smul.addr %s3889, 128
          %s3894 = scalar_lea.hbm %s5, %s3893
          %s3895 = sshll.u32 %s3875, 4
          %s3896 = int_to_ptr.vmem [resolvable:$true] %s3895
          %3901 = dma.vmem_to_hbm [thread:$0]  %s3896, 2048, %s3894, %s3872, 128, 128, 8
        $region48: #{moe_forward.1} parent=39 // pred_fallthru
          _
        // Predicated region
        $region49: #{moe_forward.1} parent=39 // pred_check
          %p3902 = pneg %p177
        $region50: #{moe_forward.1} parent=39 // pred_check_branch
          %3904 = sbr.rel (%p3902) target = $region52
        $region51: #{moe_forward.1} parent=39 // pred_region
          %s3905 = smul.u32 16, %s23
        $region52: #{moe_forward.1} parent=39 // pred_fallthru
          _
        // Predicated region
        $region53: #{moe_forward.1} parent=39 // pred_check
          %p3906 = pneg %p203
        $region54: #{moe_forward.1} parent=39 // pred_check_branch
          %3908 = sbr.rel (%p3906) target = $region56
        $region55: #{moe_forward.1} parent=39 // pred_region
          %s3909 = smul.u32 16, %s23
        $region56: #{moe_forward.1} parent=39 // pred_fallthru
          _
      $region40: #{moe_forward.1} parent=5 // pred_fallthru
        _
      %p3910 = scmp.le.s32.totalorder 2, %s18
      // Predicated region
      $region57: #{moe_forward.1} parent=5 // pred_check
        %p3911 = pneg %p3910
      $region58: #{moe_forward.1} parent=5 // pred_check_branch
        %3913 = sbr.rel (%p3911) target = $region60
      $region59: #{moe_forward.1} parent=5 // pred_region
        %s3914 = ssub.s32 %s18, 2
        // Predicated region
        $region61: #{moe_forward.1} parent=59 // pred_check
          %p3915 = pneg %p157
        $region62: #{moe_forward.1} parent=59 // pred_check_branch
          %3917 = sbr.rel (%p3915) target = $region64
        $region63: #{moe_forward.1} parent=59 // pred_region
          %s3918 = sand.u32 %s142, 1
          %s3919 = scalar_lea.sflag [#allocation4], %s3918
          %s3920 = sand.u32 %s142, 1
          %s3921 = smul.addr %s3920, 128
          %s3922 = scalar_lea.vmem [#allocation5], %s3921
          %3923 = dma.done %s3919, 2048
        $region64: #{moe_forward.1} parent=59 // pred_fallthru
          _
        // Predicated region
        $region65: #{moe_forward.1} parent=59 // pred_check
          %p3924 = pneg %p183
        $region66: #{moe_forward.1} parent=59 // pred_check_branch
          %3926 = sbr.rel (%p3924) target = $region68
        $region67: #{moe_forward.1} parent=59 // pred_region
          %s3927 = smul.u32 16, %s24
          %p3928 = scmp.lt.s32.totalorder %s3927, 31
          %s3929 = scalar_select %p3928, %s3927, 31
          %s3930 = smul.addr %s3929, 8
          %s3931 = scalar_lea.vmem %s6, %s3930
        $region68: #{moe_forward.1} parent=59 // pred_fallthru
          _
        // Predicated region
        $region69: #{moe_forward.1} parent=59 // pred_check
          %p3932 = pneg %p209
        $region70: #{moe_forward.1} parent=59 // pred_check_branch
          %3934 = sbr.rel (%p3932) target = $region72
        $region71: #{moe_forward.1} parent=59 // pred_region
          %s3935 = smul.u32 16, %s24
          %p3936 = scmp.lt.s32.totalorder %s3935, 31
          %s3937 = scalar_select %p3936, %s3935, 31
          %s3938 = smul.addr %s3937, 8
          %s3939 = scalar_lea.vmem %s7, %s3938
        $region72: #{moe_forward.1} parent=59 // pred_fallthru
          _
      $region60: #{moe_forward.1} parent=5 // pred_fallthru
        _
    $region6: #{moe_forward.1} parent=1 // loop_footer
      %s22 = sadd.s32 1, %s18
    $region7: #{moe_forward.1} parent=1 // loop_footer_branch
      %17 = sbr.rel target = $region3
    $region8: #{moe_forward.1} parent=1 // loop_exit
      _
    %3940 = vsyncpa [#allocation3], 1
    %s3941 = scalar_lea.sflag [#allocation3], 1
    %3942 = vsyncpa %s3941, 1
    %3943 = vsyncpa [#allocation4], 1
    %s3944 = scalar_lea.sflag [#allocation4], 1
    %3945 = vsyncpa %s3944, 1

</llo_original>
